<compile_context>
chip_gen: v7x
topology: tpu7x:2x2x1
jax: 0.10.0
libtpu: 0.0.40
codegen_flags: <defaults>
</compile_context>

<pallas_src>
import functools

import jax
import jax.numpy as jnp
import numpy as np
from jax.experimental import pallas as pl
from jax.experimental.pallas import tpu as pltpu

EPSILON = 1e-8  # module-level constant of the original torch file


# ---------------------------------------------------------------------------
# Pallas kernel: in-VMEM unfold (row slices + lane rolls) + STARFM weighting
# ---------------------------------------------------------------------------
def _starfm_kernel(pc_ref, pf_ref, qc_ref, thr_ref, out_ref, *,
                   wh, ww, rel, spectral_unc, temporal_unc, scale, is_logistic):
    t, _, wp = pc_ref.shape          # (t, h, Wp) after Squeezed leading dims
    ph = out_ref.shape[0]            # (ph, Wp)
    ci, cj = wh // 2, ww // 2        # window-center offsets

    pc = pc_ref[...]                 # (t, h, Wp)  prior coarse image (lane-padded)
    pf = pf_ref[...]                 # (t, h, Wp)  prior fine image
    qc = qc_ref[...]                 # (h, Wp)     predicted-date coarse image
    thr = thr_ref[0, 0]              # scalar      2 * nanstd / num_classes  (SMEM)

    # ---- window-center quantities (column m IS the true window-center column) ----
    pc_c = pc[:, ci:ci + ph, :]                       # (t, ph, Wp)
    pf_c = pf[:, ci:ci + ph, :]
    qc_c = qc[ci:ci + ph, :]                          # (ph, Wp)

    sd_thr = jnp.max(jnp.abs(pc_c - pf_c), axis=0) + spectral_unc      # (ph, Wp)
    td_thr = jnp.max(jnp.abs(pc_c - qc_c[None]), axis=0) + temporal_unc
    # hoist loop-invariant broadcasts once (JAX does not CSE broadcast_in_dim)
    sd_thr = jnp.broadcast_to(sd_thr[None], (t, ph, wp))
    td_thr = jnp.broadcast_to(td_thr[None], (t, ph, wp))
    # fold window-center validity into the similarity threshold (-1 => always False)
    thr_eff = jnp.where(pf_c >= EPSILON, thr, -1.0)                    # (t, ph, Wp)

    num = jnp.zeros((ph, wp), jnp.float32)            # sum_{t,L} mw * pred_fine
    den = jnp.zeros((ph, wp), jnp.float32)            # sum_{t,L} mw

    def accumulate(pc_k, pf_k, qc_k, sp_val, num, den):
        sd = jnp.abs(pc_k - pf_k)                     # spectral difference
        e = pc_k - qc_k[None]                         # reused: td = |e|, pred = pf - e
        td = jnp.abs(e)
        if is_logistic:
            if scale == 1.0:
                wgt = jnp.log(sd + 1.0) * jnp.log(td + 1.0)
            else:
                wgt = jnp.log(sd * scale + 1.0) * jnp.log(td * scale + 1.0)
        else:
            wgt = sd * td
        # divide moved onto the EUP slot (weights only; final normalization is exact)
        weight = pl.reciprocal(wgt * sp_val + EPSILON, approx=True)
        # fused sample-filter + spectral-similarity + validity mask
        mask = ((sd < sd_thr) & (td < td_thr)
                & (pf_k >= EPSILON)
                & (jnp.abs(pf_k - pf_c) < thr_eff))
        mw = jnp.where(mask, weight, 0.0)
        num = num + jnp.sum(mw * (pf_k - e), axis=0)  # pred_fine = qc + pf - pc = pf - e
        den = den + jnp.sum(mw, axis=0)
        return num, den

    # In-VMEM unfold: static row (sublane) slices hoisted once per window row, column
    # offsets generated with pltpu.roll on the XLU.  Each |d| > 0 is visited in both
    # circular directions with the same spatial weight (weight depends on d**2 only),
    # so the accumulated sums are independent of the rotate direction convention.
    # TODO(synk): for window_size >= 7 convert this statically-unrolled offset loop
    # into a lax.fori_loop (dynamic rolls, stacked row-slab scratch) to bound vreg
    # live ranges instead of fully unrolling wh*ww iterations.
    for ki in range(wh):
        row_d2 = float((ki - ci) ** 2)
        pc_i = pc[:, ki:ki + ph, :]                   # (t, ph, Wp) sublane-only slice
        pf_i = pf[:, ki:ki + ph, :]
        qc_i = qc[ki:ki + ph, :]                      # (ph, Wp)
        num, den = accumulate(pc_i, pf_i, qc_i, row_d2 / rel + 1.0, num, den)
        for d in range(1, cj + 1):
            sp_val = (row_d2 + float(d * d)) / rel + 1.0
            for shift in (d, wp - d):                 # both circular directions
                num, den = accumulate(pltpu.roll(pc_i, shift, axis=2),
                                      pltpu.roll(pf_i, shift, axis=2),
                                      pltpu.roll(qc_i, shift, axis=1),
                                      sp_val, num, den)

    # lane-dense unmasked store; the wrapper slices the valid columns [cj : cj+pw)
    out_ref[...] = num / (den + EPSILON)


# ---------------------------------------------------------------------------
# Plain-JAX pre-pass: global nanstd-based similarity threshold.
# Matches torch's nanmean over the unfolded cube exactly by weighting each raw
# pixel with its window multiplicity (no cube materialization).
# ---------------------------------------------------------------------------
def _similarity_threshold(pf, wh, ww, ph, pw, num_classes):
    b, c, t, h, w = pf.shape
    ri = jnp.arange(h)
    rj = jnp.arange(w)
    cnt_r = (jnp.minimum(wh - 1, ri) - jnp.maximum(0, ri - ph + 1) + 1).astype(jnp.float32)
    cnt_c = (jnp.minimum(ww - 1, rj) - jnp.maximum(0, rj - pw + 1) + 1).astype(jnp.float32)
    mult = cnt_r[:, None] * cnt_c[None, :]                    # (h, w) multiplicity
    wts = jnp.where(pf >= EPSILON, mult, 0.0)                 # nan-mask -> validity
    wsum = jnp.sum(wts)                                       # NOTE: 0 only if every pixel invalid
    m1 = jnp.sum(wts * pf) / wsum
    m2 = jnp.sum(wts * pf * pf) / wsum
    var = jnp.maximum(m2 - m1 * m1, 0.0)                      # clamp fp cancellation
    thr = 2.0 * jnp.sqrt(var) / num_classes
    return thr.reshape(1, 1).astype(jnp.float32)


# ---------------------------------------------------------------------------
# Wrapper
# ---------------------------------------------------------------------------
def starfm_forward(prior_coarse_series, prior_fine_series, pred_coarse, *,
                   window_size, patch_size, num_classes,
                   fine_img_uncertainty=0.001, coarse_img_uncertainty=0.001,
                   relative_factor_spatial_distance=None,
                   is_logistic=True, scale_factor=1.0):
    wh = ww = int(window_size)
    ph, pw = patch_size
    b, c, t, h, w = prior_coarse_series.shape
    assert (h - wh + 1, w - ww + 1) == (ph, pw)
    # TODO(synk): even window widths have one unpaired column offset that needs a
    # direction-committed lane shift; only odd windows (standard STARFM) supported.
    assert ww % 2 == 1, "window_size must be odd"

    spectral_unc = (fine_img_uncertainty ** 2 + coarse_img_uncertainty ** 2) ** 0.5
    temporal_unc = (coarse_img_uncertainty ** 2 + coarse_img_uncertainty ** 2) ** 0.5
    rel = (window_size // 2) if relative_factor_spatial_distance is None \
        else relative_factor_spatial_distance

    pc = prior_coarse_series.astype(jnp.float32)
    pf = prior_fine_series.astype(jnp.float32)
    qc = pred_coarse.astype(jnp.float32)

    # global scalar reduction, computed once on the un-padded data
    thr = _similarity_threshold(pf, wh, ww, ph, pw, num_classes)

    # lane-dense layout: zero-pad the image width to a multiple of 128 lanes
    wp = ((w + 127) // 128) * 128
    pad_w = wp - w
    if pad_w:
        pc = jnp.pad(pc, ((0, 0),) * 4 + ((0, pad_w),))
        pf = jnp.pad(pf, ((0, 0),) * 4 + ((0, pad_w),))
        qc = jnp.pad(qc, ((0, 0),) * 3 + ((0, pad_w),))

    kernel = functools.partial(
        _starfm_kernel, wh=wh, ww=ww, rel=float(rel),
        spectral_unc=float(spectral_unc), temporal_unc=float(temporal_unc),
        scale=float(scale_factor), is_logistic=bool(is_logistic))

    # VMEM budget: double-buffered blocks + headroom, capped against device capacity
    # (64 MiB on v7x, 128 MiB on v5e/v6e).
    bytes_per_step = 4 * (2 * t * h * wp + h * wp + ph * wp)
    vmem_needed = 2 * bytes_per_step + (8 << 20)
    vmem_cap = 64 << 20
    try:
        vmem_cap = int(getattr(pltpu.get_tpu_info(), "vmem_capacity_bytes", vmem_cap))
    except Exception:
        pass
    vmem_limit = int(max(16 << 20, min(vmem_needed, int(0.75 * vmem_cap))))
    # TODO(synk): for very large images (vmem_needed > 0.75*cap, esp. on v7x), add a
    # halo'd row-tile grid axis (also feeds both v7x TensorCores when b*c is small).

    out_padded = pl.pallas_call(
        kernel,
        out_shape=jax.ShapeDtypeStruct((b, c, ph, wp), jnp.float32),
        grid=(b, c),
        in_specs=[
            pl.BlockSpec((pl.Squeezed(), pl.Squeezed(), t, h, wp),
                         lambda bi, ci_: (bi, ci_, 0, 0, 0)),               # prior coarse
            pl.BlockSpec((pl.Squeezed(), pl.Squeezed(), t, h, wp),
                         lambda bi, ci_: (bi, ci_, 0, 0, 0)),               # prior fine
            pl.BlockSpec((pl.Squeezed(), pl.Squeezed(), h, wp),
                         lambda bi, ci_: (bi, ci_, 0, 0)),                  # pred coarse
            pl.BlockSpec(memory_space=pltpu.MemorySpace.SMEM),              # threshold scalar
        ],
        out_specs=pl.BlockSpec((pl.Squeezed(), pl.Squeezed(), ph, wp),
                               lambda bi, ci_: (bi, ci_, 0, 0)),
        compiler_params=pltpu.CompilerParams(
            dimension_semantics=("parallel", "parallel"),
            vmem_limit_bytes=vmem_limit),
    )(pc, pf, qc, thr)

    # kernel output column m corresponds to window-center column m -> original output
    # column j = m - cj; keep columns [cj, cj + pw).
    cj = ww // 2
    return out_padded[..., cj:cj + pw]


# ---------------------------------------------------------------------------
# Test-only helpers: nn.Unfold equivalent + spatial distance (for the reference)
# ---------------------------------------------------------------------------
def _extract_cube(img, wh, ww):
    """img: (b, c, t, h, w) -> cube (b, c, t, L, N) (unfold with N on last axis)."""
    b, c, t, h, w = img.shape
    ph, pw = h - wh + 1, w - ww + 1
    slabs = []
    for ki in range(wh):
        for kj in range(ww):
            slabs.append(img[:, :, :, ki:ki + ph, kj:kj + pw])
    cube = jnp.stack(slabs, axis=3)                       # (b, c, t, L, ph, pw)
    return cube.reshape(b, c, t, wh * ww, ph * pw)        # (b, c, t, L, N)


def _spatial_difference(wh, ww, rel_factor):
    px, py = jnp.meshgrid(jnp.arange(wh), jnp.arange(ww), indexing="ij")
    dis = ((px - wh // 2) ** 2 + (py - ww // 2) ** 2).astype(jnp.float32).reshape(-1)
    return dis / rel_factor + 1.0                         # (L,)


# Pure-JAX reference mirroring the torch math (cube-based) for correctness check.
def _starfm_reference(pc_cube, pf_cube, qc_cube, sp, thr, mid,
                      spectral_unc, temporal_unc, scale, is_logistic):
    sd = jnp.abs(pc_cube - pf_cube)
    td = jnp.abs(pc_cube - qc_cube)
    spb = sp[None, None, None, :, None]
    if is_logistic:
        weight = 1.0 / (jnp.log(sd * scale + 1.0) * jnp.log(td * scale + 1.0) * spb + EPSILON)
    else:
        weight = 1.0 / (sd * td * spb + EPSILON)
    max_sd = jnp.max(sd[:, :, :, mid:mid + 1, :], axis=2, keepdims=True)
    max_td = jnp.max(td[:, :, :, mid:mid + 1, :], axis=2, keepdims=True)
    filt = ((sd < max_sd + spectral_unc) & (td < max_td + temporal_unc)).astype(jnp.float32)
    pf_nan = jnp.where(pf_cube < EPSILON, jnp.nan, pf_cube)
    cdiff = jnp.abs(pf_nan - pf_nan[:, :, :, mid:mid + 1, :])
    similar = (cdiff < thr).astype(jnp.float32)            # NaN compares False -> 0
    mw = weight * similar * filt
    norm_w = mw / (jnp.sum(mw, axis=(2, 3), keepdims=True) + EPSILON)
    pred_fine = qc_cube + pf_cube - pc_cube
    return jnp.sum(norm_w * pred_fine, axis=(2, 3))        # (b, c, N)


if __name__ == "__main__":
    key = jax.random.PRNGKey(0)
    b, c, t = 2, 3, 2
    window = 5
    patch = (16, 16)
    num_classes = 4
    h = patch[0] + window - 1
    w = patch[1] + window - 1

    k1, k2, k3 = jax.random.split(key, 3)
    prior_coarse = jax.random.uniform(k1, (b, c, t, h, w), jnp.float32)
    prior_fine = jax.random.uniform(k2, (b, c, t, h, w), jnp.float32)
    pred_coarse = jax.random.uniform(k3, (b, c, h, w), jnp.float32)

    out = starfm_forward(prior_coarse, prior_fine, pred_coarse,
                         window_size=window, patch_size=patch,
                         num_classes=num_classes)
    out = jax.block_until_ready(out)
    assert out.shape == (b, c, *patch) and out.dtype == jnp.float32

    # --- correctness checks vs pure-JAX cube-based reference (mirrors the torch math) ---
    thr = _similarity_threshold(prior_fine, window, window, patch[0], patch[1], num_classes)

    pc_cube = _extract_cube(prior_coarse, window, window)
    pf_cube = _extract_cube(prior_fine, window, window)
    qc_cube = _extract_cube(pred_coarse[:, :, None], window, window)
    sp = _spatial_difference(window, window, window // 2)
    mid = window * (window // 2) + window // 2
    su = (0.001 ** 2 + 0.001 ** 2) ** 0.5
    tu = (0.001 ** 2 + 0.001 ** 2) ** 0.5

    # (a) weighted raw-image nan-stats match the cube-based nanmean/nanstd
    pf_nan = jnp.where(pf_cube < EPSILON, jnp.nan, pf_cube)
    m1 = jnp.nanmean(pf_nan)
    m2 = jnp.nanmean(pf_nan * pf_nan)
    thr_cube = 2.0 * jnp.sqrt(jnp.maximum(m2 - m1 * m1, 0.0)) / num_classes
    np.testing.assert_allclose(float(thr[0, 0]), float(thr_cube), rtol=1e-5, atol=1e-6)

    # (b) logistic path (default).  Approx-reciprocal weights introduce a small,
    #     bounded perturbation of the weighted average -> slightly loosened tolerance.
    ref = _starfm_reference(pc_cube, pf_cube, qc_cube, sp, thr[0, 0], mid,
                            su, tu, 1.0, True).reshape(b, c, *patch)
    np.testing.assert_allclose(np.asarray(out), np.asarray(ref), rtol=3e-3, atol=3e-3)

    # (c) non-logistic path: weights can approach 1/EPSILON, so the approx-reciprocal
    #     error is amplified more than in the logistic path -> looser tolerance.
    out_nl = starfm_forward(prior_coarse, prior_fine, pred_coarse,
                            window_size=window, patch_size=patch,
                            num_classes=num_classes, is_logistic=False)
    out_nl = jax.block_until_ready(out_nl)
    ref_nl = _starfm_reference(pc_cube, pf_cube, qc_cube, sp, thr[0, 0], mid,
                               su, tu, 1.0, False).reshape(b, c, *patch)
    np.testing.assert_allclose(np.asarray(out_nl), np.asarray(ref_nl), rtol=5e-3, atol=5e-3)

    print("KERNEL_OK")
</pallas_src>

<mosaic_0001>
module attributes {stable_mosaic.version = 11 : i64} {
  func.func @_starfm_kernel(%arg0: i32, %arg1: i32, %arg2: memref<1x1x2x20x128xf32, #tpu.memory_space<vmem>>, %arg3: memref<1x1x2x20x128xf32, #tpu.memory_space<vmem>>, %arg4: memref<1x1x20x128xf32, #tpu.memory_space<vmem>>, %arg5: memref<1x1xf32, #tpu.memory_space<smem>>, %arg6: memref<1x1x16x128xf32, #tpu.memory_space<vmem>>) attributes {dimension_semantics = [#tpu.dimension_semantics<parallel>, #tpu.dimension_semantics<parallel>], iteration_bounds = array<i64: 2, 3>, scalar_prefetch = 0 : i64, scratch_operands = 0 : i64, tpu.core_type = #tpu.core_type<tc>, window_params = [{transform_indices = @transform_0, window_bounds = array<i64: 1, 1, 2, 20, 128>}, {transform_indices = @transform_1, window_bounds = array<i64: 1, 1, 2, 20, 128>}, {transform_indices = @transform_2, window_bounds = array<i64: 1, 1, 20, 128>}, {transform_indices = @transform_3, window_bounds = array<i64: 1, 1>}, {transform_indices = @transform_4, window_bounds = array<i64: 1, 1, 16, 128>}]} {
    %c0 = arith.constant 0 : index
    %c0_0 = arith.constant 0 : index
    %c0_1 = arith.constant 0 : index
    %c0_2 = arith.constant 0 : index
    %c0_3 = arith.constant 0 : index
    %0 = vector.load %arg2[%c0, %c0_0, %c0_1, %c0_2, %c0_3] : memref<1x1x2x20x128xf32, #tpu.memory_space<vmem>>, vector<1x1x2x20x128xf32>
    %1 = vector.shape_cast %0 : vector<1x1x2x20x128xf32> to vector<2x20x128xf32>
    %c0_4 = arith.constant 0 : index
    %c0_5 = arith.constant 0 : index
    %c0_6 = arith.constant 0 : index
    %c0_7 = arith.constant 0 : index
    %c0_8 = arith.constant 0 : index
    %2 = vector.load %arg3[%c0_4, %c0_5, %c0_6, %c0_7, %c0_8] : memref<1x1x2x20x128xf32, #tpu.memory_space<vmem>>, vector<1x1x2x20x128xf32>
    %3 = vector.shape_cast %2 : vector<1x1x2x20x128xf32> to vector<2x20x128xf32>
    %c0_9 = arith.constant 0 : index
    %c0_10 = arith.constant 0 : index
    %c0_11 = arith.constant 0 : index
    %c0_12 = arith.constant 0 : index
    %4 = vector.load %arg4[%c0_9, %c0_10, %c0_11, %c0_12] : memref<1x1x20x128xf32, #tpu.memory_space<vmem>>, vector<1x1x20x128xf32>
    %5 = vector.shape_cast %4 : vector<1x1x20x128xf32> to vector<20x128xf32>
    %c0_13 = arith.constant 0 : index
    %c0_14 = arith.constant 0 : index
    %6 = memref.load %arg5[%c0_13, %c0_14] : memref<1x1xf32, #tpu.memory_space<smem>>
    %7 = vector.extract_strided_slice %1 {offsets = [0, 2, 0], sizes = [2, 16, 128], strides = [1, 1, 1]} : vector<2x20x128xf32> to vector<2x16x128xf32>
    %8 = vector.extract_strided_slice %3 {offsets = [0, 2, 0], sizes = [2, 16, 128], strides = [1, 1, 1]} : vector<2x20x128xf32> to vector<2x16x128xf32>
    %9 = vector.extract_strided_slice %5 {offsets = [2, 0], sizes = [16, 128], strides = [1, 1]} : vector<20x128xf32> to vector<16x128xf32>
    %10 = arith.subf %7, %8 : vector<2x16x128xf32>
    %11 = math.absf %10 : vector<2x16x128xf32>
    %cst = arith.constant dense<0xFF800000> : vector<16x128xf32>
    %12 = vector.multi_reduction <maximumf>, %11, %cst [0] : vector<2x16x128xf32> to vector<16x128xf32>
    %cst_15 = arith.constant 0.00141421356 : f32
    %13 = vector.broadcast %cst_15 : f32 to vector<16x128xf32>
    %14 = arith.addf %12, %13 : vector<16x128xf32>
    %15 = vector.shape_cast %9 : vector<16x128xf32> to vector<1x16x128xf32>
    %16 = vector.broadcast %15 : vector<1x16x128xf32> to vector<2x16x128xf32>
    %17 = arith.subf %7, %16 : vector<2x16x128xf32>
    %18 = math.absf %17 : vector<2x16x128xf32>
    %cst_16 = arith.constant dense<0xFF800000> : vector<16x128xf32>
    %19 = vector.multi_reduction <maximumf>, %18, %cst_16 [0] : vector<2x16x128xf32> to vector<16x128xf32>
    %cst_17 = arith.constant 0.00141421356 : f32
    %20 = vector.broadcast %cst_17 : f32 to vector<16x128xf32>
    %21 = arith.addf %19, %20 : vector<16x128xf32>
    %22 = vector.shape_cast %14 : vector<16x128xf32> to vector<1x16x128xf32>
    %23 = vector.shape_cast %22 : vector<1x16x128xf32> to vector<1x16x128xf32>
    %24 = vector.broadcast %23 : vector<1x16x128xf32> to vector<2x16x128xf32>
    %25 = vector.shape_cast %21 : vector<16x128xf32> to vector<1x16x128xf32>
    %26 = vector.shape_cast %25 : vector<1x16x128xf32> to vector<1x16x128xf32>
    %27 = vector.broadcast %26 : vector<1x16x128xf32> to vector<2x16x128xf32>
    %cst_18 = arith.constant 9.99999993E-9 : f32
    %28 = vector.broadcast %cst_18 : f32 to vector<2x16x128xf32>
    %29 = arith.cmpf oge, %8, %28 : vector<2x16x128xf32>
    %cst_19 = arith.constant -1.000000e+00 : f32
    %30 = vector.broadcast %6 : f32 to vector<2x16x128xf32>
    %31 = vector.broadcast %cst_19 : f32 to vector<2x16x128xf32>
    %32 = arith.select %29, %30, %31 : vector<2x16x128xi1>, vector<2x16x128xf32>
    %cst_20 = arith.constant 0.000000e+00 : f32
    %33 = vector.broadcast %cst_20 : f32 to vector<16x128xf32>
    %cst_21 = arith.constant 0.000000e+00 : f32
    %34 = vector.broadcast %cst_21 : f32 to vector<16x128xf32>
    %35 = vector.extract_strided_slice %1 {offsets = [0, 0, 0], sizes = [2, 16, 128], strides = [1, 1, 1]} : vector<2x20x128xf32> to vector<2x16x128xf32>
    %36 = vector.extract_strided_slice %3 {offsets = [0, 0, 0], sizes = [2, 16, 128], strides = [1, 1, 1]} : vector<2x20x128xf32> to vector<2x16x128xf32>
    %37 = vector.extract_strided_slice %5 {offsets = [0, 0], sizes = [16, 128], strides = [1, 1]} : vector<20x128xf32> to vector<16x128xf32>
    %38 = arith.subf %35, %36 : vector<2x16x128xf32>
    %39 = math.absf %38 : vector<2x16x128xf32>
    %40 = vector.shape_cast %37 : vector<16x128xf32> to vector<1x16x128xf32>
    %41 = vector.broadcast %40 : vector<1x16x128xf32> to vector<2x16x128xf32>
    %42 = arith.subf %35, %41 : vector<2x16x128xf32>
    %43 = math.absf %42 : vector<2x16x128xf32>
    %cst_22 = arith.constant 1.000000e+00 : f32
    %44 = vector.broadcast %cst_22 : f32 to vector<2x16x128xf32>
    %45 = arith.addf %39, %44 : vector<2x16x128xf32>
    %46 = math.log %45 : vector<2x16x128xf32>
    %cst_23 = arith.constant 1.000000e+00 : f32
    %47 = vector.broadcast %cst_23 : f32 to vector<2x16x128xf32>
    %48 = arith.addf %43, %47 : vector<2x16x128xf32>
    %49 = math.log %48 : vector<2x16x128xf32>
    %50 = arith.mulf %46, %49 : vector<2x16x128xf32>
    %cst_24 = arith.constant 3.000000e+00 : f32
    %51 = vector.broadcast %cst_24 : f32 to vector<2x16x128xf32>
    %52 = arith.mulf %50, %51 : vector<2x16x128xf32>
    %cst_25 = arith.constant 9.99999993E-9 : f32
    %53 = vector.broadcast %cst_25 : f32 to vector<2x16x128xf32>
    %54 = arith.addf %52, %53 : vector<2x16x128xf32>
    %55 = tpu.reciprocal %54 {approx = true} : vector<2x16x128xf32> -> vector<2x16x128xf32>
    %56 = arith.cmpf olt, %39, %24 : vector<2x16x128xf32>
    %57 = arith.cmpf olt, %43, %27 : vector<2x16x128xf32>
    %58 = arith.andi %56, %57 : vector<2x16x128xi1>
    %cst_26 = arith.constant 9.99999993E-9 : f32
    %59 = vector.broadcast %cst_26 : f32 to vector<2x16x128xf32>
    %60 = arith.cmpf oge, %36, %59 : vector<2x16x128xf32>
    %61 = arith.andi %58, %60 : vector<2x16x128xi1>
    %62 = arith.subf %36, %8 : vector<2x16x128xf32>
    %63 = math.absf %62 : vector<2x16x128xf32>
    %64 = arith.cmpf olt, %63, %32 : vector<2x16x128xf32>
    %65 = arith.andi %61, %64 : vector<2x16x128xi1>
    %cst_27 = arith.constant 0.000000e+00 : f32
    %66 = vector.broadcast %cst_27 : f32 to vector<2x16x128xf32>
    %67 = arith.select %65, %55, %66 : vector<2x16x128xi1>, vector<2x16x128xf32>
    %68 = arith.subf %36, %42 : vector<2x16x128xf32>
    %69 = arith.mulf %67, %68 : vector<2x16x128xf32>
    %cst_28 = arith.constant dense<0.000000e+00> : vector<16x128xf32>
    %70 = vector.multi_reduction <add>, %69, %cst_28 [0] : vector<2x16x128xf32> to vector<16x128xf32>
    %71 = arith.addf %33, %70 : vector<16x128xf32>
    %cst_29 = arith.constant dense<0.000000e+00> : vector<16x128xf32>
    %72 = vector.multi_reduction <add>, %67, %cst_29 [0] : vector<2x16x128xf32> to vector<16x128xf32>
    %73 = arith.addf %34, %72 : vector<16x128xf32>
    %c1_i32 = arith.constant 1 : i32
    %74 = tpu.dynamic_rotate %35 by %c1_i32 dim 2 : vector<2x16x128xf32>, i32 -> vector<2x16x128xf32>
    %c1_i32_30 = arith.constant 1 : i32
    %75 = tpu.dynamic_rotate %36 by %c1_i32_30 dim 2 : vector<2x16x128xf32>, i32 -> vector<2x16x128xf32>
    %c1_i32_31 = arith.constant 1 : i32
    %76 = tpu.dynamic_rotate %37 by %c1_i32_31 dim 1 : vector<16x128xf32>, i32 -> vector<16x128xf32>
    %77 = arith.subf %74, %75 : vector<2x16x128xf32>
    %78 = math.absf %77 : vector<2x16x128xf32>
    %79 = vector.shape_cast %76 : vector<16x128xf32> to vector<1x16x128xf32>
    %80 = vector.broadcast %79 : vector<1x16x128xf32> to vector<2x16x128xf32>
    %81 = arith.subf %74, %80 : vector<2x16x128xf32>
    %82 = math.absf %81 : vector<2x16x128xf32>
    %cst_32 = arith.constant 1.000000e+00 : f32
    %83 = vector.broadcast %cst_32 : f32 to vector<2x16x128xf32>
    %84 = arith.addf %78, %83 : vector<2x16x128xf32>
    %85 = math.log %84 : vector<2x16x128xf32>
    %cst_33 = arith.constant 1.000000e+00 : f32
    %86 = vector.broadcast %cst_33 : f32 to vector<2x16x128xf32>
    %87 = arith.addf %82, %86 : vector<2x16x128xf32>
    %88 = math.log %87 : vector<2x16x128xf32>
    %89 = arith.mulf %85, %88 : vector<2x16x128xf32>
    %cst_34 = arith.constant 3.500000e+00 : f32
    %90 = vector.broadcast %cst_34 : f32 to vector<2x16x128xf32>
    %91 = arith.mulf %89, %90 : vector<2x16x128xf32>
    %cst_35 = arith.constant 9.99999993E-9 : f32
    %92 = vector.broadcast %cst_35 : f32 to vector<2x16x128xf32>
    %93 = arith.addf %91, %92 : vector<2x16x128xf32>
    %94 = tpu.reciprocal %93 {approx = true} : vector<2x16x128xf32> -> vector<2x16x128xf32>
    %95 = arith.cmpf olt, %78, %24 : vector<2x16x128xf32>
    %96 = arith.cmpf olt, %82, %27 : vector<2x16x128xf32>
    %97 = arith.andi %95, %96 : vector<2x16x128xi1>
    %cst_36 = arith.constant 9.99999993E-9 : f32
    %98 = vector.broadcast %cst_36 : f32 to vector<2x16x128xf32>
    %99 = arith.cmpf oge, %75, %98 : vector<2x16x128xf32>
    %100 = arith.andi %97, %99 : vector<2x16x128xi1>
    %101 = arith.subf %75, %8 : vector<2x16x128xf32>
    %102 = math.absf %101 : vector<2x16x128xf32>
    %103 = arith.cmpf olt, %102, %32 : vector<2x16x128xf32>
    %104 = arith.andi %100, %103 : vector<2x16x128xi1>
    %cst_37 = arith.constant 0.000000e+00 : f32
    %105 = vector.broadcast %cst_37 : f32 to vector<2x16x128xf32>
    %106 = arith.select %104, %94, %105 : vector<2x16x128xi1>, vector<2x16x128xf32>
    %107 = arith.subf %75, %81 : vector<2x16x128xf32>
    %108 = arith.mulf %106, %107 : vector<2x16x128xf32>
    %cst_38 = arith.constant dense<0.000000e+00> : vector<16x128xf32>
    %109 = vector.multi_reduction <add>, %108, %cst_38 [0] : vector<2x16x128xf32> to vector<16x128xf32>
    %110 = arith.addf %71, %109 : vector<16x128xf32>
    %cst_39 = arith.constant dense<0.000000e+00> : vector<16x128xf32>
    %111 = vector.multi_reduction <add>, %106, %cst_39 [0] : vector<2x16x128xf32> to vector<16x128xf32>
    %112 = arith.addf %73, %111 : vector<16x128xf32>
    %c127_i32 = arith.constant 127 : i32
    %113 = tpu.dynamic_rotate %35 by %c127_i32 dim 2 : vector<2x16x128xf32>, i32 -> vector<2x16x128xf32>
    %c127_i32_40 = arith.constant 127 : i32
    %114 = tpu.dynamic_rotate %36 by %c127_i32_40 dim 2 : vector<2x16x128xf32>, i32 -> vector<2x16x128xf32>
    %c127_i32_41 = arith.constant 127 : i32
    %115 = tpu.dynamic_rotate %37 by %c127_i32_41 dim 1 : vector<16x128xf32>, i32 -> vector<16x128xf32>
    %116 = arith.subf %113, %114 : vector<2x16x128xf32>
    %117 = math.absf %116 : vector<2x16x128xf32>
    %118 = vector.shape_cast %115 : vector<16x128xf32> to vector<1x16x128xf32>
    %119 = vector.broadcast %118 : vector<1x16x128xf32> to vector<2x16x128xf32>
    %120 = arith.subf %113, %119 : vector<2x16x128xf32>
    %121 = math.absf %120 : vector<2x16x128xf32>
    %cst_42 = arith.constant 1.000000e+00 : f32
    %122 = vector.broadcast %cst_42 : f32 to vector<2x16x128xf32>
    %123 = arith.addf %117, %122 : vector<2x16x128xf32>
    %124 = math.log %123 : vector<2x16x128xf32>
    %cst_43 = arith.constant 1.000000e+00 : f32
    %125 = vector.broadcast %cst_43 : f32 to vector<2x16x128xf32>
    %126 = arith.addf %121, %125 : vector<2x16x128xf32>
    %127 = math.log %126 : vector<2x16x128xf32>
    %128 = arith.mulf %124, %127 : vector<2x16x128xf32>
    %cst_44 = arith.constant 3.500000e+00 : f32
    %129 = vector.broadcast %cst_44 : f32 to vector<2x16x128xf32>
    %130 = arith.mulf %128, %129 : vector<2x16x128xf32>
    %cst_45 = arith.constant 9.99999993E-9 : f32
    %131 = vector.broadcast %cst_45 : f32 to vector<2x16x128xf32>
    %132 = arith.addf %130, %131 : vector<2x16x128xf32>
    %133 = tpu.reciprocal %132 {approx = true} : vector<2x16x128xf32> -> vector<2x16x128xf32>
    %134 = arith.cmpf olt, %117, %24 : vector<2x16x128xf32>
    %135 = arith.cmpf olt, %121, %27 : vector<2x16x128xf32>
    %136 = arith.andi %134, %135 : vector<2x16x128xi1>
    %cst_46 = arith.constant 9.99999993E-9 : f32
    %137 = vector.broadcast %cst_46 : f32 to vector<2x16x128xf32>
    %138 = arith.cmpf oge, %114, %137 : vector<2x16x128xf32>
    %139 = arith.andi %136, %138 : vector<2x16x128xi1>
    %140 = arith.subf %114, %8 : vector<2x16x128xf32>
    %141 = math.absf %140 : vector<2x16x128xf32>
    %142 = arith.cmpf olt, %141, %32 : vector<2x16x128xf32>
    %143 = arith.andi %139, %142 : vector<2x16x128xi1>
    %cst_47 = arith.constant 0.000000e+00 : f32
    %144 = vector.broadcast %cst_47 : f32 to vector<2x16x128xf32>
    %145 = arith.select %143, %133, %144 : vector<2x16x128xi1>, vector<2x16x128xf32>
    %146 = arith.subf %114, %120 : vector<2x16x128xf32>
    %147 = arith.mulf %145, %146 : vector<2x16x128xf32>
    %cst_48 = arith.constant dense<0.000000e+00> : vector<16x128xf32>
    %148 = vector.multi_reduction <add>, %147, %cst_48 [0] : vector<2x16x128xf32> to vector<16x128xf32>
    %149 = arith.addf %110, %148 : vector<16x128xf32>
    %cst_49 = arith.constant dense<0.000000e+00> : vector<16x128xf32>
    %150 = vector.multi_reduction <add>, %145, %cst_49 [0] : vector<2x16x128xf32> to vector<16x128xf32>
    %151 = arith.addf %112, %150 : vector<16x128xf32>
    %c2_i32 = arith.constant 2 : i32
    %152 = tpu.dynamic_rotate %35 by %c2_i32 dim 2 : vector<2x16x128xf32>, i32 -> vector<2x16x128xf32>
    %c2_i32_50 = arith.constant 2 : i32
    %153 = tpu.dynamic_rotate %36 by %c2_i32_50 dim 2 : vector<2x16x128xf32>, i32 -> vector<2x16x128xf32>
    %c2_i32_51 = arith.constant 2 : i32
    %154 = tpu.dynamic_rotate %37 by %c2_i32_51 dim 1 : vector<16x128xf32>, i32 -> vector<16x128xf32>
    %155 = arith.subf %152, %153 : vector<2x16x128xf32>
    %156 = math.absf %155 : vector<2x16x128xf32>
    %157 = vector.shape_cast %154 : vector<16x128xf32> to vector<1x16x128xf32>
    %158 = vector.broadcast %157 : vector<1x16x128xf32> to vector<2x16x128xf32>
    %159 = arith.subf %152, %158 : vector<2x16x128xf32>
    %160 = math.absf %159 : vector<2x16x128xf32>
    %cst_52 = arith.constant 1.000000e+00 : f32
    %161 = vector.broadcast %cst_52 : f32 to vector<2x16x128xf32>
    %162 = arith.addf %156, %161 : vector<2x16x128xf32>
    %163 = math.log %162 : vector<2x16x128xf32>
    %cst_53 = arith.constant 1.000000e+00 : f32
    %164 = vector.broadcast %cst_53 : f32 to vector<2x16x128xf32>
    %165 = arith.addf %160, %164 : vector<2x16x128xf32>
    %166 = math.log %165 : vector<2x16x128xf32>
    %167 = arith.mulf %163, %166 : vector<2x16x128xf32>
    %cst_54 = arith.constant 5.000000e+00 : f32
    %168 = vector.broadcast %cst_54 : f32 to vector<2x16x128xf32>
    %169 = arith.mulf %167, %168 : vector<2x16x128xf32>
    %cst_55 = arith.constant 9.99999993E-9 : f32
    %170 = vector.broadcast %cst_55 : f32 to vector<2x16x128xf32>
    %171 = arith.addf %169, %170 : vector<2x16x128xf32>
    %172 = tpu.reciprocal %171 {approx = true} : vector<2x16x128xf32> -> vector<2x16x128xf32>
    %173 = arith.cmpf olt, %156, %24 : vector<2x16x128xf32>
    %174 = arith.cmpf olt, %160, %27 : vector<2x16x128xf32>
    %175 = arith.andi %173, %174 : vector<2x16x128xi1>
    %cst_56 = arith.constant 9.99999993E-9 : f32
    %176 = vector.broadcast %cst_56 : f32 to vector<2x16x128xf32>
    %177 = arith.cmpf oge, %153, %176 : vector<2x16x128xf32>
    %178 = arith.andi %175, %177 : vector<2x16x128xi1>
    %179 = arith.subf %153, %8 : vector<2x16x128xf32>
    %180 = math.absf %179 : vector<2x16x128xf32>
    %181 = arith.cmpf olt, %180, %32 : vector<2x16x128xf32>
    %182 = arith.andi %178, %181 : vector<2x16x128xi1>
    %cst_57 = arith.constant 0.000000e+00 : f32
    %183 = vector.broadcast %cst_57 : f32 to vector<2x16x128xf32>
    %184 = arith.select %182, %172, %183 : vector<2x16x128xi1>, vector<2x16x128xf32>
    %185 = arith.subf %153, %159 : vector<2x16x128xf32>
    %186 = arith.mulf %184, %185 : vector<2x16x128xf32>
    %cst_58 = arith.constant dense<0.000000e+00> : vector<16x128xf32>
    %187 = vector.multi_reduction <add>, %186, %cst_58 [0] : vector<2x16x128xf32> to vector<16x128xf32>
    %188 = arith.addf %149, %187 : vector<16x128xf32>
    %cst_59 = arith.constant dense<0.000000e+00> : vector<16x128xf32>
    %189 = vector.multi_reduction <add>, %184, %cst_59 [0] : vector<2x16x128xf32> to vector<16x128xf32>
    %190 = arith.addf %151, %189 : vector<16x128xf32>
    %c126_i32 = arith.constant 126 : i32
    %191 = tpu.dynamic_rotate %35 by %c126_i32 dim 2 : vector<2x16x128xf32>, i32 -> vector<2x16x128xf32>
    %c126_i32_60 = arith.constant 126 : i32
    %192 = tpu.dynamic_rotate %36 by %c126_i32_60 dim 2 : vector<2x16x128xf32>, i32 -> vector<2x16x128xf32>
    %c126_i32_61 = arith.constant 126 : i32
    %193 = tpu.dynamic_rotate %37 by %c126_i32_61 dim 1 : vector<16x128xf32>, i32 -> vector<16x128xf32>
    %194 = arith.subf %191, %192 : vector<2x16x128xf32>
    %195 = math.absf %194 : vector<2x16x128xf32>
    %196 = vector.shape_cast %193 : vector<16x128xf32> to vector<1x16x128xf32>
    %197 = vector.broadcast %196 : vector<1x16x128xf32> to vector<2x16x128xf32>
    %198 = arith.subf %191, %197 : vector<2x16x128xf32>
    %199 = math.absf %198 : vector<2x16x128xf32>
    %cst_62 = arith.constant 1.000000e+00 : f32
    %200 = vector.broadcast %cst_62 : f32 to vector<2x16x128xf32>
    %201 = arith.addf %195, %200 : vector<2x16x128xf32>
    %202 = math.log %201 : vector<2x16x128xf32>
    %cst_63 = arith.constant 1.000000e+00 : f32
    %203 = vector.broadcast %cst_63 : f32 to vector<2x16x128xf32>
    %204 = arith.addf %199, %203 : vector<2x16x128xf32>
    %205 = math.log %204 : vector<2x16x128xf32>
    %206 = arith.mulf %202, %205 : vector<2x16x128xf32>
    %cst_64 = arith.constant 5.000000e+00 : f32
    %207 = vector.broadcast %cst_64 : f32 to vector<2x16x128xf32>
    %208 = arith.mulf %206, %207 : vector<2x16x128xf32>
    %cst_65 = arith.constant 9.99999993E-9 : f32
    %209 = vector.broadcast %cst_65 : f32 to vector<2x16x128xf32>
    %210 = arith.addf %208, %209 : vector<2x16x128xf32>
    %211 = tpu.reciprocal %210 {approx = true} : vector<2x16x128xf32> -> vector<2x16x128xf32>
    %212 = arith.cmpf olt, %195, %24 : vector<2x16x128xf32>
    %213 = arith.cmpf olt, %199, %27 : vector<2x16x128xf32>
    %214 = arith.andi %212, %213 : vector<2x16x128xi1>
    %cst_66 = arith.constant 9.99999993E-9 : f32
    %215 = vector.broadcast %cst_66 : f32 to vector<2x16x128xf32>
    %216 = arith.cmpf oge, %192, %215 : vector<2x16x128xf32>
    %217 = arith.andi %214, %216 : vector<2x16x128xi1>
    %218 = arith.subf %192, %8 : vector<2x16x128xf32>
    %219 = math.absf %218 : vector<2x16x128xf32>
    %220 = arith.cmpf olt, %219, %32 : vector<2x16x128xf32>
    %221 = arith.andi %217, %220 : vector<2x16x128xi1>
    %cst_67 = arith.constant 0.000000e+00 : f32
    %222 = vector.broadcast %cst_67 : f32 to vector<2x16x128xf32>
    %223 = arith.select %221, %211, %222 : vector<2x16x128xi1>, vector<2x16x128xf32>
    %224 = arith.subf %192, %198 : vector<2x16x128xf32>
    %225 = arith.mulf %223, %224 : vector<2x16x128xf32>
    %cst_68 = arith.constant dense<0.000000e+00> : vector<16x128xf32>
    %226 = vector.multi_reduction <add>, %225, %cst_68 [0] : vector<2x16x128xf32> to vector<16x128xf32>
    %227 = arith.addf %188, %226 : vector<16x128xf32>
    %cst_69 = arith.constant dense<0.000000e+00> : vector<16x128xf32>
    %228 = vector.multi_reduction <add>, %223, %cst_69 [0] : vector<2x16x128xf32> to vector<16x128xf32>
    %229 = arith.addf %190, %228 : vector<16x128xf32>
    %230 = vector.extract_strided_slice %1 {offsets = [0, 1, 0], sizes = [2, 16, 128], strides = [1, 1, 1]} : vector<2x20x128xf32> to vector<2x16x128xf32>
    %231 = vector.extract_strided_slice %3 {offsets = [0, 1, 0], sizes = [2, 16, 128], strides = [1, 1, 1]} : vector<2x20x128xf32> to vector<2x16x128xf32>
    %232 = vector.extract_strided_slice %5 {offsets = [1, 0], sizes = [16, 128], strides = [1, 1]} : vector<20x128xf32> to vector<16x128xf32>
    %233 = arith.subf %230, %231 : vector<2x16x128xf32>
    %234 = math.absf %233 : vector<2x16x128xf32>
    %235 = vector.shape_cast %232 : vector<16x128xf32> to vector<1x16x128xf32>
    %236 = vector.broadcast %235 : vector<1x16x128xf32> to vector<2x16x128xf32>
    %237 = arith.subf %230, %236 : vector<2x16x128xf32>
    %238 = math.absf %237 : vector<2x16x128xf32>
    %cst_70 = arith.constant 1.000000e+00 : f32
    %239 = vector.broadcast %cst_70 : f32 to vector<2x16x128xf32>
    %240 = arith.addf %234, %239 : vector<2x16x128xf32>
    %241 = math.log %240 : vector<2x16x128xf32>
    %cst_71 = arith.constant 1.000000e+00 : f32
    %242 = vector.broadcast %cst_71 : f32 to vector<2x16x128xf32>
    %243 = arith.addf %238, %242 : vector<2x16x128xf32>
    %244 = math.log %243 : vector<2x16x128xf32>
    %245 = arith.mulf %241, %244 : vector<2x16x128xf32>
    %cst_72 = arith.constant 1.500000e+00 : f32
    %246 = vector.broadcast %cst_72 : f32 to vector<2x16x128xf32>
    %247 = arith.mulf %245, %246 : vector<2x16x128xf32>
    %cst_73 = arith.constant 9.99999993E-9 : f32
    %248 = vector.broadcast %cst_73 : f32 to vector<2x16x128xf32>
    %249 = arith.addf %247, %248 : vector<2x16x128xf32>
    %250 = tpu.reciprocal %249 {approx = true} : vector<2x16x128xf32> -> vector<2x16x128xf32>
    %251 = arith.cmpf olt, %234, %24 : vector<2x16x128xf32>
    %252 = arith.cmpf olt, %238, %27 : vector<2x16x128xf32>
    %253 = arith.andi %251, %252 : vector<2x16x128xi1>
    %cst_74 = arith.constant 9.99999993E-9 : f32
    %254 = vector.broadcast %cst_74 : f32 to vector<2x16x128xf32>
    %255 = arith.cmpf oge, %231, %254 : vector<2x16x128xf32>
    %256 = arith.andi %253, %255 : vector<2x16x128xi1>
    %257 = arith.subf %231, %8 : vector<2x16x128xf32>
    %258 = math.absf %257 : vector<2x16x128xf32>
    %259 = arith.cmpf olt, %258, %32 : vector<2x16x128xf32>
    %260 = arith.andi %256, %259 : vector<2x16x128xi1>
    %cst_75 = arith.constant 0.000000e+00 : f32
    %261 = vector.broadcast %cst_75 : f32 to vector<2x16x128xf32>
    %262 = arith.select %260, %250, %261 : vector<2x16x128xi1>, vector<2x16x128xf32>
    %263 = arith.subf %231, %237 : vector<2x16x128xf32>
    %264 = arith.mulf %262, %263 : vector<2x16x128xf32>
    %cst_76 = arith.constant dense<0.000000e+00> : vector<16x128xf32>
    %265 = vector.multi_reduction <add>, %264, %cst_76 [0] : vector<2x16x128xf32> to vector<16x128xf32>
    %266 = arith.addf %227, %265 : vector<16x128xf32>
    %cst_77 = arith.constant dense<0.000000e+00> : vector<16x128xf32>
    %267 = vector.multi_reduction <add>, %262, %cst_77 [0] : vector<2x16x128xf32> to vector<16x128xf32>
    %268 = arith.addf %229, %267 : vector<16x128xf32>
    %c1_i32_78 = arith.constant 1 : i32
    %269 = tpu.dynamic_rotate %230 by %c1_i32_78 dim 2 : vector<2x16x128xf32>, i32 -> vector<2x16x128xf32>
    %c1_i32_79 = arith.constant 1 : i32
    %270 = tpu.dynamic_rotate %231 by %c1_i32_79 dim 2 : vector<2x16x128xf32>, i32 -> vector<2x16x128xf32>
    %c1_i32_80 = arith.constant 1 : i32
    %271 = tpu.dynamic_rotate %232 by %c1_i32_80 dim 1 : vector<16x128xf32>, i32 -> vector<16x128xf32>
    %272 = arith.subf %269, %270 : vector<2x16x128xf32>
    %273 = math.absf %272 : vector<2x16x128xf32>
    %274 = vector.shape_cast %271 : vector<16x128xf32> to vector<1x16x128xf32>
    %275 = vector.broadcast %274 : vector<1x16x128xf32> to vector<2x16x128xf32>
    %276 = arith.subf %269, %275 : vector<2x16x128xf32>
    %277 = math.absf %276 : vector<2x16x128xf32>
    %cst_81 = arith.constant 1.000000e+00 : f32
    %278 = vector.broadcast %cst_81 : f32 to vector<2x16x128xf32>
    %279 = arith.addf %273, %278 : vector<2x16x128xf32>
    %280 = math.log %279 : vector<2x16x128xf32>
    %cst_82 = arith.constant 1.000000e+00 : f32
    %281 = vector.broadcast %cst_82 : f32 to vector<2x16x128xf32>
    %282 = arith.addf %277, %281 : vector<2x16x128xf32>
    %283 = math.log %282 : vector<2x16x128xf32>
    %284 = arith.mulf %280, %283 : vector<2x16x128xf32>
    %cst_83 = arith.constant 2.000000e+00 : f32
    %285 = vector.broadcast %cst_83 : f32 to vector<2x16x128xf32>
    %286 = arith.mulf %284, %285 : vector<2x16x128xf32>
    %cst_84 = arith.constant 9.99999993E-9 : f32
    %287 = vector.broadcast %cst_84 : f32 to vector<2x16x128xf32>
    %288 = arith.addf %286, %287 : vector<2x16x128xf32>
    %289 = tpu.reciprocal %288 {approx = true} : vector<2x16x128xf32> -> vector<2x16x128xf32>
    %290 = arith.cmpf olt, %273, %24 : vector<2x16x128xf32>
    %291 = arith.cmpf olt, %277, %27 : vector<2x16x128xf32>
    %292 = arith.andi %290, %291 : vector<2x16x128xi1>
    %cst_85 = arith.constant 9.99999993E-9 : f32
    %293 = vector.broadcast %cst_85 : f32 to vector<2x16x128xf32>
    %294 = arith.cmpf oge, %270, %293 : vector<2x16x128xf32>
    %295 = arith.andi %292, %294 : vector<2x16x128xi1>
    %296 = arith.subf %270, %8 : vector<2x16x128xf32>
    %297 = math.absf %296 : vector<2x16x128xf32>
    %298 = arith.cmpf olt, %297, %32 : vector<2x16x128xf32>
    %299 = arith.andi %295, %298 : vector<2x16x128xi1>
    %cst_86 = arith.constant 0.000000e+00 : f32
    %300 = vector.broadcast %cst_86 : f32 to vector<2x16x128xf32>
    %301 = arith.select %299, %289, %300 : vector<2x16x128xi1>, vector<2x16x128xf32>
    %302 = arith.subf %270, %276 : vector<2x16x128xf32>
    %303 = arith.mulf %301, %302 : vector<2x16x128xf32>
    %cst_87 = arith.constant dense<0.000000e+00> : vector<16x128xf32>
    %304 = vector.multi_reduction <add>, %303, %cst_87 [0] : vector<2x16x128xf32> to vector<16x128xf32>
    %305 = arith.addf %266, %304 : vector<16x128xf32>
    %cst_88 = arith.constant dense<0.000000e+00> : vector<16x128xf32>
    %306 = vector.multi_reduction <add>, %301, %cst_88 [0] : vector<2x16x128xf32> to vector<16x128xf32>
    %307 = arith.addf %268, %306 : vector<16x128xf32>
    %c127_i32_89 = arith.constant 127 : i32
    %308 = tpu.dynamic_rotate %230 by %c127_i32_89 dim 2 : vector<2x16x128xf32>, i32 -> vector<2x16x128xf32>
    %c127_i32_90 = arith.constant 127 : i32
    %309 = tpu.dynamic_rotate %231 by %c127_i32_90 dim 2 : vector<2x16x128xf32>, i32 -> vector<2x16x128xf32>
    %c127_i32_91 = arith.constant 127 : i32
    %310 = tpu.dynamic_rotate %232 by %c127_i32_91 dim 1 : vector<16x128xf32>, i32 -> vector<16x128xf32>
    %311 = arith.subf %308, %309 : vector<2x16x128xf32>
    %312 = math.absf %311 : vector<2x16x128xf32>
    %313 = vector.shape_cast %310 : vector<16x128xf32> to vector<1x16x128xf32>
    %314 = vector.broadcast %313 : vector<1x16x128xf32> to vector<2x16x128xf32>
    %315 = arith.subf %308, %314 : vector<2x16x128xf32>
    %316 = math.absf %315 : vector<2x16x128xf32>
    %cst_92 = arith.constant 1.000000e+00 : f32
    %317 = vector.broadcast %cst_92 : f32 to vector<2x16x128xf32>
    %318 = arith.addf %312, %317 : vector<2x16x128xf32>
    %319 = math.log %318 : vector<2x16x128xf32>
    %cst_93 = arith.constant 1.000000e+00 : f32
    %320 = vector.broadcast %cst_93 : f32 to vector<2x16x128xf32>
    %321 = arith.addf %316, %320 : vector<2x16x128xf32>
    %322 = math.log %321 : vector<2x16x128xf32>
    %323 = arith.mulf %319, %322 : vector<2x16x128xf32>
    %cst_94 = arith.constant 2.000000e+00 : f32
    %324 = vector.broadcast %cst_94 : f32 to vector<2x16x128xf32>
    %325 = arith.mulf %323, %324 : vector<2x16x128xf32>
    %cst_95 = arith.constant 9.99999993E-9 : f32
    %326 = vector.broadcast %cst_95 : f32 to vector<2x16x128xf32>
    %327 = arith.addf %325, %326 : vector<2x16x128xf32>
    %328 = tpu.reciprocal %327 {approx = true} : vector<2x16x128xf32> -> vector<2x16x128xf32>
    %329 = arith.cmpf olt, %312, %24 : vector<2x16x128xf32>
    %330 = arith.cmpf olt, %316, %27 : vector<2x16x128xf32>
    %331 = arith.andi %329, %330 : vector<2x16x128xi1>
    %cst_96 = arith.constant 9.99999993E-9 : f32
    %332 = vector.broadcast %cst_96 : f32 to vector<2x16x128xf32>
    %333 = arith.cmpf oge, %309, %332 : vector<2x16x128xf32>
    %334 = arith.andi %331, %333 : vector<2x16x128xi1>
    %335 = arith.subf %309, %8 : vector<2x16x128xf32>
    %336 = math.absf %335 : vector<2x16x128xf32>
    %337 = arith.cmpf olt, %336, %32 : vector<2x16x128xf32>
    %338 = arith.andi %334, %337 : vector<2x16x128xi1>
    %cst_97 = arith.constant 0.000000e+00 : f32
    %339 = vector.broadcast %cst_97 : f32 to vector<2x16x128xf32>
    %340 = arith.select %338, %328, %339 : vector<2x16x128xi1>, vector<2x16x128xf32>
    %341 = arith.subf %309, %315 : vector<2x16x128xf32>
    %342 = arith.mulf %340, %341 : vector<2x16x128xf32>
    %cst_98 = arith.constant dense<0.000000e+00> : vector<16x128xf32>
    %343 = vector.multi_reduction <add>, %342, %cst_98 [0] : vector<2x16x128xf32> to vector<16x128xf32>
    %344 = arith.addf %305, %343 : vector<16x128xf32>
    %cst_99 = arith.constant dense<0.000000e+00> : vector<16x128xf32>
    %345 = vector.multi_reduction <add>, %340, %cst_99 [0] : vector<2x16x128xf32> to vector<16x128xf32>
    %346 = arith.addf %307, %345 : vector<16x128xf32>
    %c2_i32_100 = arith.constant 2 : i32
    %347 = tpu.dynamic_rotate %230 by %c2_i32_100 dim 2 : vector<2x16x128xf32>, i32 -> vector<2x16x128xf32>
    %c2_i32_101 = arith.constant 2 : i32
    %348 = tpu.dynamic_rotate %231 by %c2_i32_101 dim 2 : vector<2x16x128xf32>, i32 -> vector<2x16x128xf32>
    %c2_i32_102 = arith.constant 2 : i32
    %349 = tpu.dynamic_rotate %232 by %c2_i32_102 dim 1 : vector<16x128xf32>, i32 -> vector<16x128xf32>
    %350 = arith.subf %347, %348 : vector<2x16x128xf32>
    %351 = math.absf %350 : vector<2x16x128xf32>
    %352 = vector.shape_cast %349 : vector<16x128xf32> to vector<1x16x128xf32>
    %353 = vector.broadcast %352 : vector<1x16x128xf32> to vector<2x16x128xf32>
    %354 = arith.subf %347, %353 : vector<2x16x128xf32>
    %355 = math.absf %354 : vector<2x16x128xf32>
    %cst_103 = arith.constant 1.000000e+00 : f32
    %356 = vector.broadcast %cst_103 : f32 to vector<2x16x128xf32>
    %357 = arith.addf %351, %356 : vector<2x16x128xf32>
    %358 = math.log %357 : vector<2x16x128xf32>
    %cst_104 = arith.constant 1.000000e+00 : f32
    %359 = vector.broadcast %cst_104 : f32 to vector<2x16x128xf32>
    %360 = arith.addf %355, %359 : vector<2x16x128xf32>
    %361 = math.log %360 : vector<2x16x128xf32>
    %362 = arith.mulf %358, %361 : vector<2x16x128xf32>
    %cst_105 = arith.constant 3.500000e+00 : f32
    %363 = vector.broadcast %cst_105 : f32 to vector<2x16x128xf32>
    %364 = arith.mulf %362, %363 : vector<2x16x128xf32>
    %cst_106 = arith.constant 9.99999993E-9 : f32
    %365 = vector.broadcast %cst_106 : f32 to vector<2x16x128xf32>
    %366 = arith.addf %364, %365 : vector<2x16x128xf32>
    %367 = tpu.reciprocal %366 {approx = true} : vector<2x16x128xf32> -> vector<2x16x128xf32>
    %368 = arith.cmpf olt, %351, %24 : vector<2x16x128xf32>
    %369 = arith.cmpf olt, %355, %27 : vector<2x16x128xf32>
    %370 = arith.andi %368, %369 : vector<2x16x128xi1>
    %cst_107 = arith.constant 9.99999993E-9 : f32
    %371 = vector.broadcast %cst_107 : f32 to vector<2x16x128xf32>
    %372 = arith.cmpf oge, %348, %371 : vector<2x16x128xf32>
    %373 = arith.andi %370, %372 : vector<2x16x128xi1>
    %374 = arith.subf %348, %8 : vector<2x16x128xf32>
    %375 = math.absf %374 : vector<2x16x128xf32>
    %376 = arith.cmpf olt, %375, %32 : vector<2x16x128xf32>
    %377 = arith.andi %373, %376 : vector<2x16x128xi1>
    %cst_108 = arith.constant 0.000000e+00 : f32
    %378 = vector.broadcast %cst_108 : f32 to vector<2x16x128xf32>
    %379 = arith.select %377, %367, %378 : vector<2x16x128xi1>, vector<2x16x128xf32>
    %380 = arith.subf %348, %354 : vector<2x16x128xf32>
    %381 = arith.mulf %379, %380 : vector<2x16x128xf32>
    %cst_109 = arith.constant dense<0.000000e+00> : vector<16x128xf32>
    %382 = vector.multi_reduction <add>, %381, %cst_109 [0] : vector<2x16x128xf32> to vector<16x128xf32>
    %383 = arith.addf %344, %382 : vector<16x128xf32>
    %cst_110 = arith.constant dense<0.000000e+00> : vector<16x128xf32>
    %384 = vector.multi_reduction <add>, %379, %cst_110 [0] : vector<2x16x128xf32> to vector<16x128xf32>
    %385 = arith.addf %346, %384 : vector<16x128xf32>
    %c126_i32_111 = arith.constant 126 : i32
    %386 = tpu.dynamic_rotate %230 by %c126_i32_111 dim 2 : vector<2x16x128xf32>, i32 -> vector<2x16x128xf32>
    %c126_i32_112 = arith.constant 126 : i32
    %387 = tpu.dynamic_rotate %231 by %c126_i32_112 dim 2 : vector<2x16x128xf32>, i32 -> vector<2x16x128xf32>
    %c126_i32_113 = arith.constant 126 : i32
    %388 = tpu.dynamic_rotate %232 by %c126_i32_113 dim 1 : vector<16x128xf32>, i32 -> vector<16x128xf32>
    %389 = arith.subf %386, %387 : vector<2x16x128xf32>
    %390 = math.absf %389 : vector<2x16x128xf32>
    %391 = vector.shape_cast %388 : vector<16x128xf32> to vector<1x16x128xf32>
    %392 = vector.broadcast %391 : vector<1x16x128xf32> to vector<2x16x128xf32>
    %393 = arith.subf %386, %392 : vector<2x16x128xf32>
    %394 = math.absf %393 : vector<2x16x128xf32>
    %cst_114 = arith.constant 1.000000e+00 : f32
    %395 = vector.broadcast %cst_114 : f32 to vector<2x16x128xf32>
    %396 = arith.addf %390, %395 : vector<2x16x128xf32>
    %397 = math.log %396 : vector<2x16x128xf32>
    %cst_115 = arith.constant 1.000000e+00 : f32
    %398 = vector.broadcast %cst_115 : f32 to vector<2x16x128xf32>
    %399 = arith.addf %394, %398 : vector<2x16x128xf32>
    %400 = math.log %399 : vector<2x16x128xf32>
    %401 = arith.mulf %397, %400 : vector<2x16x128xf32>
    %cst_116 = arith.constant 3.500000e+00 : f32
    %402 = vector.broadcast %cst_116 : f32 to vector<2x16x128xf32>
    %403 = arith.mulf %401, %402 : vector<2x16x128xf32>
    %cst_117 = arith.constant 9.99999993E-9 : f32
    %404 = vector.broadcast %cst_117 : f32 to vector<2x16x128xf32>
    %405 = arith.addf %403, %404 : vector<2x16x128xf32>
    %406 = tpu.reciprocal %405 {approx = true} : vector<2x16x128xf32> -> vector<2x16x128xf32>
    %407 = arith.cmpf olt, %390, %24 : vector<2x16x128xf32>
    %408 = arith.cmpf olt, %394, %27 : vector<2x16x128xf32>
    %409 = arith.andi %407, %408 : vector<2x16x128xi1>
    %cst_118 = arith.constant 9.99999993E-9 : f32
    %410 = vector.broadcast %cst_118 : f32 to vector<2x16x128xf32>
    %411 = arith.cmpf oge, %387, %410 : vector<2x16x128xf32>
    %412 = arith.andi %409, %411 : vector<2x16x128xi1>
    %413 = arith.subf %387, %8 : vector<2x16x128xf32>
    %414 = math.absf %413 : vector<2x16x128xf32>
    %415 = arith.cmpf olt, %414, %32 : vector<2x16x128xf32>
    %416 = arith.andi %412, %415 : vector<2x16x128xi1>
    %cst_119 = arith.constant 0.000000e+00 : f32
    %417 = vector.broadcast %cst_119 : f32 to vector<2x16x128xf32>
    %418 = arith.select %416, %406, %417 : vector<2x16x128xi1>, vector<2x16x128xf32>
    %419 = arith.subf %387, %393 : vector<2x16x128xf32>
    %420 = arith.mulf %418, %419 : vector<2x16x128xf32>
    %cst_120 = arith.constant dense<0.000000e+00> : vector<16x128xf32>
    %421 = vector.multi_reduction <add>, %420, %cst_120 [0] : vector<2x16x128xf32> to vector<16x128xf32>
    %422 = arith.addf %383, %421 : vector<16x128xf32>
    %cst_121 = arith.constant dense<0.000000e+00> : vector<16x128xf32>
    %423 = vector.multi_reduction <add>, %418, %cst_121 [0] : vector<2x16x128xf32> to vector<16x128xf32>
    %424 = arith.addf %385, %423 : vector<16x128xf32>
    %425 = vector.extract_strided_slice %1 {offsets = [0, 2, 0], sizes = [2, 16, 128], strides = [1, 1, 1]} : vector<2x20x128xf32> to vector<2x16x128xf32>
    %426 = vector.extract_strided_slice %3 {offsets = [0, 2, 0], sizes = [2, 16, 128], strides = [1, 1, 1]} : vector<2x20x128xf32> to vector<2x16x128xf32>
    %427 = vector.extract_strided_slice %5 {offsets = [2, 0], sizes = [16, 128], strides = [1, 1]} : vector<20x128xf32> to vector<16x128xf32>
    %428 = arith.subf %425, %426 : vector<2x16x128xf32>
    %429 = math.absf %428 : vector<2x16x128xf32>
    %430 = vector.shape_cast %427 : vector<16x128xf32> to vector<1x16x128xf32>
    %431 = vector.broadcast %430 : vector<1x16x128xf32> to vector<2x16x128xf32>
    %432 = arith.subf %425, %431 : vector<2x16x128xf32>
    %433 = math.absf %432 : vector<2x16x128xf32>
    %cst_122 = arith.constant 1.000000e+00 : f32
    %434 = vector.broadcast %cst_122 : f32 to vector<2x16x128xf32>
    %435 = arith.addf %429, %434 : vector<2x16x128xf32>
    %436 = math.log %435 : vector<2x16x128xf32>
    %cst_123 = arith.constant 1.000000e+00 : f32
    %437 = vector.broadcast %cst_123 : f32 to vector<2x16x128xf32>
    %438 = arith.addf %433, %437 : vector<2x16x128xf32>
    %439 = math.log %438 : vector<2x16x128xf32>
    %440 = arith.mulf %436, %439 : vector<2x16x128xf32>
    %cst_124 = arith.constant 1.000000e+00 : f32
    %441 = vector.broadcast %cst_124 : f32 to vector<2x16x128xf32>
    %442 = arith.mulf %440, %441 : vector<2x16x128xf32>
    %cst_125 = arith.constant 9.99999993E-9 : f32
    %443 = vector.broadcast %cst_125 : f32 to vector<2x16x128xf32>
    %444 = arith.addf %442, %443 : vector<2x16x128xf32>
    %445 = tpu.reciprocal %444 {approx = true} : vector<2x16x128xf32> -> vector<2x16x128xf32>
    %446 = arith.cmpf olt, %429, %24 : vector<2x16x128xf32>
    %447 = arith.cmpf olt, %433, %27 : vector<2x16x128xf32>
    %448 = arith.andi %446, %447 : vector<2x16x128xi1>
    %cst_126 = arith.constant 9.99999993E-9 : f32
    %449 = vector.broadcast %cst_126 : f32 to vector<2x16x128xf32>
    %450 = arith.cmpf oge, %426, %449 : vector<2x16x128xf32>
    %451 = arith.andi %448, %450 : vector<2x16x128xi1>
    %452 = arith.subf %426, %8 : vector<2x16x128xf32>
    %453 = math.absf %452 : vector<2x16x128xf32>
    %454 = arith.cmpf olt, %453, %32 : vector<2x16x128xf32>
    %455 = arith.andi %451, %454 : vector<2x16x128xi1>
    %cst_127 = arith.constant 0.000000e+00 : f32
    %456 = vector.broadcast %cst_127 : f32 to vector<2x16x128xf32>
    %457 = arith.select %455, %445, %456 : vector<2x16x128xi1>, vector<2x16x128xf32>
    %458 = arith.subf %426, %432 : vector<2x16x128xf32>
    %459 = arith.mulf %457, %458 : vector<2x16x128xf32>
    %cst_128 = arith.constant dense<0.000000e+00> : vector<16x128xf32>
    %460 = vector.multi_reduction <add>, %459, %cst_128 [0] : vector<2x16x128xf32> to vector<16x128xf32>
    %461 = arith.addf %422, %460 : vector<16x128xf32>
    %cst_129 = arith.constant dense<0.000000e+00> : vector<16x128xf32>
    %462 = vector.multi_reduction <add>, %457, %cst_129 [0] : vector<2x16x128xf32> to vector<16x128xf32>
    %463 = arith.addf %424, %462 : vector<16x128xf32>
    %c1_i32_130 = arith.constant 1 : i32
    %464 = tpu.dynamic_rotate %425 by %c1_i32_130 dim 2 : vector<2x16x128xf32>, i32 -> vector<2x16x128xf32>
    %c1_i32_131 = arith.constant 1 : i32
    %465 = tpu.dynamic_rotate %426 by %c1_i32_131 dim 2 : vector<2x16x128xf32>, i32 -> vector<2x16x128xf32>
    %c1_i32_132 = arith.constant 1 : i32
    %466 = tpu.dynamic_rotate %427 by %c1_i32_132 dim 1 : vector<16x128xf32>, i32 -> vector<16x128xf32>
    %467 = arith.subf %464, %465 : vector<2x16x128xf32>
    %468 = math.absf %467 : vector<2x16x128xf32>
    %469 = vector.shape_cast %466 : vector<16x128xf32> to vector<1x16x128xf32>
    %470 = vector.broadcast %469 : vector<1x16x128xf32> to vector<2x16x128xf32>
    %471 = arith.subf %464, %470 : vector<2x16x128xf32>
    %472 = math.absf %471 : vector<2x16x128xf32>
    %cst_133 = arith.constant 1.000000e+00 : f32
    %473 = vector.broadcast %cst_133 : f32 to vector<2x16x128xf32>
    %474 = arith.addf %468, %473 : vector<2x16x128xf32>
    %475 = math.log %474 : vector<2x16x128xf32>
    %cst_134 = arith.constant 1.000000e+00 : f32
    %476 = vector.broadcast %cst_134 : f32 to vector<2x16x128xf32>
    %477 = arith.addf %472, %476 : vector<2x16x128xf32>
    %478 = math.log %477 : vector<2x16x128xf32>
    %479 = arith.mulf %475, %478 : vector<2x16x128xf32>
    %cst_135 = arith.constant 1.500000e+00 : f32
    %480 = vector.broadcast %cst_135 : f32 to vector<2x16x128xf32>
    %481 = arith.mulf %479, %480 : vector<2x16x128xf32>
    %cst_136 = arith.constant 9.99999993E-9 : f32
    %482 = vector.broadcast %cst_136 : f32 to vector<2x16x128xf32>
    %483 = arith.addf %481, %482 : vector<2x16x128xf32>
    %484 = tpu.reciprocal %483 {approx = true} : vector<2x16x128xf32> -> vector<2x16x128xf32>
    %485 = arith.cmpf olt, %468, %24 : vector<2x16x128xf32>
    %486 = arith.cmpf olt, %472, %27 : vector<2x16x128xf32>
    %487 = arith.andi %485, %486 : vector<2x16x128xi1>
    %cst_137 = arith.constant 9.99999993E-9 : f32
    %488 = vector.broadcast %cst_137 : f32 to vector<2x16x128xf32>
    %489 = arith.cmpf oge, %465, %488 : vector<2x16x128xf32>
    %490 = arith.andi %487, %489 : vector<2x16x128xi1>
    %491 = arith.subf %465, %8 : vector<2x16x128xf32>
    %492 = math.absf %491 : vector<2x16x128xf32>
    %493 = arith.cmpf olt, %492, %32 : vector<2x16x128xf32>
    %494 = arith.andi %490, %493 : vector<2x16x128xi1>
    %cst_138 = arith.constant 0.000000e+00 : f32
    %495 = vector.broadcast %cst_138 : f32 to vector<2x16x128xf32>
    %496 = arith.select %494, %484, %495 : vector<2x16x128xi1>, vector<2x16x128xf32>
    %497 = arith.subf %465, %471 : vector<2x16x128xf32>
    %498 = arith.mulf %496, %497 : vector<2x16x128xf32>
    %cst_139 = arith.constant dense<0.000000e+00> : vector<16x128xf32>
    %499 = vector.multi_reduction <add>, %498, %cst_139 [0] : vector<2x16x128xf32> to vector<16x128xf32>
    %500 = arith.addf %461, %499 : vector<16x128xf32>
    %cst_140 = arith.constant dense<0.000000e+00> : vector<16x128xf32>
    %501 = vector.multi_reduction <add>, %496, %cst_140 [0] : vector<2x16x128xf32> to vector<16x128xf32>
    %502 = arith.addf %463, %501 : vector<16x128xf32>
    %c127_i32_141 = arith.constant 127 : i32
    %503 = tpu.dynamic_rotate %425 by %c127_i32_141 dim 2 : vector<2x16x128xf32>, i32 -> vector<2x16x128xf32>
    %c127_i32_142 = arith.constant 127 : i32
    %504 = tpu.dynamic_rotate %426 by %c127_i32_142 dim 2 : vector<2x16x128xf32>, i32 -> vector<2x16x128xf32>
    %c127_i32_143 = arith.constant 127 : i32
    %505 = tpu.dynamic_rotate %427 by %c127_i32_143 dim 1 : vector<16x128xf32>, i32 -> vector<16x128xf32>
    %506 = arith.subf %503, %504 : vector<2x16x128xf32>
    %507 = math.absf %506 : vector<2x16x128xf32>
    %508 = vector.shape_cast %505 : vector<16x128xf32> to vector<1x16x128xf32>
    %509 = vector.broadcast %508 : vector<1x16x128xf32> to vector<2x16x128xf32>
    %510 = arith.subf %503, %509 : vector<2x16x128xf32>
    %511 = math.absf %510 : vector<2x16x128xf32>
    %cst_144 = arith.constant 1.000000e+00 : f32
    %512 = vector.broadcast %cst_144 : f32 to vector<2x16x128xf32>
    %513 = arith.addf %507, %512 : vector<2x16x128xf32>
    %514 = math.log %513 : vector<2x16x128xf32>
    %cst_145 = arith.constant 1.000000e+00 : f32
    %515 = vector.broadcast %cst_145 : f32 to vector<2x16x128xf32>
    %516 = arith.addf %511, %515 : vector<2x16x128xf32>
    %517 = math.log %516 : vector<2x16x128xf32>
    %518 = arith.mulf %514, %517 : vector<2x16x128xf32>
    %cst_146 = arith.constant 1.500000e+00 : f32
    %519 = vector.broadcast %cst_146 : f32 to vector<2x16x128xf32>
    %520 = arith.mulf %518, %519 : vector<2x16x128xf32>
    %cst_147 = arith.constant 9.99999993E-9 : f32
    %521 = vector.broadcast %cst_147 : f32 to vector<2x16x128xf32>
    %522 = arith.addf %520, %521 : vector<2x16x128xf32>
    %523 = tpu.reciprocal %522 {approx = true} : vector<2x16x128xf32> -> vector<2x16x128xf32>
    %524 = arith.cmpf olt, %507, %24 : vector<2x16x128xf32>
    %525 = arith.cmpf olt, %511, %27 : vector<2x16x128xf32>
    %526 = arith.andi %524, %525 : vector<2x16x128xi1>
    %cst_148 = arith.constant 9.99999993E-9 : f32
    %527 = vector.broadcast %cst_148 : f32 to vector<2x16x128xf32>
    %528 = arith.cmpf oge, %504, %527 : vector<2x16x128xf32>
    %529 = arith.andi %526, %528 : vector<2x16x128xi1>
    %530 = arith.subf %504, %8 : vector<2x16x128xf32>
    %531 = math.absf %530 : vector<2x16x128xf32>
    %532 = arith.cmpf olt, %531, %32 : vector<2x16x128xf32>
    %533 = arith.andi %529, %532 : vector<2x16x128xi1>
    %cst_149 = arith.constant 0.000000e+00 : f32
    %534 = vector.broadcast %cst_149 : f32 to vector<2x16x128xf32>
    %535 = arith.select %533, %523, %534 : vector<2x16x128xi1>, vector<2x16x128xf32>
    %536 = arith.subf %504, %510 : vector<2x16x128xf32>
    %537 = arith.mulf %535, %536 : vector<2x16x128xf32>
    %cst_150 = arith.constant dense<0.000000e+00> : vector<16x128xf32>
    %538 = vector.multi_reduction <add>, %537, %cst_150 [0] : vector<2x16x128xf32> to vector<16x128xf32>
    %539 = arith.addf %500, %538 : vector<16x128xf32>
    %cst_151 = arith.constant dense<0.000000e+00> : vector<16x128xf32>
    %540 = vector.multi_reduction <add>, %535, %cst_151 [0] : vector<2x16x128xf32> to vector<16x128xf32>
    %541 = arith.addf %502, %540 : vector<16x128xf32>
    %c2_i32_152 = arith.constant 2 : i32
    %542 = tpu.dynamic_rotate %425 by %c2_i32_152 dim 2 : vector<2x16x128xf32>, i32 -> vector<2x16x128xf32>
    %c2_i32_153 = arith.constant 2 : i32
    %543 = tpu.dynamic_rotate %426 by %c2_i32_153 dim 2 : vector<2x16x128xf32>, i32 -> vector<2x16x128xf32>
    %c2_i32_154 = arith.constant 2 : i32
    %544 = tpu.dynamic_rotate %427 by %c2_i32_154 dim 1 : vector<16x128xf32>, i32 -> vector<16x128xf32>
    %545 = arith.subf %542, %543 : vector<2x16x128xf32>
    %546 = math.absf %545 : vector<2x16x128xf32>
    %547 = vector.shape_cast %544 : vector<16x128xf32> to vector<1x16x128xf32>
    %548 = vector.broadcast %547 : vector<1x16x128xf32> to vector<2x16x128xf32>
    %549 = arith.subf %542, %548 : vector<2x16x128xf32>
    %550 = math.absf %549 : vector<2x16x128xf32>
    %cst_155 = arith.constant 1.000000e+00 : f32
    %551 = vector.broadcast %cst_155 : f32 to vector<2x16x128xf32>
    %552 = arith.addf %546, %551 : vector<2x16x128xf32>
    %553 = math.log %552 : vector<2x16x128xf32>
    %cst_156 = arith.constant 1.000000e+00 : f32
    %554 = vector.broadcast %cst_156 : f32 to vector<2x16x128xf32>
    %555 = arith.addf %550, %554 : vector<2x16x128xf32>
    %556 = math.log %555 : vector<2x16x128xf32>
    %557 = arith.mulf %553, %556 : vector<2x16x128xf32>
    %cst_157 = arith.constant 3.000000e+00 : f32
    %558 = vector.broadcast %cst_157 : f32 to vector<2x16x128xf32>
    %559 = arith.mulf %557, %558 : vector<2x16x128xf32>
    %cst_158 = arith.constant 9.99999993E-9 : f32
    %560 = vector.broadcast %cst_158 : f32 to vector<2x16x128xf32>
    %561 = arith.addf %559, %560 : vector<2x16x128xf32>
    %562 = tpu.reciprocal %561 {approx = true} : vector<2x16x128xf32> -> vector<2x16x128xf32>
    %563 = arith.cmpf olt, %546, %24 : vector<2x16x128xf32>
    %564 = arith.cmpf olt, %550, %27 : vector<2x16x128xf32>
    %565 = arith.andi %563, %564 : vector<2x16x128xi1>
    %cst_159 = arith.constant 9.99999993E-9 : f32
    %566 = vector.broadcast %cst_159 : f32 to vector<2x16x128xf32>
    %567 = arith.cmpf oge, %543, %566 : vector<2x16x128xf32>
    %568 = arith.andi %565, %567 : vector<2x16x128xi1>
    %569 = arith.subf %543, %8 : vector<2x16x128xf32>
    %570 = math.absf %569 : vector<2x16x128xf32>
    %571 = arith.cmpf olt, %570, %32 : vector<2x16x128xf32>
    %572 = arith.andi %568, %571 : vector<2x16x128xi1>
    %cst_160 = arith.constant 0.000000e+00 : f32
    %573 = vector.broadcast %cst_160 : f32 to vector<2x16x128xf32>
    %574 = arith.select %572, %562, %573 : vector<2x16x128xi1>, vector<2x16x128xf32>
    %575 = arith.subf %543, %549 : vector<2x16x128xf32>
    %576 = arith.mulf %574, %575 : vector<2x16x128xf32>
    %cst_161 = arith.constant dense<0.000000e+00> : vector<16x128xf32>
    %577 = vector.multi_reduction <add>, %576, %cst_161 [0] : vector<2x16x128xf32> to vector<16x128xf32>
    %578 = arith.addf %539, %577 : vector<16x128xf32>
    %cst_162 = arith.constant dense<0.000000e+00> : vector<16x128xf32>
    %579 = vector.multi_reduction <add>, %574, %cst_162 [0] : vector<2x16x128xf32> to vector<16x128xf32>
    %580 = arith.addf %541, %579 : vector<16x128xf32>
    %c126_i32_163 = arith.constant 126 : i32
    %581 = tpu.dynamic_rotate %425 by %c126_i32_163 dim 2 : vector<2x16x128xf32>, i32 -> vector<2x16x128xf32>
    %c126_i32_164 = arith.constant 126 : i32
    %582 = tpu.dynamic_rotate %426 by %c126_i32_164 dim 2 : vector<2x16x128xf32>, i32 -> vector<2x16x128xf32>
    %c126_i32_165 = arith.constant 126 : i32
    %583 = tpu.dynamic_rotate %427 by %c126_i32_165 dim 1 : vector<16x128xf32>, i32 -> vector<16x128xf32>
    %584 = arith.subf %581, %582 : vector<2x16x128xf32>
    %585 = math.absf %584 : vector<2x16x128xf32>
    %586 = vector.shape_cast %583 : vector<16x128xf32> to vector<1x16x128xf32>
    %587 = vector.broadcast %586 : vector<1x16x128xf32> to vector<2x16x128xf32>
    %588 = arith.subf %581, %587 : vector<2x16x128xf32>
    %589 = math.absf %588 : vector<2x16x128xf32>
    %cst_166 = arith.constant 1.000000e+00 : f32
    %590 = vector.broadcast %cst_166 : f32 to vector<2x16x128xf32>
    %591 = arith.addf %585, %590 : vector<2x16x128xf32>
    %592 = math.log %591 : vector<2x16x128xf32>
    %cst_167 = arith.constant 1.000000e+00 : f32
    %593 = vector.broadcast %cst_167 : f32 to vector<2x16x128xf32>
    %594 = arith.addf %589, %593 : vector<2x16x128xf32>
    %595 = math.log %594 : vector<2x16x128xf32>
    %596 = arith.mulf %592, %595 : vector<2x16x128xf32>
    %cst_168 = arith.constant 3.000000e+00 : f32
    %597 = vector.broadcast %cst_168 : f32 to vector<2x16x128xf32>
    %598 = arith.mulf %596, %597 : vector<2x16x128xf32>
    %cst_169 = arith.constant 9.99999993E-9 : f32
    %599 = vector.broadcast %cst_169 : f32 to vector<2x16x128xf32>
    %600 = arith.addf %598, %599 : vector<2x16x128xf32>
    %601 = tpu.reciprocal %600 {approx = true} : vector<2x16x128xf32> -> vector<2x16x128xf32>
    %602 = arith.cmpf olt, %585, %24 : vector<2x16x128xf32>
    %603 = arith.cmpf olt, %589, %27 : vector<2x16x128xf32>
    %604 = arith.andi %602, %603 : vector<2x16x128xi1>
    %cst_170 = arith.constant 9.99999993E-9 : f32
    %605 = vector.broadcast %cst_170 : f32 to vector<2x16x128xf32>
    %606 = arith.cmpf oge, %582, %605 : vector<2x16x128xf32>
    %607 = arith.andi %604, %606 : vector<2x16x128xi1>
    %608 = arith.subf %582, %8 : vector<2x16x128xf32>
    %609 = math.absf %608 : vector<2x16x128xf32>
    %610 = arith.cmpf olt, %609, %32 : vector<2x16x128xf32>
    %611 = arith.andi %607, %610 : vector<2x16x128xi1>
    %cst_171 = arith.constant 0.000000e+00 : f32
    %612 = vector.broadcast %cst_171 : f32 to vector<2x16x128xf32>
    %613 = arith.select %611, %601, %612 : vector<2x16x128xi1>, vector<2x16x128xf32>
    %614 = arith.subf %582, %588 : vector<2x16x128xf32>
    %615 = arith.mulf %613, %614 : vector<2x16x128xf32>
    %cst_172 = arith.constant dense<0.000000e+00> : vector<16x128xf32>
    %616 = vector.multi_reduction <add>, %615, %cst_172 [0] : vector<2x16x128xf32> to vector<16x128xf32>
    %617 = arith.addf %578, %616 : vector<16x128xf32>
    %cst_173 = arith.constant dense<0.000000e+00> : vector<16x128xf32>
    %618 = vector.multi_reduction <add>, %613, %cst_173 [0] : vector<2x16x128xf32> to vector<16x128xf32>
    %619 = arith.addf %580, %618 : vector<16x128xf32>
    %620 = vector.extract_strided_slice %1 {offsets = [0, 3, 0], sizes = [2, 16, 128], strides = [1, 1, 1]} : vector<2x20x128xf32> to vector<2x16x128xf32>
    %621 = vector.extract_strided_slice %3 {offsets = [0, 3, 0], sizes = [2, 16, 128], strides = [1, 1, 1]} : vector<2x20x128xf32> to vector<2x16x128xf32>
    %622 = vector.extract_strided_slice %5 {offsets = [3, 0], sizes = [16, 128], strides = [1, 1]} : vector<20x128xf32> to vector<16x128xf32>
    %623 = arith.subf %620, %621 : vector<2x16x128xf32>
    %624 = math.absf %623 : vector<2x16x128xf32>
    %625 = vector.shape_cast %622 : vector<16x128xf32> to vector<1x16x128xf32>
    %626 = vector.broadcast %625 : vector<1x16x128xf32> to vector<2x16x128xf32>
    %627 = arith.subf %620, %626 : vector<2x16x128xf32>
    %628 = math.absf %627 : vector<2x16x128xf32>
    %cst_174 = arith.constant 1.000000e+00 : f32
    %629 = vector.broadcast %cst_174 : f32 to vector<2x16x128xf32>
    %630 = arith.addf %624, %629 : vector<2x16x128xf32>
    %631 = math.log %630 : vector<2x16x128xf32>
    %cst_175 = arith.constant 1.000000e+00 : f32
    %632 = vector.broadcast %cst_175 : f32 to vector<2x16x128xf32>
    %633 = arith.addf %628, %632 : vector<2x16x128xf32>
    %634 = math.log %633 : vector<2x16x128xf32>
    %635 = arith.mulf %631, %634 : vector<2x16x128xf32>
    %cst_176 = arith.constant 1.500000e+00 : f32
    %636 = vector.broadcast %cst_176 : f32 to vector<2x16x128xf32>
    %637 = arith.mulf %635, %636 : vector<2x16x128xf32>
    %cst_177 = arith.constant 9.99999993E-9 : f32
    %638 = vector.broadcast %cst_177 : f32 to vector<2x16x128xf32>
    %639 = arith.addf %637, %638 : vector<2x16x128xf32>
    %640 = tpu.reciprocal %639 {approx = true} : vector<2x16x128xf32> -> vector<2x16x128xf32>
    %641 = arith.cmpf olt, %624, %24 : vector<2x16x128xf32>
    %642 = arith.cmpf olt, %628, %27 : vector<2x16x128xf32>
    %643 = arith.andi %641, %642 : vector<2x16x128xi1>
    %cst_178 = arith.constant 9.99999993E-9 : f32
    %644 = vector.broadcast %cst_178 : f32 to vector<2x16x128xf32>
    %645 = arith.cmpf oge, %621, %644 : vector<2x16x128xf32>
    %646 = arith.andi %643, %645 : vector<2x16x128xi1>
    %647 = arith.subf %621, %8 : vector<2x16x128xf32>
    %648 = math.absf %647 : vector<2x16x128xf32>
    %649 = arith.cmpf olt, %648, %32 : vector<2x16x128xf32>
    %650 = arith.andi %646, %649 : vector<2x16x128xi1>
    %cst_179 = arith.constant 0.000000e+00 : f32
    %651 = vector.broadcast %cst_179 : f32 to vector<2x16x128xf32>
    %652 = arith.select %650, %640, %651 : vector<2x16x128xi1>, vector<2x16x128xf32>
    %653 = arith.subf %621, %627 : vector<2x16x128xf32>
    %654 = arith.mulf %652, %653 : vector<2x16x128xf32>
    %cst_180 = arith.constant dense<0.000000e+00> : vector<16x128xf32>
    %655 = vector.multi_reduction <add>, %654, %cst_180 [0] : vector<2x16x128xf32> to vector<16x128xf32>
    %656 = arith.addf %617, %655 : vector<16x128xf32>
    %cst_181 = arith.constant dense<0.000000e+00> : vector<16x128xf32>
    %657 = vector.multi_reduction <add>, %652, %cst_181 [0] : vector<2x16x128xf32> to vector<16x128xf32>
    %658 = arith.addf %619, %657 : vector<16x128xf32>
    %c1_i32_182 = arith.constant 1 : i32
    %659 = tpu.dynamic_rotate %620 by %c1_i32_182 dim 2 : vector<2x16x128xf32>, i32 -> vector<2x16x128xf32>
    %c1_i32_183 = arith.constant 1 : i32
    %660 = tpu.dynamic_rotate %621 by %c1_i32_183 dim 2 : vector<2x16x128xf32>, i32 -> vector<2x16x128xf32>
    %c1_i32_184 = arith.constant 1 : i32
    %661 = tpu.dynamic_rotate %622 by %c1_i32_184 dim 1 : vector<16x128xf32>, i32 -> vector<16x128xf32>
    %662 = arith.subf %659, %660 : vector<2x16x128xf32>
    %663 = math.absf %662 : vector<2x16x128xf32>
    %664 = vector.shape_cast %661 : vector<16x128xf32> to vector<1x16x128xf32>
    %665 = vector.broadcast %664 : vector<1x16x128xf32> to vector<2x16x128xf32>
    %666 = arith.subf %659, %665 : vector<2x16x128xf32>
    %667 = math.absf %666 : vector<2x16x128xf32>
    %cst_185 = arith.constant 1.000000e+00 : f32
    %668 = vector.broadcast %cst_185 : f32 to vector<2x16x128xf32>
    %669 = arith.addf %663, %668 : vector<2x16x128xf32>
    %670 = math.log %669 : vector<2x16x128xf32>
    %cst_186 = arith.constant 1.000000e+00 : f32
    %671 = vector.broadcast %cst_186 : f32 to vector<2x16x128xf32>
    %672 = arith.addf %667, %671 : vector<2x16x128xf32>
    %673 = math.log %672 : vector<2x16x128xf32>
    %674 = arith.mulf %670, %673 : vector<2x16x128xf32>
    %cst_187 = arith.constant 2.000000e+00 : f32
    %675 = vector.broadcast %cst_187 : f32 to vector<2x16x128xf32>
    %676 = arith.mulf %674, %675 : vector<2x16x128xf32>
    %cst_188 = arith.constant 9.99999993E-9 : f32
    %677 = vector.broadcast %cst_188 : f32 to vector<2x16x128xf32>
    %678 = arith.addf %676, %677 : vector<2x16x128xf32>
    %679 = tpu.reciprocal %678 {approx = true} : vector<2x16x128xf32> -> vector<2x16x128xf32>
    %680 = arith.cmpf olt, %663, %24 : vector<2x16x128xf32>
    %681 = arith.cmpf olt, %667, %27 : vector<2x16x128xf32>
    %682 = arith.andi %680, %681 : vector<2x16x128xi1>
    %cst_189 = arith.constant 9.99999993E-9 : f32
    %683 = vector.broadcast %cst_189 : f32 to vector<2x16x128xf32>
    %684 = arith.cmpf oge, %660, %683 : vector<2x16x128xf32>
    %685 = arith.andi %682, %684 : vector<2x16x128xi1>
    %686 = arith.subf %660, %8 : vector<2x16x128xf32>
    %687 = math.absf %686 : vector<2x16x128xf32>
    %688 = arith.cmpf olt, %687, %32 : vector<2x16x128xf32>
    %689 = arith.andi %685, %688 : vector<2x16x128xi1>
    %cst_190 = arith.constant 0.000000e+00 : f32
    %690 = vector.broadcast %cst_190 : f32 to vector<2x16x128xf32>
    %691 = arith.select %689, %679, %690 : vector<2x16x128xi1>, vector<2x16x128xf32>
    %692 = arith.subf %660, %666 : vector<2x16x128xf32>
    %693 = arith.mulf %691, %692 : vector<2x16x128xf32>
    %cst_191 = arith.constant dense<0.000000e+00> : vector<16x128xf32>
    %694 = vector.multi_reduction <add>, %693, %cst_191 [0] : vector<2x16x128xf32> to vector<16x128xf32>
    %695 = arith.addf %656, %694 : vector<16x128xf32>
    %cst_192 = arith.constant dense<0.000000e+00> : vector<16x128xf32>
    %696 = vector.multi_reduction <add>, %691, %cst_192 [0] : vector<2x16x128xf32> to vector<16x128xf32>
    %697 = arith.addf %658, %696 : vector<16x128xf32>
    %c127_i32_193 = arith.constant 127 : i32
    %698 = tpu.dynamic_rotate %620 by %c127_i32_193 dim 2 : vector<2x16x128xf32>, i32 -> vector<2x16x128xf32>
    %c127_i32_194 = arith.constant 127 : i32
    %699 = tpu.dynamic_rotate %621 by %c127_i32_194 dim 2 : vector<2x16x128xf32>, i32 -> vector<2x16x128xf32>
    %c127_i32_195 = arith.constant 127 : i32
    %700 = tpu.dynamic_rotate %622 by %c127_i32_195 dim 1 : vector<16x128xf32>, i32 -> vector<16x128xf32>
    %701 = arith.subf %698, %699 : vector<2x16x128xf32>
    %702 = math.absf %701 : vector<2x16x128xf32>
    %703 = vector.shape_cast %700 : vector<16x128xf32> to vector<1x16x128xf32>
    %704 = vector.broadcast %703 : vector<1x16x128xf32> to vector<2x16x128xf32>
    %705 = arith.subf %698, %704 : vector<2x16x128xf32>
    %706 = math.absf %705 : vector<2x16x128xf32>
    %cst_196 = arith.constant 1.000000e+00 : f32
    %707 = vector.broadcast %cst_196 : f32 to vector<2x16x128xf32>
    %708 = arith.addf %702, %707 : vector<2x16x128xf32>
    %709 = math.log %708 : vector<2x16x128xf32>
    %cst_197 = arith.constant 1.000000e+00 : f32
    %710 = vector.broadcast %cst_197 : f32 to vector<2x16x128xf32>
    %711 = arith.addf %706, %710 : vector<2x16x128xf32>
    %712 = math.log %711 : vector<2x16x128xf32>
    %713 = arith.mulf %709, %712 : vector<2x16x128xf32>
    %cst_198 = arith.constant 2.000000e+00 : f32
    %714 = vector.broadcast %cst_198 : f32 to vector<2x16x128xf32>
    %715 = arith.mulf %713, %714 : vector<2x16x128xf32>
    %cst_199 = arith.constant 9.99999993E-9 : f32
    %716 = vector.broadcast %cst_199 : f32 to vector<2x16x128xf32>
    %717 = arith.addf %715, %716 : vector<2x16x128xf32>
    %718 = tpu.reciprocal %717 {approx = true} : vector<2x16x128xf32> -> vector<2x16x128xf32>
    %719 = arith.cmpf olt, %702, %24 : vector<2x16x128xf32>
    %720 = arith.cmpf olt, %706, %27 : vector<2x16x128xf32>
    %721 = arith.andi %719, %720 : vector<2x16x128xi1>
    %cst_200 = arith.constant 9.99999993E-9 : f32
    %722 = vector.broadcast %cst_200 : f32 to vector<2x16x128xf32>
    %723 = arith.cmpf oge, %699, %722 : vector<2x16x128xf32>
    %724 = arith.andi %721, %723 : vector<2x16x128xi1>
    %725 = arith.subf %699, %8 : vector<2x16x128xf32>
    %726 = math.absf %725 : vector<2x16x128xf32>
    %727 = arith.cmpf olt, %726, %32 : vector<2x16x128xf32>
    %728 = arith.andi %724, %727 : vector<2x16x128xi1>
    %cst_201 = arith.constant 0.000000e+00 : f32
    %729 = vector.broadcast %cst_201 : f32 to vector<2x16x128xf32>
    %730 = arith.select %728, %718, %729 : vector<2x16x128xi1>, vector<2x16x128xf32>
    %731 = arith.subf %699, %705 : vector<2x16x128xf32>
    %732 = arith.mulf %730, %731 : vector<2x16x128xf32>
    %cst_202 = arith.constant dense<0.000000e+00> : vector<16x128xf32>
    %733 = vector.multi_reduction <add>, %732, %cst_202 [0] : vector<2x16x128xf32> to vector<16x128xf32>
    %734 = arith.addf %695, %733 : vector<16x128xf32>
    %cst_203 = arith.constant dense<0.000000e+00> : vector<16x128xf32>
    %735 = vector.multi_reduction <add>, %730, %cst_203 [0] : vector<2x16x128xf32> to vector<16x128xf32>
    %736 = arith.addf %697, %735 : vector<16x128xf32>
    %c2_i32_204 = arith.constant 2 : i32
    %737 = tpu.dynamic_rotate %620 by %c2_i32_204 dim 2 : vector<2x16x128xf32>, i32 -> vector<2x16x128xf32>
    %c2_i32_205 = arith.constant 2 : i32
    %738 = tpu.dynamic_rotate %621 by %c2_i32_205 dim 2 : vector<2x16x128xf32>, i32 -> vector<2x16x128xf32>
    %c2_i32_206 = arith.constant 2 : i32
    %739 = tpu.dynamic_rotate %622 by %c2_i32_206 dim 1 : vector<16x128xf32>, i32 -> vector<16x128xf32>
    %740 = arith.subf %737, %738 : vector<2x16x128xf32>
    %741 = math.absf %740 : vector<2x16x128xf32>
    %742 = vector.shape_cast %739 : vector<16x128xf32> to vector<1x16x128xf32>
    %743 = vector.broadcast %742 : vector<1x16x128xf32> to vector<2x16x128xf32>
    %744 = arith.subf %737, %743 : vector<2x16x128xf32>
    %745 = math.absf %744 : vector<2x16x128xf32>
    %cst_207 = arith.constant 1.000000e+00 : f32
    %746 = vector.broadcast %cst_207 : f32 to vector<2x16x128xf32>
    %747 = arith.addf %741, %746 : vector<2x16x128xf32>
    %748 = math.log %747 : vector<2x16x128xf32>
    %cst_208 = arith.constant 1.000000e+00 : f32
    %749 = vector.broadcast %cst_208 : f32 to vector<2x16x128xf32>
    %750 = arith.addf %745, %749 : vector<2x16x128xf32>
    %751 = math.log %750 : vector<2x16x128xf32>
    %752 = arith.mulf %748, %751 : vector<2x16x128xf32>
    %cst_209 = arith.constant 3.500000e+00 : f32
    %753 = vector.broadcast %cst_209 : f32 to vector<2x16x128xf32>
    %754 = arith.mulf %752, %753 : vector<2x16x128xf32>
    %cst_210 = arith.constant 9.99999993E-9 : f32
    %755 = vector.broadcast %cst_210 : f32 to vector<2x16x128xf32>
    %756 = arith.addf %754, %755 : vector<2x16x128xf32>
    %757 = tpu.reciprocal %756 {approx = true} : vector<2x16x128xf32> -> vector<2x16x128xf32>
    %758 = arith.cmpf olt, %741, %24 : vector<2x16x128xf32>
    %759 = arith.cmpf olt, %745, %27 : vector<2x16x128xf32>
    %760 = arith.andi %758, %759 : vector<2x16x128xi1>
    %cst_211 = arith.constant 9.99999993E-9 : f32
    %761 = vector.broadcast %cst_211 : f32 to vector<2x16x128xf32>
    %762 = arith.cmpf oge, %738, %761 : vector<2x16x128xf32>
    %763 = arith.andi %760, %762 : vector<2x16x128xi1>
    %764 = arith.subf %738, %8 : vector<2x16x128xf32>
    %765 = math.absf %764 : vector<2x16x128xf32>
    %766 = arith.cmpf olt, %765, %32 : vector<2x16x128xf32>
    %767 = arith.andi %763, %766 : vector<2x16x128xi1>
    %cst_212 = arith.constant 0.000000e+00 : f32
    %768 = vector.broadcast %cst_212 : f32 to vector<2x16x128xf32>
    %769 = arith.select %767, %757, %768 : vector<2x16x128xi1>, vector<2x16x128xf32>
    %770 = arith.subf %738, %744 : vector<2x16x128xf32>
    %771 = arith.mulf %769, %770 : vector<2x16x128xf32>
    %cst_213 = arith.constant dense<0.000000e+00> : vector<16x128xf32>
    %772 = vector.multi_reduction <add>, %771, %cst_213 [0] : vector<2x16x128xf32> to vector<16x128xf32>
    %773 = arith.addf %734, %772 : vector<16x128xf32>
    %cst_214 = arith.constant dense<0.000000e+00> : vector<16x128xf32>
    %774 = vector.multi_reduction <add>, %769, %cst_214 [0] : vector<2x16x128xf32> to vector<16x128xf32>
    %775 = arith.addf %736, %774 : vector<16x128xf32>
    %c126_i32_215 = arith.constant 126 : i32
    %776 = tpu.dynamic_rotate %620 by %c126_i32_215 dim 2 : vector<2x16x128xf32>, i32 -> vector<2x16x128xf32>
    %c126_i32_216 = arith.constant 126 : i32
    %777 = tpu.dynamic_rotate %621 by %c126_i32_216 dim 2 : vector<2x16x128xf32>, i32 -> vector<2x16x128xf32>
    %c126_i32_217 = arith.constant 126 : i32
    %778 = tpu.dynamic_rotate %622 by %c126_i32_217 dim 1 : vector<16x128xf32>, i32 -> vector<16x128xf32>
    %779 = arith.subf %776, %777 : vector<2x16x128xf32>
    %780 = math.absf %779 : vector<2x16x128xf32>
    %781 = vector.shape_cast %778 : vector<16x128xf32> to vector<1x16x128xf32>
    %782 = vector.broadcast %781 : vector<1x16x128xf32> to vector<2x16x128xf32>
    %783 = arith.subf %776, %782 : vector<2x16x128xf32>
    %784 = math.absf %783 : vector<2x16x128xf32>
    %cst_218 = arith.constant 1.000000e+00 : f32
    %785 = vector.broadcast %cst_218 : f32 to vector<2x16x128xf32>
    %786 = arith.addf %780, %785 : vector<2x16x128xf32>
    %787 = math.log %786 : vector<2x16x128xf32>
    %cst_219 = arith.constant 1.000000e+00 : f32
    %788 = vector.broadcast %cst_219 : f32 to vector<2x16x128xf32>
    %789 = arith.addf %784, %788 : vector<2x16x128xf32>
    %790 = math.log %789 : vector<2x16x128xf32>
    %791 = arith.mulf %787, %790 : vector<2x16x128xf32>
    %cst_220 = arith.constant 3.500000e+00 : f32
    %792 = vector.broadcast %cst_220 : f32 to vector<2x16x128xf32>
    %793 = arith.mulf %791, %792 : vector<2x16x128xf32>
    %cst_221 = arith.constant 9.99999993E-9 : f32
    %794 = vector.broadcast %cst_221 : f32 to vector<2x16x128xf32>
    %795 = arith.addf %793, %794 : vector<2x16x128xf32>
    %796 = tpu.reciprocal %795 {approx = true} : vector<2x16x128xf32> -> vector<2x16x128xf32>
    %797 = arith.cmpf olt, %780, %24 : vector<2x16x128xf32>
    %798 = arith.cmpf olt, %784, %27 : vector<2x16x128xf32>
    %799 = arith.andi %797, %798 : vector<2x16x128xi1>
    %cst_222 = arith.constant 9.99999993E-9 : f32
    %800 = vector.broadcast %cst_222 : f32 to vector<2x16x128xf32>
    %801 = arith.cmpf oge, %777, %800 : vector<2x16x128xf32>
    %802 = arith.andi %799, %801 : vector<2x16x128xi1>
    %803 = arith.subf %777, %8 : vector<2x16x128xf32>
    %804 = math.absf %803 : vector<2x16x128xf32>
    %805 = arith.cmpf olt, %804, %32 : vector<2x16x128xf32>
    %806 = arith.andi %802, %805 : vector<2x16x128xi1>
    %cst_223 = arith.constant 0.000000e+00 : f32
    %807 = vector.broadcast %cst_223 : f32 to vector<2x16x128xf32>
    %808 = arith.select %806, %796, %807 : vector<2x16x128xi1>, vector<2x16x128xf32>
    %809 = arith.subf %777, %783 : vector<2x16x128xf32>
    %810 = arith.mulf %808, %809 : vector<2x16x128xf32>
    %cst_224 = arith.constant dense<0.000000e+00> : vector<16x128xf32>
    %811 = vector.multi_reduction <add>, %810, %cst_224 [0] : vector<2x16x128xf32> to vector<16x128xf32>
    %812 = arith.addf %773, %811 : vector<16x128xf32>
    %cst_225 = arith.constant dense<0.000000e+00> : vector<16x128xf32>
    %813 = vector.multi_reduction <add>, %808, %cst_225 [0] : vector<2x16x128xf32> to vector<16x128xf32>
    %814 = arith.addf %775, %813 : vector<16x128xf32>
    %815 = vector.extract_strided_slice %1 {offsets = [0, 4, 0], sizes = [2, 16, 128], strides = [1, 1, 1]} : vector<2x20x128xf32> to vector<2x16x128xf32>
    %816 = vector.extract_strided_slice %3 {offsets = [0, 4, 0], sizes = [2, 16, 128], strides = [1, 1, 1]} : vector<2x20x128xf32> to vector<2x16x128xf32>
    %817 = vector.extract_strided_slice %5 {offsets = [4, 0], sizes = [16, 128], strides = [1, 1]} : vector<20x128xf32> to vector<16x128xf32>
    %818 = arith.subf %815, %816 : vector<2x16x128xf32>
    %819 = math.absf %818 : vector<2x16x128xf32>
    %820 = vector.shape_cast %817 : vector<16x128xf32> to vector<1x16x128xf32>
    %821 = vector.broadcast %820 : vector<1x16x128xf32> to vector<2x16x128xf32>
    %822 = arith.subf %815, %821 : vector<2x16x128xf32>
    %823 = math.absf %822 : vector<2x16x128xf32>
    %cst_226 = arith.constant 1.000000e+00 : f32
    %824 = vector.broadcast %cst_226 : f32 to vector<2x16x128xf32>
    %825 = arith.addf %819, %824 : vector<2x16x128xf32>
    %826 = math.log %825 : vector<2x16x128xf32>
    %cst_227 = arith.constant 1.000000e+00 : f32
    %827 = vector.broadcast %cst_227 : f32 to vector<2x16x128xf32>
    %828 = arith.addf %823, %827 : vector<2x16x128xf32>
    %829 = math.log %828 : vector<2x16x128xf32>
    %830 = arith.mulf %826, %829 : vector<2x16x128xf32>
    %cst_228 = arith.constant 3.000000e+00 : f32
    %831 = vector.broadcast %cst_228 : f32 to vector<2x16x128xf32>
    %832 = arith.mulf %830, %831 : vector<2x16x128xf32>
    %cst_229 = arith.constant 9.99999993E-9 : f32
    %833 = vector.broadcast %cst_229 : f32 to vector<2x16x128xf32>
    %834 = arith.addf %832, %833 : vector<2x16x128xf32>
    %835 = tpu.reciprocal %834 {approx = true} : vector<2x16x128xf32> -> vector<2x16x128xf32>
    %836 = arith.cmpf olt, %819, %24 : vector<2x16x128xf32>
    %837 = arith.cmpf olt, %823, %27 : vector<2x16x128xf32>
    %838 = arith.andi %836, %837 : vector<2x16x128xi1>
    %cst_230 = arith.constant 9.99999993E-9 : f32
    %839 = vector.broadcast %cst_230 : f32 to vector<2x16x128xf32>
    %840 = arith.cmpf oge, %816, %839 : vector<2x16x128xf32>
    %841 = arith.andi %838, %840 : vector<2x16x128xi1>
    %842 = arith.subf %816, %8 : vector<2x16x128xf32>
    %843 = math.absf %842 : vector<2x16x128xf32>
    %844 = arith.cmpf olt, %843, %32 : vector<2x16x128xf32>
    %845 = arith.andi %841, %844 : vector<2x16x128xi1>
    %cst_231 = arith.constant 0.000000e+00 : f32
    %846 = vector.broadcast %cst_231 : f32 to vector<2x16x128xf32>
    %847 = arith.select %845, %835, %846 : vector<2x16x128xi1>, vector<2x16x128xf32>
    %848 = arith.subf %816, %822 : vector<2x16x128xf32>
    %849 = arith.mulf %847, %848 : vector<2x16x128xf32>
    %cst_232 = arith.constant dense<0.000000e+00> : vector<16x128xf32>
    %850 = vector.multi_reduction <add>, %849, %cst_232 [0] : vector<2x16x128xf32> to vector<16x128xf32>
    %851 = arith.addf %812, %850 : vector<16x128xf32>
    %cst_233 = arith.constant dense<0.000000e+00> : vector<16x128xf32>
    %852 = vector.multi_reduction <add>, %847, %cst_233 [0] : vector<2x16x128xf32> to vector<16x128xf32>
    %853 = arith.addf %814, %852 : vector<16x128xf32>
    %c1_i32_234 = arith.constant 1 : i32
    %854 = tpu.dynamic_rotate %815 by %c1_i32_234 dim 2 : vector<2x16x128xf32>, i32 -> vector<2x16x128xf32>
    %c1_i32_235 = arith.constant 1 : i32
    %855 = tpu.dynamic_rotate %816 by %c1_i32_235 dim 2 : vector<2x16x128xf32>, i32 -> vector<2x16x128xf32>
    %c1_i32_236 = arith.constant 1 : i32
    %856 = tpu.dynamic_rotate %817 by %c1_i32_236 dim 1 : vector<16x128xf32>, i32 -> vector<16x128xf32>
    %857 = arith.subf %854, %855 : vector<2x16x128xf32>
    %858 = math.absf %857 : vector<2x16x128xf32>
    %859 = vector.shape_cast %856 : vector<16x128xf32> to vector<1x16x128xf32>
    %860 = vector.broadcast %859 : vector<1x16x128xf32> to vector<2x16x128xf32>
    %861 = arith.subf %854, %860 : vector<2x16x128xf32>
    %862 = math.absf %861 : vector<2x16x128xf32>
    %cst_237 = arith.constant 1.000000e+00 : f32
    %863 = vector.broadcast %cst_237 : f32 to vector<2x16x128xf32>
    %864 = arith.addf %858, %863 : vector<2x16x128xf32>
    %865 = math.log %864 : vector<2x16x128xf32>
    %cst_238 = arith.constant 1.000000e+00 : f32
    %866 = vector.broadcast %cst_238 : f32 to vector<2x16x128xf32>
    %867 = arith.addf %862, %866 : vector<2x16x128xf32>
    %868 = math.log %867 : vector<2x16x128xf32>
    %869 = arith.mulf %865, %868 : vector<2x16x128xf32>
    %cst_239 = arith.constant 3.500000e+00 : f32
    %870 = vector.broadcast %cst_239 : f32 to vector<2x16x128xf32>
    %871 = arith.mulf %869, %870 : vector<2x16x128xf32>
    %cst_240 = arith.constant 9.99999993E-9 : f32
    %872 = vector.broadcast %cst_240 : f32 to vector<2x16x128xf32>
    %873 = arith.addf %871, %872 : vector<2x16x128xf32>
    %874 = tpu.reciprocal %873 {approx = true} : vector<2x16x128xf32> -> vector<2x16x128xf32>
    %875 = arith.cmpf olt, %858, %24 : vector<2x16x128xf32>
    %876 = arith.cmpf olt, %862, %27 : vector<2x16x128xf32>
    %877 = arith.andi %875, %876 : vector<2x16x128xi1>
    %cst_241 = arith.constant 9.99999993E-9 : f32
    %878 = vector.broadcast %cst_241 : f32 to vector<2x16x128xf32>
    %879 = arith.cmpf oge, %855, %878 : vector<2x16x128xf32>
    %880 = arith.andi %877, %879 : vector<2x16x128xi1>
    %881 = arith.subf %855, %8 : vector<2x16x128xf32>
    %882 = math.absf %881 : vector<2x16x128xf32>
    %883 = arith.cmpf olt, %882, %32 : vector<2x16x128xf32>
    %884 = arith.andi %880, %883 : vector<2x16x128xi1>
    %cst_242 = arith.constant 0.000000e+00 : f32
    %885 = vector.broadcast %cst_242 : f32 to vector<2x16x128xf32>
    %886 = arith.select %884, %874, %885 : vector<2x16x128xi1>, vector<2x16x128xf32>
    %887 = arith.subf %855, %861 : vector<2x16x128xf32>
    %888 = arith.mulf %886, %887 : vector<2x16x128xf32>
    %cst_243 = arith.constant dense<0.000000e+00> : vector<16x128xf32>
    %889 = vector.multi_reduction <add>, %888, %cst_243 [0] : vector<2x16x128xf32> to vector<16x128xf32>
    %890 = arith.addf %851, %889 : vector<16x128xf32>
    %cst_244 = arith.constant dense<0.000000e+00> : vector<16x128xf32>
    %891 = vector.multi_reduction <add>, %886, %cst_244 [0] : vector<2x16x128xf32> to vector<16x128xf32>
    %892 = arith.addf %853, %891 : vector<16x128xf32>
    %c127_i32_245 = arith.constant 127 : i32
    %893 = tpu.dynamic_rotate %815 by %c127_i32_245 dim 2 : vector<2x16x128xf32>, i32 -> vector<2x16x128xf32>
    %c127_i32_246 = arith.constant 127 : i32
    %894 = tpu.dynamic_rotate %816 by %c127_i32_246 dim 2 : vector<2x16x128xf32>, i32 -> vector<2x16x128xf32>
    %c127_i32_247 = arith.constant 127 : i32
    %895 = tpu.dynamic_rotate %817 by %c127_i32_247 dim 1 : vector<16x128xf32>, i32 -> vector<16x128xf32>
    %896 = arith.subf %893, %894 : vector<2x16x128xf32>
    %897 = math.absf %896 : vector<2x16x128xf32>
    %898 = vector.shape_cast %895 : vector<16x128xf32> to vector<1x16x128xf32>
    %899 = vector.broadcast %898 : vector<1x16x128xf32> to vector<2x16x128xf32>
    %900 = arith.subf %893, %899 : vector<2x16x128xf32>
    %901 = math.absf %900 : vector<2x16x128xf32>
    %cst_248 = arith.constant 1.000000e+00 : f32
    %902 = vector.broadcast %cst_248 : f32 to vector<2x16x128xf32>
    %903 = arith.addf %897, %902 : vector<2x16x128xf32>
    %904 = math.log %903 : vector<2x16x128xf32>
    %cst_249 = arith.constant 1.000000e+00 : f32
    %905 = vector.broadcast %cst_249 : f32 to vector<2x16x128xf32>
    %906 = arith.addf %901, %905 : vector<2x16x128xf32>
    %907 = math.log %906 : vector<2x16x128xf32>
    %908 = arith.mulf %904, %907 : vector<2x16x128xf32>
    %cst_250 = arith.constant 3.500000e+00 : f32
    %909 = vector.broadcast %cst_250 : f32 to vector<2x16x128xf32>
    %910 = arith.mulf %908, %909 : vector<2x16x128xf32>
    %cst_251 = arith.constant 9.99999993E-9 : f32
    %911 = vector.broadcast %cst_251 : f32 to vector<2x16x128xf32>
    %912 = arith.addf %910, %911 : vector<2x16x128xf32>
    %913 = tpu.reciprocal %912 {approx = true} : vector<2x16x128xf32> -> vector<2x16x128xf32>
    %914 = arith.cmpf olt, %897, %24 : vector<2x16x128xf32>
    %915 = arith.cmpf olt, %901, %27 : vector<2x16x128xf32>
    %916 = arith.andi %914, %915 : vector<2x16x128xi1>
    %cst_252 = arith.constant 9.99999993E-9 : f32
    %917 = vector.broadcast %cst_252 : f32 to vector<2x16x128xf32>
    %918 = arith.cmpf oge, %894, %917 : vector<2x16x128xf32>
    %919 = arith.andi %916, %918 : vector<2x16x128xi1>
    %920 = arith.subf %894, %8 : vector<2x16x128xf32>
    %921 = math.absf %920 : vector<2x16x128xf32>
    %922 = arith.cmpf olt, %921, %32 : vector<2x16x128xf32>
    %923 = arith.andi %919, %922 : vector<2x16x128xi1>
    %cst_253 = arith.constant 0.000000e+00 : f32
    %924 = vector.broadcast %cst_253 : f32 to vector<2x16x128xf32>
    %925 = arith.select %923, %913, %924 : vector<2x16x128xi1>, vector<2x16x128xf32>
    %926 = arith.subf %894, %900 : vector<2x16x128xf32>
    %927 = arith.mulf %925, %926 : vector<2x16x128xf32>
    %cst_254 = arith.constant dense<0.000000e+00> : vector<16x128xf32>
    %928 = vector.multi_reduction <add>, %927, %cst_254 [0] : vector<2x16x128xf32> to vector<16x128xf32>
    %929 = arith.addf %890, %928 : vector<16x128xf32>
    %cst_255 = arith.constant dense<0.000000e+00> : vector<16x128xf32>
    %930 = vector.multi_reduction <add>, %925, %cst_255 [0] : vector<2x16x128xf32> to vector<16x128xf32>
    %931 = arith.addf %892, %930 : vector<16x128xf32>
    %c2_i32_256 = arith.constant 2 : i32
    %932 = tpu.dynamic_rotate %815 by %c2_i32_256 dim 2 : vector<2x16x128xf32>, i32 -> vector<2x16x128xf32>
    %c2_i32_257 = arith.constant 2 : i32
    %933 = tpu.dynamic_rotate %816 by %c2_i32_257 dim 2 : vector<2x16x128xf32>, i32 -> vector<2x16x128xf32>
    %c2_i32_258 = arith.constant 2 : i32
    %934 = tpu.dynamic_rotate %817 by %c2_i32_258 dim 1 : vector<16x128xf32>, i32 -> vector<16x128xf32>
    %935 = arith.subf %932, %933 : vector<2x16x128xf32>
    %936 = math.absf %935 : vector<2x16x128xf32>
    %937 = vector.shape_cast %934 : vector<16x128xf32> to vector<1x16x128xf32>
    %938 = vector.broadcast %937 : vector<1x16x128xf32> to vector<2x16x128xf32>
    %939 = arith.subf %932, %938 : vector<2x16x128xf32>
    %940 = math.absf %939 : vector<2x16x128xf32>
    %cst_259 = arith.constant 1.000000e+00 : f32
    %941 = vector.broadcast %cst_259 : f32 to vector<2x16x128xf32>
    %942 = arith.addf %936, %941 : vector<2x16x128xf32>
    %943 = math.log %942 : vector<2x16x128xf32>
    %cst_260 = arith.constant 1.000000e+00 : f32
    %944 = vector.broadcast %cst_260 : f32 to vector<2x16x128xf32>
    %945 = arith.addf %940, %944 : vector<2x16x128xf32>
    %946 = math.log %945 : vector<2x16x128xf32>
    %947 = arith.mulf %943, %946 : vector<2x16x128xf32>
    %cst_261 = arith.constant 5.000000e+00 : f32
    %948 = vector.broadcast %cst_261 : f32 to vector<2x16x128xf32>
    %949 = arith.mulf %947, %948 : vector<2x16x128xf32>
    %cst_262 = arith.constant 9.99999993E-9 : f32
    %950 = vector.broadcast %cst_262 : f32 to vector<2x16x128xf32>
    %951 = arith.addf %949, %950 : vector<2x16x128xf32>
    %952 = tpu.reciprocal %951 {approx = true} : vector<2x16x128xf32> -> vector<2x16x128xf32>
    %953 = arith.cmpf olt, %936, %24 : vector<2x16x128xf32>
    %954 = arith.cmpf olt, %940, %27 : vector<2x16x128xf32>
    %955 = arith.andi %953, %954 : vector<2x16x128xi1>
    %cst_263 = arith.constant 9.99999993E-9 : f32
    %956 = vector.broadcast %cst_263 : f32 to vector<2x16x128xf32>
    %957 = arith.cmpf oge, %933, %956 : vector<2x16x128xf32>
    %958 = arith.andi %955, %957 : vector<2x16x128xi1>
    %959 = arith.subf %933, %8 : vector<2x16x128xf32>
    %960 = math.absf %959 : vector<2x16x128xf32>
    %961 = arith.cmpf olt, %960, %32 : vector<2x16x128xf32>
    %962 = arith.andi %958, %961 : vector<2x16x128xi1>
    %cst_264 = arith.constant 0.000000e+00 : f32
    %963 = vector.broadcast %cst_264 : f32 to vector<2x16x128xf32>
    %964 = arith.select %962, %952, %963 : vector<2x16x128xi1>, vector<2x16x128xf32>
    %965 = arith.subf %933, %939 : vector<2x16x128xf32>
    %966 = arith.mulf %964, %965 : vector<2x16x128xf32>
    %cst_265 = arith.constant dense<0.000000e+00> : vector<16x128xf32>
    %967 = vector.multi_reduction <add>, %966, %cst_265 [0] : vector<2x16x128xf32> to vector<16x128xf32>
    %968 = arith.addf %929, %967 : vector<16x128xf32>
    %cst_266 = arith.constant dense<0.000000e+00> : vector<16x128xf32>
    %969 = vector.multi_reduction <add>, %964, %cst_266 [0] : vector<2x16x128xf32> to vector<16x128xf32>
    %970 = arith.addf %931, %969 : vector<16x128xf32>
    %c126_i32_267 = arith.constant 126 : i32
    %971 = tpu.dynamic_rotate %815 by %c126_i32_267 dim 2 : vector<2x16x128xf32>, i32 -> vector<2x16x128xf32>
    %c126_i32_268 = arith.constant 126 : i32
    %972 = tpu.dynamic_rotate %816 by %c126_i32_268 dim 2 : vector<2x16x128xf32>, i32 -> vector<2x16x128xf32>
    %c126_i32_269 = arith.constant 126 : i32
    %973 = tpu.dynamic_rotate %817 by %c126_i32_269 dim 1 : vector<16x128xf32>, i32 -> vector<16x128xf32>
    %974 = arith.subf %971, %972 : vector<2x16x128xf32>
    %975 = math.absf %974 : vector<2x16x128xf32>
    %976 = vector.shape_cast %973 : vector<16x128xf32> to vector<1x16x128xf32>
    %977 = vector.broadcast %976 : vector<1x16x128xf32> to vector<2x16x128xf32>
    %978 = arith.subf %971, %977 : vector<2x16x128xf32>
    %979 = math.absf %978 : vector<2x16x128xf32>
    %cst_270 = arith.constant 1.000000e+00 : f32
    %980 = vector.broadcast %cst_270 : f32 to vector<2x16x128xf32>
    %981 = arith.addf %975, %980 : vector<2x16x128xf32>
    %982 = math.log %981 : vector<2x16x128xf32>
    %cst_271 = arith.constant 1.000000e+00 : f32
    %983 = vector.broadcast %cst_271 : f32 to vector<2x16x128xf32>
    %984 = arith.addf %979, %983 : vector<2x16x128xf32>
    %985 = math.log %984 : vector<2x16x128xf32>
    %986 = arith.mulf %982, %985 : vector<2x16x128xf32>
    %cst_272 = arith.constant 5.000000e+00 : f32
    %987 = vector.broadcast %cst_272 : f32 to vector<2x16x128xf32>
    %988 = arith.mulf %986, %987 : vector<2x16x128xf32>
    %cst_273 = arith.constant 9.99999993E-9 : f32
    %989 = vector.broadcast %cst_273 : f32 to vector<2x16x128xf32>
    %990 = arith.addf %988, %989 : vector<2x16x128xf32>
    %991 = tpu.reciprocal %990 {approx = true} : vector<2x16x128xf32> -> vector<2x16x128xf32>
    %992 = arith.cmpf olt, %975, %24 : vector<2x16x128xf32>
    %993 = arith.cmpf olt, %979, %27 : vector<2x16x128xf32>
    %994 = arith.andi %992, %993 : vector<2x16x128xi1>
    %cst_274 = arith.constant 9.99999993E-9 : f32
    %995 = vector.broadcast %cst_274 : f32 to vector<2x16x128xf32>
    %996 = arith.cmpf oge, %972, %995 : vector<2x16x128xf32>
    %997 = arith.andi %994, %996 : vector<2x16x128xi1>
    %998 = arith.subf %972, %8 : vector<2x16x128xf32>
    %999 = math.absf %998 : vector<2x16x128xf32>
    %1000 = arith.cmpf olt, %999, %32 : vector<2x16x128xf32>
    %1001 = arith.andi %997, %1000 : vector<2x16x128xi1>
    %cst_275 = arith.constant 0.000000e+00 : f32
    %1002 = vector.broadcast %cst_275 : f32 to vector<2x16x128xf32>
    %1003 = arith.select %1001, %991, %1002 : vector<2x16x128xi1>, vector<2x16x128xf32>
    %1004 = arith.subf %972, %978 : vector<2x16x128xf32>
    %1005 = arith.mulf %1003, %1004 : vector<2x16x128xf32>
    %cst_276 = arith.constant dense<0.000000e+00> : vector<16x128xf32>
    %1006 = vector.multi_reduction <add>, %1005, %cst_276 [0] : vector<2x16x128xf32> to vector<16x128xf32>
    %1007 = arith.addf %968, %1006 : vector<16x128xf32>
    %cst_277 = arith.constant dense<0.000000e+00> : vector<16x128xf32>
    %1008 = vector.multi_reduction <add>, %1003, %cst_277 [0] : vector<2x16x128xf32> to vector<16x128xf32>
    %1009 = arith.addf %970, %1008 : vector<16x128xf32>
    %cst_278 = arith.constant 9.99999993E-9 : f32
    %1010 = vector.broadcast %cst_278 : f32 to vector<16x128xf32>
    %1011 = arith.addf %1009, %1010 : vector<16x128xf32>
    %1012 = arith.divf %1007, %1011 : vector<16x128xf32>
    %c0_279 = arith.constant 0 : index
    %c0_280 = arith.constant 0 : index
    %c0_281 = arith.constant 0 : index
    %c0_282 = arith.constant 0 : index
    %1013 = vector.load %arg6[%c0_279, %c0_280, %c0_281, %c0_282] : memref<1x1x16x128xf32, #tpu.memory_space<vmem>>, vector<1x1x16x128xf32>
    %1014 = vector.shape_cast %1013 : vector<1x1x16x128xf32> to vector<16x128xf32>
    %1015 = vector.shape_cast %1012 : vector<16x128xf32> to vector<1x1x16x128xf32>
    tpu.vector_store %arg6[%c0_279, %c0_280, %c0_281, %c0_282], %1015 {strides = array<i32>} : memref<1x1x16x128xf32, #tpu.memory_space<vmem>>, vector<1x1x16x128xf32>,
    return
  }
  func.func @transform_0(%arg0: i32, %arg1: i32) -> (i32, i32, i32, i32, i32) {
    %c0_i32 = arith.constant 0 : i32
    %c0_i32_0 = arith.constant 0 : i32
    %c0_i32_1 = arith.constant 0 : i32
    %c0_i32_2 = arith.constant 0 : i32
    return %arg0, %arg1, %c0_i32, %c0_i32_0, %c0_i32_1 : i32, i32, i32, i32, i32
  }
  func.func @transform_1(%arg0: i32, %arg1: i32) -> (i32, i32, i32, i32, i32) {
    %c0_i32 = arith.constant 0 : i32
    %c0_i32_0 = arith.constant 0 : i32
    %c0_i32_1 = arith.constant 0 : i32
    %c0_i32_2 = arith.constant 0 : i32
    return %arg0, %arg1, %c0_i32, %c0_i32_0, %c0_i32_1 : i32, i32, i32, i32, i32
  }
  func.func @transform_2(%arg0: i32, %arg1: i32) -> (i32, i32, i32, i32) {
    %c0_i32 = arith.constant 0 : i32
    %c0_i32_0 = arith.constant 0 : i32
    %c0_i32_1 = arith.constant 0 : i32
    return %arg0, %arg1, %c0_i32, %c0_i32_0 : i32, i32, i32, i32
  }
  func.func @transform_3(%arg0: i32, %arg1: i32) -> (i32, i32) {
    %c0_i32 = arith.constant 0 : i32
    %c0_i32_0 = arith.constant 0 : i32
    %c0_i32_1 = arith.constant 0 : i32
    return %c0_i32, %c0_i32_0 : i32, i32
  }
  func.func @transform_4(%arg0: i32, %arg1: i32) -> (i32, i32, i32, i32) {
    %c0_i32 = arith.constant 0 : i32
    %c0_i32_0 = arith.constant 0 : i32
    %c0_i32_1 = arith.constant 0 : i32
    return %arg0, %arg1, %c0_i32, %c0_i32_0 : i32, i32, i32, i32
  }
}

</mosaic_0001>

<llo_original>
// kernel: tpu_custom_call.1
$region0: #{tpu_custom_call.1}
  #allocation0 [shape = 'u32[]', space=smem, size = 0x4, offset = 0x4, fixed_abs, tag = 'smem constant byte address 0x4 - core index']
  #allocation1 [shape = 'u32[144,128]{1,0:T(1,128)}', space=vmem, size = 0x12000, scoped, tag = 'internal scratch']
  #allocation2 [shape = 'f32[1,1]{1,0:T(1,128)S(6)}', space=smem, size = 0x200, scoped, tag = 'scoped memory for tpu_custom_call.1']
  %s0 = inlined_call_operand.vmem [shape: f32[2,3,2,20,128], index: 0, kind: input, shape index: {}]
  %s1 = inlined_call_operand.vmem [shape: f32[2,3,2,20,128], index: 1, kind: input, shape index: {}]
  %s2 = inlined_call_operand.vmem [shape: f32[2,3,20,128], index: 2, kind: input, shape index: {}]
  %s3 = inlined_call_operand.<no memory space> [shape: f32[1,1], index: 3, kind: input, shape index: {}]
  %s4 = inlined_call_operand.hbm [shape: f32[2,3,16,128], index: 4, kind: output, shape index: {}]
  %s5 = sld [smem:[#allocation0]]
  $region49: #{tpu_custom_call.1} parent=0
    _
  %s7 = ssub.s32 1, %s5
  %s8 = scalar_select 0, %s7, %s5
  %9 = sst [smem:[#allocation2]] %s3
  $region1: #{tpu_custom_call.1} parent=0
    #allocation3 [shape = 'u8[16384]{0}', space=vmem, size = 0x4000, scoped, tag = 'output window, operand 0']
    #allocation4 [shape = 's32[2]{0}', space=sflag, size = 0x8, scoped, tag = 'scoped memory for tpu_custom_call.1']
    %10 = vsyncpa [#allocation4], 0
    %s11 = scalar_lea.sflag [#allocation4], 1
    %12 = vsyncpa %s11, 0
    loop: start=0, step=1, limit=8
    $region2: #{tpu_custom_call.1} parent=1 // loop_pre_header
      _
    $region3: #{tpu_custom_call.1} parent=1 // loop_header
      %s14 = sphi 0, %s18
      %p15 = scmp.ge.s32.totalorder %s14, 8
      %s21 = sphi 0, %s33
      %s22 = sphi 0, %s29
      %s23 = sphi 0, %s21
      %s24 = sphi 0, %s22
      %s25 = sphi 0, %s23
      %s26 = sphi 0, %s24
      %s38 = sphi 0, %s40
      %s41 = sphi 0, %s38
      %s42 = sphi 0, %s41
      %s58 = sphi 0, %s42
      %s66 = sphi 0, %s68
      %s69 = sphi 0, %s66
      %s70 = sphi 0, %s69
      %s86 = sphi 0, %s70
      %s94 = sphi 0, %s96
      %s97 = sphi 0, %s94
      %s98 = sphi 0, %s97
      %s114 = sphi 0, %s98
      %s118 = sphi 0, %s118
      %s120 = sphi 0, %s118
      %s121 = sphi 0, %s120
      %s135 = sphi 0, %s121
      %s143 = sphi 0, %s145
      %s146 = sphi 0, %s143
      %s147 = sphi 0, %s146
      %s163 = sphi 0, %s147
    $region4: #{tpu_custom_call.1} parent=1 // loop_header_branch
      %17 = sbr.rel (%p15) target = $region8
    $region5: #{tpu_custom_call.1} parent=1 // loop_body
      %s19 = ssub.s32 %s14, 1
      %s20 = ssub.s32 %s14, 2
      %s27 = sadd.s32 1, %s22
      %p28 = scmp.ge.s32.totalorder %s27, 3
      %s29 = scalar_select %p28, 0, %s27
      %s30 = sadd.s32 1, %s21
      %s31 = scalar_select %p28, %s30, %s21
      %p32 = scmp.ge.s32.totalorder %s31, 2
      %s33 = scalar_select %p32, 0, %s31
      %s34 = ssub.s32 %s21, %s33
      %s35 = ssub.s32 %s22, %s29
      %s36 = sor.u32 %s34, %s35
      %p37 = scmp.eq.s32.totalorder %s36, 0
      %s39 = sadd.s32 %s38, 1
      %s40 = scalar_select %p37, %s38, %s39
      %p43 = pneg %p37
      %p44 = scmp.eq.s32.totalorder %s14, 5
      %p45 = por %p43, %p44
      %p46 = scmp.ne.s32.totalorder %s38, %s41
      %p47 = scmp.eq.s32.totalorder %s14, 0
      %p48 = por %p46, %p47
      %p49 = scmp.ne.s32.totalorder %s38, %s41
      %p50 = scmp.eq.s32.totalorder %s19, 5
      %p51 = por %p49, %p50
      %p52 = scmp.ne.s32.totalorder %s41, %s42
      %p53 = scmp.eq.s32.totalorder %s19, 0
      %p54 = por %p52, %p53
      %p55 = scmp.ne.s32.totalorder %s41, %s42
      %p56 = scmp.eq.s32.totalorder %s20, 5
      %p57 = por %p55, %p56
      %p59 = scmp.ne.s32.totalorder %s42, %s58
      %p60 = scmp.eq.s32.totalorder %s20, 0
      %p61 = por %p59, %p60
      %s62 = ssub.s32 %s21, %s33
      %s63 = ssub.s32 %s22, %s29
      %s64 = sor.u32 %s62, %s63
      %p65 = scmp.eq.s32.totalorder %s64, 0
      %s67 = sadd.s32 %s66, 1
      %s68 = scalar_select %p65, %s66, %s67
      %p71 = pneg %p65
      %p72 = scmp.eq.s32.totalorder %s14, 5
      %p73 = por %p71, %p72
      %p74 = scmp.ne.s32.totalorder %s66, %s69
      %p75 = scmp.eq.s32.totalorder %s14, 0
      %p76 = por %p74, %p75
      %p77 = scmp.ne.s32.totalorder %s66, %s69
      %p78 = scmp.eq.s32.totalorder %s19, 5
      %p79 = por %p77, %p78
      %p80 = scmp.ne.s32.totalorder %s69, %s70
      %p81 = scmp.eq.s32.totalorder %s19, 0
      %p82 = por %p80, %p81
      %p83 = scmp.ne.s32.totalorder %s69, %s70
      %p84 = scmp.eq.s32.totalorder %s20, 5
      %p85 = por %p83, %p84
      %p87 = scmp.ne.s32.totalorder %s70, %s86
      %p88 = scmp.eq.s32.totalorder %s20, 0
      %p89 = por %p87, %p88
      %s90 = ssub.s32 %s21, %s33
      %s91 = ssub.s32 %s22, %s29
      %s92 = sor.u32 %s90, %s91
      %p93 = scmp.eq.s32.totalorder %s92, 0
      %s95 = sadd.s32 %s94, 1
      %s96 = scalar_select %p93, %s94, %s95
      %p99 = pneg %p93
      %p100 = scmp.eq.s32.totalorder %s14, 5
      %p101 = por %p99, %p100
      %p102 = scmp.ne.s32.totalorder %s94, %s97
      %p103 = scmp.eq.s32.totalorder %s14, 0
      %p104 = por %p102, %p103
      %p105 = scmp.ne.s32.totalorder %s94, %s97
      %p106 = scmp.eq.s32.totalorder %s19, 5
      %p107 = por %p105, %p106
      %p108 = scmp.ne.s32.totalorder %s97, %s98
      %p109 = scmp.eq.s32.totalorder %s19, 0
      %p110 = por %p108, %p109
      %p111 = scmp.ne.s32.totalorder %s97, %s98
      %p112 = scmp.eq.s32.totalorder %s20, 5
      %p113 = por %p111, %p112
      %p115 = scmp.ne.s32.totalorder %s98, %s114
      %p116 = scmp.eq.s32.totalorder %s20, 0
      %p117 = por %p115, %p116
      %s119 = sadd.s32 %s118, 1
      %p122 = scmp.eq.s32.totalorder %s14, 5
      %p123 = scmp.ne.s32.totalorder %s118, %s120
      %p124 = scmp.eq.s32.totalorder %s14, 0
      %p125 = por %p123, %p124
      %p126 = scmp.ne.s32.totalorder %s118, %s120
      %p127 = scmp.eq.s32.totalorder %s19, 5
      %p128 = por %p126, %p127
      %p129 = scmp.ne.s32.totalorder %s120, %s121
      %p130 = scmp.eq.s32.totalorder %s19, 0
      %p131 = por %p129, %p130
      %p132 = scmp.ne.s32.totalorder %s120, %s121
      %p133 = scmp.eq.s32.totalorder %s20, 5
      %p134 = por %p132, %p133
      %p136 = scmp.ne.s32.totalorder %s121, %s135
      %p137 = scmp.eq.s32.totalorder %s20, 0
      %p138 = por %p136, %p137
      %s139 = ssub.s32 %s21, %s33
      %s140 = ssub.s32 %s22, %s29
      %s141 = sor.u32 %s139, %s140
      %p142 = scmp.eq.s32.totalorder %s141, 0
      %s144 = sadd.s32 %s143, 1
      %s145 = scalar_select %p142, %s143, %s144
      %p148 = pneg %p142
      %p149 = scmp.eq.s32.totalorder %s14, 5
      %p150 = por %p148, %p149
      %p151 = scmp.ne.s32.totalorder %s143, %s146
      %p152 = scmp.eq.s32.totalorder %s14, 0
      %p153 = por %p151, %p152
      %p154 = scmp.ne.s32.totalorder %s143, %s146
      %p155 = scmp.eq.s32.totalorder %s19, 5
      %p156 = por %p154, %p155
      %p157 = scmp.ne.s32.totalorder %s146, %s147
      %p158 = scmp.eq.s32.totalorder %s19, 0
      %p159 = por %p157, %p158
      %p160 = scmp.ne.s32.totalorder %s146, %s147
      %p161 = scmp.eq.s32.totalorder %s20, 5
      %p162 = por %p160, %p161
      %p164 = scmp.ne.s32.totalorder %s147, %s163
      %p165 = scmp.eq.s32.totalorder %s20, 0
      %p166 = por %p164, %p165
      %p167 = scmp.le.s32.totalorder 1, %s14
      %p168 = scmp.lt.s32.totalorder %s14, 7
      %p169 = pnand %p167, %p168
      %p170 = pneg %p169
      // Predicated region
      $region9: #{tpu_custom_call.1} parent=5 // pred_check
        _
      $region10: #{tpu_custom_call.1} parent=5 // pred_check_branch
        %172 = sbr.rel (%p169) target = $region12
      $region11: #{tpu_custom_call.1} parent=5 // pred_region
        %s173 = ssub.s32 %s14, 1
        // Predicated region
        $region13: #{tpu_custom_call.1} parent=11 // pred_check
          %p174 = pneg %p131
        $region14: #{tpu_custom_call.1} parent=11 // pred_check_branch
          %176 = sbr.rel (%p174) target = $region16
        $region15: #{tpu_custom_call.1} parent=11 // pred_region
          _
        $region16: #{tpu_custom_call.1} parent=11 // pred_fallthru
          _
      $region12: #{tpu_custom_call.1} parent=5 // pred_fallthru
        _
      %p177 = scmp.lt.s32.totalorder %s14, 6
      // Predicated region
      $region17: #{tpu_custom_call.1} parent=5 // pred_check
        %p178 = pneg %p177
      $region18: #{tpu_custom_call.1} parent=5 // pred_check_branch
        %180 = sbr.rel (%p178) target = $region20
      $region19: #{tpu_custom_call.1} parent=5 // pred_region
        // Predicated region
        $region21: #{tpu_custom_call.1} parent=19 // pred_check
          %p181 = pneg %p48
        $region22: #{tpu_custom_call.1} parent=19 // pred_check_branch
          %183 = sbr.rel (%p181) target = $region24
        $region23: #{tpu_custom_call.1} parent=19 // pred_region
          %p184 = scmp.lt.s32.totalorder %s21, 1
          %s185 = scalar_select %p184, %s21, 1
          %p186 = scmp.lt.s32.totalorder %s22, 2
          %s187 = scalar_select %p186, %s22, 2
          %s188 = smul.addr %s187, 6
          %s189 = smul.addr %s185, 18
          %s190 = sadd.s32 %s188, %s189
          %s191 = smul.addr %s190, 8
          %s192 = scalar_lea.vmem %s0, %s191
        $region24: #{tpu_custom_call.1} parent=19 // pred_fallthru
          _
        // Predicated region
        $region25: #{tpu_custom_call.1} parent=19 // pred_check
          %p193 = pneg %p76
        $region26: #{tpu_custom_call.1} parent=19 // pred_check_branch
          %195 = sbr.rel (%p193) target = $region28
        $region27: #{tpu_custom_call.1} parent=19 // pred_region
          %p196 = scmp.lt.s32.totalorder %s21, 1
          %s197 = scalar_select %p196, %s21, 1
          %p198 = scmp.lt.s32.totalorder %s22, 2
          %s199 = scalar_select %p198, %s22, 2
          %s200 = smul.addr %s199, 6
          %s201 = smul.addr %s197, 18
          %s202 = sadd.s32 %s200, %s201
          %s203 = smul.addr %s202, 8
          %s204 = scalar_lea.vmem %s1, %s203
        $region28: #{tpu_custom_call.1} parent=19 // pred_fallthru
          _
        // Predicated region
        $region29: #{tpu_custom_call.1} parent=19 // pred_check
          %p205 = pneg %p104
        $region30: #{tpu_custom_call.1} parent=19 // pred_check_branch
          %207 = sbr.rel (%p205) target = $region32
        $region31: #{tpu_custom_call.1} parent=19 // pred_region
          %p208 = scmp.lt.s32.totalorder %s21, 1
          %s209 = scalar_select %p208, %s21, 1
          %p210 = scmp.lt.s32.totalorder %s22, 2
          %s211 = scalar_select %p210, %s22, 2
          %s212 = smul.addr %s211, 3
          %s213 = smul.addr %s209, 9
          %s214 = sadd.s32 %s212, %s213
          %s215 = smul.addr %s214, 8
          %s216 = scalar_lea.vmem %s2, %s215
        $region32: #{tpu_custom_call.1} parent=19 // pred_fallthru
          _
      $region20: #{tpu_custom_call.1} parent=5 // pred_fallthru
        _
      %p217 = scmp.le.s32.totalorder 1, %s14
      %p218 = scmp.lt.s32.totalorder %s14, 7
      %p219 = pnand %p217, %p218
      %p220 = pneg %p219
      // Predicated region
      $region33: #{tpu_custom_call.1} parent=5 // pred_check
        _
      $region34: #{tpu_custom_call.1} parent=5 // pred_check_branch
        %222 = sbr.rel (%p219) target = $region36
      $region35: #{tpu_custom_call.1} parent=5 // pred_region
        %s223 = ssub.s32 %s14, 1
        %p224 = scmp.lt.s32.totalorder %s23, 1
        %s225 = scalar_select %p224, %s23, 1
        %p226 = scmp.lt.s32.totalorder %s24, 2
        %s227 = scalar_select %p226, %s24, 2
        %s228 = smul.addr %s227, 6
        %s229 = smul.addr %s225, 18
        %s230 = sadd.s32 %s228, %s229
        %s231 = smul.addr %s230, 8
        %s232 = scalar_lea.vmem %s0, %s231
        %p233 = pneg %p54
        %p234 = pneg %p51
        %p235 = scmp.lt.s32.totalorder %s23, 1
        %s236 = scalar_select %p235, %s23, 1
        %p237 = scmp.lt.s32.totalorder %s24, 2
        %s238 = scalar_select %p237, %s24, 2
        %s239 = smul.addr %s238, 6
        %s240 = smul.addr %s236, 18
        %s241 = sadd.s32 %s239, %s240
        %s242 = smul.addr %s241, 8
        %s243 = scalar_lea.vmem %s1, %s242
        %p244 = pneg %p82
        %p245 = pneg %p79
        %p246 = scmp.lt.s32.totalorder %s23, 1
        %s247 = scalar_select %p246, %s23, 1
        %p248 = scmp.lt.s32.totalorder %s24, 2
        %s249 = scalar_select %p248, %s24, 2
        %s250 = smul.addr %s249, 3
        %s251 = smul.addr %s247, 9
        %s252 = sadd.s32 %s250, %s251
        %s253 = smul.addr %s252, 8
        %s254 = scalar_lea.vmem %s2, %s253
        %p255 = pneg %p110
        %p256 = pneg %p107
        %p257 = pneg %p131
        %p258 = pneg %p128
        %p259 = pneg %p159
        %p260 = pneg %p156
        %s261 = sand.u32 %s146, 1
        %s262 = scalar_lea.sflag [#allocation4], %s261
        %s263 = sand.u32 %s146, 1
        %s264 = smul.addr %s263, 16
        %s265 = scalar_lea.vmem [#allocation3], %s264
        %p266 = scmp.lt.s32.totalorder %s23, 1
        %s267 = scalar_select %p266, %s23, 1
        %p268 = scmp.lt.s32.totalorder %s24, 2
        %s269 = scalar_select %p268, %s24, 2
        %s270 = smul.addr %s269, 6
        %s271 = smul.addr %s267, 18
        %s272 = sadd.s32 %s270, %s271
        %s273 = smul.addr %s272, 8
        %s274 = scalar_lea.vmem %s0, %s273
        %p275 = scmp.lt.s32.totalorder %s23, 1
        %s276 = scalar_select %p275, %s23, 1
        %p277 = scmp.lt.s32.totalorder %s24, 2
        %s278 = scalar_select %p277, %s24, 2
        %s279 = smul.addr %s278, 6
        %s280 = smul.addr %s276, 18
        %s281 = sadd.s32 %s279, %s280
        %s282 = smul.addr %s281, 8
        %s283 = scalar_lea.vmem %s1, %s282
        %p284 = scmp.lt.s32.totalorder %s23, 1
        %s285 = scalar_select %p284, %s23, 1
        %p286 = scmp.lt.s32.totalorder %s24, 2
        %s287 = scalar_select %p286, %s24, 2
        %s288 = smul.addr %s287, 3
        %s289 = smul.addr %s285, 9
        %s290 = sadd.s32 %s288, %s289
        %s291 = smul.addr %s290, 8
        %s292 = scalar_lea.vmem %s2, %s291
        %v293 = vld [vmem:[%s274] sm:$0xff]
        %v294 = vld [vmem:[%s274 + $0x8] sm:$0xff]
        %v295 = vld [vmem:[%s274 + $0x10] sm:$0xf]
        %v296 = vld [vmem:[%s274 + $0x18] sm:$0xff]
        %v297 = vld [vmem:[%s274 + $0x20] sm:$0xff]
        %v298 = vld [vmem:[%s274 + $0x28] sm:$0xf]
        %v299 = vld [vmem:[%s283] sm:$0xff]
        %v300 = vld [vmem:[%s283 + $0x8] sm:$0xff]
        %v301 = vld [vmem:[%s283 + $0x10] sm:$0xf]
        %v302 = vld [vmem:[%s283 + $0x18] sm:$0xff]
        %v303 = vld [vmem:[%s283 + $0x20] sm:$0xff]
        %v304 = vld [vmem:[%s283 + $0x28] sm:$0xf]
        %v305 = vld [vmem:[%s292] sm:$0xff]
        %v306 = vld [vmem:[%s292 + $0x8] sm:$0xff]
        %v307 = vld [vmem:[%s292 + $0x10] sm:$0xf]
        %s308 = sld [smem:[#allocation2]]
        %v309 = vsub.f32 %v293, %v299
        %v310 = vsub.f32 %v294, %v300
        %v311 = vsub.f32 %v295, %v301
        %v312 = vsub.f32 %v296, %v302
        %v313 = vsub.f32 %v297, %v303
        %v314 = vsub.f32 %v298, %v304
        %v315 = vand.u32 2147483647, %v309
        %v316 = vand.u32 2147483647, %v310
        %v317 = vand.u32 2147483647, %v311
        %v318 = vand.u32 2147483647, %v312
        %v319 = vand.u32 2147483647, %v313
        %v320 = vand.u32 2147483647, %v314
        %vm321 = vcmask 1047554
        %v322 = vsel %vm321, %v315, -inf
        %v323 = vsel %vm321, %v318, -inf
        %v324 = vmax.f32 %v322, %v323
        %v325 = vmax.f32 %v316, %v319
        %vm326 = vcmask 1041408
        %v327 = vsel %vm326, %v317, -inf
        %v328 = vsel %vm326, %v320, -inf
        %v329 = vmax.f32 %v327, %v328
        %v330 = vadd.f32 %v324, 0.0014142136
        %v331 = vadd.f32 %v325, 0.0014142136
        %v332 = vadd.f32 %v329, 0.0014142136
        %v333 = vsub.f32 %v293, %v305
        %v334 = vsub.f32 %v294, %v306
        %v335 = vsub.f32 %v295, %v307
        %v336 = vsub.f32 %v296, %v305
        %v337 = vsub.f32 %v297, %v306
        %v338 = vsub.f32 %v298, %v307
        %v339 = vand.u32 2147483647, %v333
        %v340 = vand.u32 2147483647, %v334
        %v341 = vand.u32 2147483647, %v335
        %v342 = vand.u32 2147483647, %v336
        %v343 = vand.u32 2147483647, %v337
        %v344 = vand.u32 2147483647, %v338
        %v345 = vsel %vm321, %v339, -inf
        %v346 = vsel %vm321, %v342, -inf
        %v347 = vmax.f32 %v345, %v346
        %v348 = vmax.f32 %v340, %v343
        %v349 = vsel %vm326, %v341, -inf
        %v350 = vsel %vm326, %v344, -inf
        %v351 = vmax.f32 %v349, %v350
        %v352 = vadd.f32 %v347, 0.0014142136
        %v353 = vadd.f32 %v348, 0.0014142136
        %v354 = vadd.f32 %v351, 0.0014142136
        %vm355 = vcmp.ge.f32.partialorder %v299, 1e-08
        %vm356 = vcmp.ge.f32.partialorder %v300, 1e-08
        %vm357 = vcmp.ge.f32.partialorder %v301, 1e-08
        %vm358 = vcmp.ge.f32.partialorder %v302, 1e-08
        %vm359 = vcmp.ge.f32.partialorder %v303, 1e-08
        %vm360 = vcmp.ge.f32.partialorder %v304, 1e-08
        %v361 = vstv %s308
        %v362 = vsel %vm355, %v361, -1.0
        %v363 = vsel %vm356, %v361, -1.0
        %v364 = vsel %vm357, %v361, -1.0
        %v365 = vsel %vm358, %v361, -1.0
        %v366 = vsel %vm359, %v361, -1.0
        %v367 = vsel %vm360, %v361, -1.0
        %v368 = vadd.f32 %v315, 1.0
        %v369 = vadd.f32 %v316, 1.0
        %v370 = vadd.f32 %v318, 1.0
        %v371 = vadd.f32 %v319, 1.0
        %v372 = vlog2.pop %v368
        %v373 = vmul.f32 %v372, 0.6931472
        %v374 = vlog2.pop %v369
        %v375 = vmul.f32 %v374, 0.6931472
        %v376 = vlog2.pop %v370
        %v377 = vmul.f32 %v376, 0.6931472
        %v378 = vlog2.pop %v371
        %v379 = vmul.f32 %v378, 0.6931472
        %v380 = vadd.f32 %v339, 1.0
        %v381 = vadd.f32 %v340, 1.0
        %v382 = vadd.f32 %v342, 1.0
        %v383 = vadd.f32 %v343, 1.0
        %v384 = vlog2.pop %v380
        %v385 = vmul.f32 %v384, 0.6931472
        %v386 = vlog2.pop %v381
        %v387 = vmul.f32 %v386, 0.6931472
        %v388 = vlog2.pop %v382
        %v389 = vmul.f32 %v388, 0.6931472
        %v390 = vlog2.pop %v383
        %v391 = vmul.f32 %v390, 0.6931472
        %v392 = vmul.f32 %v373, %v385
        %v393 = vmul.f32 %v375, %v387
        %v394 = vmul.f32 %v377, %v389
        %v395 = vmul.f32 %v379, %v391
        %v396 = vmul.f32 %v392, 3.0
        %v397 = vmul.f32 %v393, 3.0
        %v398 = vmul.f32 %v394, 3.0
        %v399 = vmul.f32 %v395, 3.0
        %v400 = vadd.f32 %v396, 1e-08
        %v401 = vadd.f32 %v397, 1e-08
        %v402 = vadd.f32 %v398, 1e-08
        %v403 = vadd.f32 %v399, 1e-08
        %v404 = vrcp.pop %v400
        %v405 = vrcp.pop %v401
        %v406 = vrcp.pop %v402
        %v407 = vrcp.pop %v403
        %vm411 = vcmask 1045504
        %v412 = vrot.slane %v330, 2
        %v413 = vrot.slane %v331, 2
        %v414 = vsel %vm411, %v412, %v413
        %v415 = vrot.slane %v332, 2
        %v416 = vsel %vm411, %v413, %v415
        %vm419 = vcmp.lt.f32.partialorder %v315, %v414
        %vm420 = vcmp.lt.f32.partialorder %v316, %v416
        %vm421 = vcmp.lt.f32.partialorder %v318, %v414
        %vm422 = vcmp.lt.f32.partialorder %v319, %v416
        %v426 = vrot.slane %v352, 2
        %v427 = vrot.slane %v353, 2
        %v428 = vsel %vm411, %v426, %v427
        %v429 = vrot.slane %v354, 2
        %v430 = vsel %vm411, %v427, %v429
        %vm433 = vcmp.lt.f32.partialorder %v339, %v428
        %vm434 = vcmp.lt.f32.partialorder %v340, %v430
        %vm435 = vcmp.lt.f32.partialorder %v342, %v428
        %vm436 = vcmp.lt.f32.partialorder %v343, %v430
        %vm437 = vmand %vm419, %vm433
        %vm438 = vmand %vm420, %vm434
        %vm439 = vmand %vm421, %vm435
        %vm440 = vmand %vm422, %vm436
        %vm441 = vmand %vm437, %vm355
        %vm442 = vmand %vm438, %vm356
        %vm443 = vmand %vm439, %vm358
        %vm444 = vmand %vm440, %vm359
        %v451 = vrot.slane %v299, 2
        %v452 = vrot.slane %v300, 2
        %v453 = vsel %vm411, %v451, %v452
        %v454 = vrot.slane %v301, 2
        %v455 = vsel %vm411, %v452, %v454
        %v456 = vrot.slane %v302, 2
        %v457 = vrot.slane %v303, 2
        %v458 = vsel %vm411, %v456, %v457
        %v459 = vrot.slane %v304, 2
        %v460 = vsel %vm411, %v457, %v459
        %v465 = vsub.f32 %v299, %v453
        %v466 = vsub.f32 %v300, %v455
        %v467 = vsub.f32 %v302, %v458
        %v468 = vsub.f32 %v303, %v460
        %v469 = vand.u32 2147483647, %v465
        %v470 = vand.u32 2147483647, %v466
        %v471 = vand.u32 2147483647, %v467
        %v472 = vand.u32 2147483647, %v468
        %v479 = vrot.slane %v362, 2
        %v480 = vrot.slane %v363, 2
        %v481 = vsel %vm411, %v479, %v480
        %v482 = vrot.slane %v364, 2
        %v483 = vsel %vm411, %v480, %v482
        %v484 = vrot.slane %v365, 2
        %v485 = vrot.slane %v366, 2
        %v486 = vsel %vm411, %v484, %v485
        %v487 = vrot.slane %v367, 2
        %v488 = vsel %vm411, %v485, %v487
        %vm493 = vcmp.lt.f32.partialorder %v469, %v481
        %vm494 = vcmp.lt.f32.partialorder %v470, %v483
        %vm495 = vcmp.lt.f32.partialorder %v471, %v486
        %vm496 = vcmp.lt.f32.partialorder %v472, %v488
        %vm497 = vmand %vm441, %vm493
        %vm498 = vmand %vm442, %vm494
        %vm499 = vmand %vm443, %vm495
        %vm500 = vmand %vm444, %vm496
        %v501 = vsel %vm497, %v404, 0.0
        %v502 = vsel %vm498, %v405, 0.0
        %v503 = vsel %vm499, %v406, 0.0
        %v504 = vsel %vm500, %v407, 0.0
        %v505 = vsub.f32 %v299, %v333
        %v506 = vsub.f32 %v300, %v334
        %v507 = vsub.f32 %v302, %v336
        %v508 = vsub.f32 %v303, %v337
        %v509 = vmul.f32 %v501, %v505
        %v510 = vmul.f32 %v502, %v506
        %v511 = vmul.f32 %v503, %v507
        %v512 = vmul.f32 %v504, %v508
        %v513 = vadd.f32 %v509, %v511
        %v514 = vadd.f32 %v510, %v512
        %v515 = vadd.f32 %v513, 0.0
        %v516 = vadd.f32 %v514, 0.0
        %v517 = vadd.f32 %v501, %v503
        %v518 = vadd.f32 %v502, %v504
        %v519 = vadd.f32 %v517, 0.0
        %v520 = vadd.f32 %v518, 0.0
        %521 = vrot.lane.b32.xlu0 %v293, 1
        %v522 = vpop.permute.xlu0 %521
        %523 = vrot.lane.b32.xlu0 %v294, 1
        %v524 = vpop.permute.xlu0 %523
        %525 = vrot.lane.b32.xlu0 %v296, 1
        %v526 = vpop.permute.xlu0 %525
        %527 = vrot.lane.b32.xlu0 %v297, 1
        %v528 = vpop.permute.xlu0 %527
        %529 = vrot.lane.b32.xlu0 %v299, 1
        %v530 = vpop.permute.xlu0 %529
        %531 = vrot.lane.b32.xlu0 %v300, 1
        %v532 = vpop.permute.xlu0 %531
        %533 = vrot.lane.b32.xlu0 %v302, 1
        %v534 = vpop.permute.xlu0 %533
        %535 = vrot.lane.b32.xlu0 %v303, 1
        %v536 = vpop.permute.xlu0 %535
        %537 = vrot.lane.b32.xlu0 %v305, 1
        %v538 = vpop.permute.xlu0 %537
        %539 = vrot.lane.b32.xlu0 %v306, 1
        %v540 = vpop.permute.xlu0 %539
        %v541 = vsub.f32 %v522, %v530
        %v542 = vsub.f32 %v524, %v532
        %v543 = vsub.f32 %v526, %v534
        %v544 = vsub.f32 %v528, %v536
        %v545 = vand.u32 2147483647, %v541
        %v546 = vand.u32 2147483647, %v542
        %v547 = vand.u32 2147483647, %v543
        %v548 = vand.u32 2147483647, %v544
        %v549 = vsub.f32 %v522, %v538
        %v550 = vsub.f32 %v524, %v540
        %v551 = vsub.f32 %v526, %v538
        %v552 = vsub.f32 %v528, %v540
        %v553 = vand.u32 2147483647, %v549
        %v554 = vand.u32 2147483647, %v550
        %v555 = vand.u32 2147483647, %v551
        %v556 = vand.u32 2147483647, %v552
        %v557 = vadd.f32 %v545, 1.0
        %v558 = vadd.f32 %v546, 1.0
        %v559 = vadd.f32 %v547, 1.0
        %v560 = vadd.f32 %v548, 1.0
        %v561 = vlog2.pop %v557
        %v562 = vmul.f32 %v561, 0.6931472
        %v563 = vlog2.pop %v558
        %v564 = vmul.f32 %v563, 0.6931472
        %v565 = vlog2.pop %v559
        %v566 = vmul.f32 %v565, 0.6931472
        %v567 = vlog2.pop %v560
        %v568 = vmul.f32 %v567, 0.6931472
        %v569 = vadd.f32 %v553, 1.0
        %v570 = vadd.f32 %v554, 1.0
        %v571 = vadd.f32 %v555, 1.0
        %v572 = vadd.f32 %v556, 1.0
        %v573 = vlog2.pop %v569
        %v574 = vmul.f32 %v573, 0.6931472
        %v575 = vlog2.pop %v570
        %v576 = vmul.f32 %v575, 0.6931472
        %v577 = vlog2.pop %v571
        %v578 = vmul.f32 %v577, 0.6931472
        %v579 = vlog2.pop %v572
        %v580 = vmul.f32 %v579, 0.6931472
        %v581 = vmul.f32 %v562, %v574
        %v582 = vmul.f32 %v564, %v576
        %v583 = vmul.f32 %v566, %v578
        %v584 = vmul.f32 %v568, %v580
        %v585 = vmul.f32 %v581, 3.5
        %v586 = vmul.f32 %v582, 3.5
        %v587 = vmul.f32 %v583, 3.5
        %v588 = vmul.f32 %v584, 3.5
        %v589 = vadd.f32 %v585, 1e-08
        %v590 = vadd.f32 %v586, 1e-08
        %v591 = vadd.f32 %v587, 1e-08
        %v592 = vadd.f32 %v588, 1e-08
        %v593 = vrcp.pop %v589
        %v594 = vrcp.pop %v590
        %v595 = vrcp.pop %v591
        %v596 = vrcp.pop %v592
        %vm597 = vcmp.lt.f32.partialorder %v545, %v414
        %vm598 = vcmp.lt.f32.partialorder %v546, %v416
        %vm599 = vcmp.lt.f32.partialorder %v547, %v414
        %vm600 = vcmp.lt.f32.partialorder %v548, %v416
        %vm601 = vcmp.lt.f32.partialorder %v553, %v428
        %vm602 = vcmp.lt.f32.partialorder %v554, %v430
        %vm603 = vcmp.lt.f32.partialorder %v555, %v428
        %vm604 = vcmp.lt.f32.partialorder %v556, %v430
        %vm605 = vmand %vm597, %vm601
        %vm606 = vmand %vm598, %vm602
        %vm607 = vmand %vm599, %vm603
        %vm608 = vmand %vm600, %vm604
        %vm609 = vcmp.ge.f32.partialorder %v530, 1e-08
        %vm610 = vcmp.ge.f32.partialorder %v532, 1e-08
        %vm611 = vcmp.ge.f32.partialorder %v534, 1e-08
        %vm612 = vcmp.ge.f32.partialorder %v536, 1e-08
        %vm613 = vmand %vm605, %vm609
        %vm614 = vmand %vm606, %vm610
        %vm615 = vmand %vm607, %vm611
        %vm616 = vmand %vm608, %vm612
        %v617 = vsub.f32 %v530, %v453
        %v618 = vsub.f32 %v532, %v455
        %v619 = vsub.f32 %v534, %v458
        %v620 = vsub.f32 %v536, %v460
        %v621 = vand.u32 2147483647, %v617
        %v622 = vand.u32 2147483647, %v618
        %v623 = vand.u32 2147483647, %v619
        %v624 = vand.u32 2147483647, %v620
        %vm625 = vcmp.lt.f32.partialorder %v621, %v481
        %vm626 = vcmp.lt.f32.partialorder %v622, %v483
        %vm627 = vcmp.lt.f32.partialorder %v623, %v486
        %vm628 = vcmp.lt.f32.partialorder %v624, %v488
        %vm629 = vmand %vm613, %vm625
        %vm630 = vmand %vm614, %vm626
        %vm631 = vmand %vm615, %vm627
        %vm632 = vmand %vm616, %vm628
        %v633 = vsel %vm629, %v593, 0.0
        %v634 = vsel %vm630, %v594, 0.0
        %v635 = vsel %vm631, %v595, 0.0
        %v636 = vsel %vm632, %v596, 0.0
        %v637 = vsub.f32 %v530, %v549
        %v638 = vsub.f32 %v532, %v550
        %v639 = vsub.f32 %v534, %v551
        %v640 = vsub.f32 %v536, %v552
        %v641 = vmul.f32 %v633, %v637
        %v642 = vmul.f32 %v634, %v638
        %v643 = vmul.f32 %v635, %v639
        %v644 = vmul.f32 %v636, %v640
        %v645 = vadd.f32 %v641, %v643
        %v646 = vadd.f32 %v642, %v644
        %v647 = vadd.f32 %v515, %v645
        %v648 = vadd.f32 %v516, %v646
        %v649 = vadd.f32 %v633, %v635
        %v650 = vadd.f32 %v634, %v636
        %v651 = vadd.f32 %v519, %v649
        %v652 = vadd.f32 %v520, %v650
        %653 = vrot.lane.b32.xlu0 %v293, 127
        %v654 = vpop.permute.xlu0 %653
        %655 = vrot.lane.b32.xlu0 %v294, 127
        %v656 = vpop.permute.xlu0 %655
        %657 = vrot.lane.b32.xlu0 %v296, 127
        %v658 = vpop.permute.xlu0 %657
        %659 = vrot.lane.b32.xlu0 %v297, 127
        %v660 = vpop.permute.xlu0 %659
        %661 = vrot.lane.b32.xlu0 %v299, 127
        %v662 = vpop.permute.xlu0 %661
        %663 = vrot.lane.b32.xlu0 %v300, 127
        %v664 = vpop.permute.xlu0 %663
        %665 = vrot.lane.b32.xlu0 %v302, 127
        %v666 = vpop.permute.xlu0 %665
        %667 = vrot.lane.b32.xlu0 %v303, 127
        %v668 = vpop.permute.xlu0 %667
        %669 = vrot.lane.b32.xlu0 %v305, 127
        %v670 = vpop.permute.xlu0 %669
        %671 = vrot.lane.b32.xlu0 %v306, 127
        %v672 = vpop.permute.xlu0 %671
        %v673 = vsub.f32 %v654, %v662
        %v674 = vsub.f32 %v656, %v664
        %v675 = vsub.f32 %v658, %v666
        %v676 = vsub.f32 %v660, %v668
        %v677 = vand.u32 2147483647, %v673
        %v678 = vand.u32 2147483647, %v674
        %v679 = vand.u32 2147483647, %v675
        %v680 = vand.u32 2147483647, %v676
        %v681 = vsub.f32 %v654, %v670
        %v682 = vsub.f32 %v656, %v672
        %v683 = vsub.f32 %v658, %v670
        %v684 = vsub.f32 %v660, %v672
        %v685 = vand.u32 2147483647, %v681
        %v686 = vand.u32 2147483647, %v682
        %v687 = vand.u32 2147483647, %v683
        %v688 = vand.u32 2147483647, %v684
        %v689 = vadd.f32 %v677, 1.0
        %v690 = vadd.f32 %v678, 1.0
        %v691 = vadd.f32 %v679, 1.0
        %v692 = vadd.f32 %v680, 1.0
        %v693 = vlog2.pop %v689
        %v694 = vmul.f32 %v693, 0.6931472
        %v695 = vlog2.pop %v690
        %v696 = vmul.f32 %v695, 0.6931472
        %v697 = vlog2.pop %v691
        %v698 = vmul.f32 %v697, 0.6931472
        %v699 = vlog2.pop %v692
        %v700 = vmul.f32 %v699, 0.6931472
        %v701 = vadd.f32 %v685, 1.0
        %v702 = vadd.f32 %v686, 1.0
        %v703 = vadd.f32 %v687, 1.0
        %v704 = vadd.f32 %v688, 1.0
        %v705 = vlog2.pop %v701
        %v706 = vmul.f32 %v705, 0.6931472
        %v707 = vlog2.pop %v702
        %v708 = vmul.f32 %v707, 0.6931472
        %v709 = vlog2.pop %v703
        %v710 = vmul.f32 %v709, 0.6931472
        %v711 = vlog2.pop %v704
        %v712 = vmul.f32 %v711, 0.6931472
        %v713 = vmul.f32 %v694, %v706
        %v714 = vmul.f32 %v696, %v708
        %v715 = vmul.f32 %v698, %v710
        %v716 = vmul.f32 %v700, %v712
        %v717 = vmul.f32 %v713, 3.5
        %v718 = vmul.f32 %v714, 3.5
        %v719 = vmul.f32 %v715, 3.5
        %v720 = vmul.f32 %v716, 3.5
        %v721 = vadd.f32 %v717, 1e-08
        %v722 = vadd.f32 %v718, 1e-08
        %v723 = vadd.f32 %v719, 1e-08
        %v724 = vadd.f32 %v720, 1e-08
        %v725 = vrcp.pop %v721
        %v726 = vrcp.pop %v722
        %v727 = vrcp.pop %v723
        %v728 = vrcp.pop %v724
        %vm729 = vcmp.lt.f32.partialorder %v677, %v414
        %vm730 = vcmp.lt.f32.partialorder %v678, %v416
        %vm731 = vcmp.lt.f32.partialorder %v679, %v414
        %vm732 = vcmp.lt.f32.partialorder %v680, %v416
        %vm733 = vcmp.lt.f32.partialorder %v685, %v428
        %vm734 = vcmp.lt.f32.partialorder %v686, %v430
        %vm735 = vcmp.lt.f32.partialorder %v687, %v428
        %vm736 = vcmp.lt.f32.partialorder %v688, %v430
        %vm737 = vmand %vm729, %vm733
        %vm738 = vmand %vm730, %vm734
        %vm739 = vmand %vm731, %vm735
        %vm740 = vmand %vm732, %vm736
        %vm741 = vcmp.ge.f32.partialorder %v662, 1e-08
        %vm742 = vcmp.ge.f32.partialorder %v664, 1e-08
        %vm743 = vcmp.ge.f32.partialorder %v666, 1e-08
        %vm744 = vcmp.ge.f32.partialorder %v668, 1e-08
        %vm745 = vmand %vm737, %vm741
        %vm746 = vmand %vm738, %vm742
        %vm747 = vmand %vm739, %vm743
        %vm748 = vmand %vm740, %vm744
        %v749 = vsub.f32 %v662, %v453
        %v750 = vsub.f32 %v664, %v455
        %v751 = vsub.f32 %v666, %v458
        %v752 = vsub.f32 %v668, %v460
        %v753 = vand.u32 2147483647, %v749
        %v754 = vand.u32 2147483647, %v750
        %v755 = vand.u32 2147483647, %v751
        %v756 = vand.u32 2147483647, %v752
        %vm757 = vcmp.lt.f32.partialorder %v753, %v481
        %vm758 = vcmp.lt.f32.partialorder %v754, %v483
        %vm759 = vcmp.lt.f32.partialorder %v755, %v486
        %vm760 = vcmp.lt.f32.partialorder %v756, %v488
        %vm761 = vmand %vm745, %vm757
        %vm762 = vmand %vm746, %vm758
        %vm763 = vmand %vm747, %vm759
        %vm764 = vmand %vm748, %vm760
        %v765 = vsel %vm761, %v725, 0.0
        %v766 = vsel %vm762, %v726, 0.0
        %v767 = vsel %vm763, %v727, 0.0
        %v768 = vsel %vm764, %v728, 0.0
        %v769 = vsub.f32 %v662, %v681
        %v770 = vsub.f32 %v664, %v682
        %v771 = vsub.f32 %v666, %v683
        %v772 = vsub.f32 %v668, %v684
        %v773 = vmul.f32 %v765, %v769
        %v774 = vmul.f32 %v766, %v770
        %v775 = vmul.f32 %v767, %v771
        %v776 = vmul.f32 %v768, %v772
        %v777 = vadd.f32 %v773, %v775
        %v778 = vadd.f32 %v774, %v776
        %v779 = vadd.f32 %v647, %v777
        %v780 = vadd.f32 %v648, %v778
        %v781 = vadd.f32 %v765, %v767
        %v782 = vadd.f32 %v766, %v768
        %v783 = vadd.f32 %v651, %v781
        %v784 = vadd.f32 %v652, %v782
        %785 = vrot.lane.b32.xlu0 %v293, 2
        %v786 = vpop.permute.xlu0 %785
        %787 = vrot.lane.b32.xlu0 %v294, 2
        %v788 = vpop.permute.xlu0 %787
        %789 = vrot.lane.b32.xlu0 %v296, 2
        %v790 = vpop.permute.xlu0 %789
        %791 = vrot.lane.b32.xlu0 %v297, 2
        %v792 = vpop.permute.xlu0 %791
        %793 = vrot.lane.b32.xlu0 %v299, 2
        %v794 = vpop.permute.xlu0 %793
        %795 = vrot.lane.b32.xlu0 %v300, 2
        %v796 = vpop.permute.xlu0 %795
        %797 = vrot.lane.b32.xlu0 %v302, 2
        %v798 = vpop.permute.xlu0 %797
        %799 = vrot.lane.b32.xlu0 %v303, 2
        %v800 = vpop.permute.xlu0 %799
        %801 = vrot.lane.b32.xlu0 %v305, 2
        %v802 = vpop.permute.xlu0 %801
        %803 = vrot.lane.b32.xlu0 %v306, 2
        %v804 = vpop.permute.xlu0 %803
        %v805 = vsub.f32 %v786, %v794
        %v806 = vsub.f32 %v788, %v796
        %v807 = vsub.f32 %v790, %v798
        %v808 = vsub.f32 %v792, %v800
        %v809 = vand.u32 2147483647, %v805
        %v810 = vand.u32 2147483647, %v806
        %v811 = vand.u32 2147483647, %v807
        %v812 = vand.u32 2147483647, %v808
        %v813 = vsub.f32 %v786, %v802
        %v814 = vsub.f32 %v788, %v804
        %v815 = vsub.f32 %v790, %v802
        %v816 = vsub.f32 %v792, %v804
        %v817 = vand.u32 2147483647, %v813
        %v818 = vand.u32 2147483647, %v814
        %v819 = vand.u32 2147483647, %v815
        %v820 = vand.u32 2147483647, %v816
        %v821 = vadd.f32 %v809, 1.0
        %v822 = vadd.f32 %v810, 1.0
        %v823 = vadd.f32 %v811, 1.0
        %v824 = vadd.f32 %v812, 1.0
        %v825 = vlog2.pop %v821
        %v826 = vmul.f32 %v825, 0.6931472
        %v827 = vlog2.pop %v822
        %v828 = vmul.f32 %v827, 0.6931472
        %v829 = vlog2.pop %v823
        %v830 = vmul.f32 %v829, 0.6931472
        %v831 = vlog2.pop %v824
        %v832 = vmul.f32 %v831, 0.6931472
        %v833 = vadd.f32 %v817, 1.0
        %v834 = vadd.f32 %v818, 1.0
        %v835 = vadd.f32 %v819, 1.0
        %v836 = vadd.f32 %v820, 1.0
        %v837 = vlog2.pop %v833
        %v838 = vmul.f32 %v837, 0.6931472
        %v839 = vlog2.pop %v834
        %v840 = vmul.f32 %v839, 0.6931472
        %v841 = vlog2.pop %v835
        %v842 = vmul.f32 %v841, 0.6931472
        %v843 = vlog2.pop %v836
        %v844 = vmul.f32 %v843, 0.6931472
        %v845 = vmul.f32 %v826, %v838
        %v846 = vmul.f32 %v828, %v840
        %v847 = vmul.f32 %v830, %v842
        %v848 = vmul.f32 %v832, %v844
        %v849 = vmul.f32 %v845, 5.0
        %v850 = vmul.f32 %v846, 5.0
        %v851 = vmul.f32 %v847, 5.0
        %v852 = vmul.f32 %v848, 5.0
        %v853 = vadd.f32 %v849, 1e-08
        %v854 = vadd.f32 %v850, 1e-08
        %v855 = vadd.f32 %v851, 1e-08
        %v856 = vadd.f32 %v852, 1e-08
        %v857 = vrcp.pop %v853
        %v858 = vrcp.pop %v854
        %v859 = vrcp.pop %v855
        %v860 = vrcp.pop %v856
        %vm861 = vcmp.lt.f32.partialorder %v809, %v414
        %vm862 = vcmp.lt.f32.partialorder %v810, %v416
        %vm863 = vcmp.lt.f32.partialorder %v811, %v414
        %vm864 = vcmp.lt.f32.partialorder %v812, %v416
        %vm865 = vcmp.lt.f32.partialorder %v817, %v428
        %vm866 = vcmp.lt.f32.partialorder %v818, %v430
        %vm867 = vcmp.lt.f32.partialorder %v819, %v428
        %vm868 = vcmp.lt.f32.partialorder %v820, %v430
        %vm869 = vmand %vm861, %vm865
        %vm870 = vmand %vm862, %vm866
        %vm871 = vmand %vm863, %vm867
        %vm872 = vmand %vm864, %vm868
        %vm873 = vcmp.ge.f32.partialorder %v794, 1e-08
        %vm874 = vcmp.ge.f32.partialorder %v796, 1e-08
        %vm875 = vcmp.ge.f32.partialorder %v798, 1e-08
        %vm876 = vcmp.ge.f32.partialorder %v800, 1e-08
        %vm877 = vmand %vm869, %vm873
        %vm878 = vmand %vm870, %vm874
        %vm879 = vmand %vm871, %vm875
        %vm880 = vmand %vm872, %vm876
        %v881 = vsub.f32 %v794, %v453
        %v882 = vsub.f32 %v796, %v455
        %v883 = vsub.f32 %v798, %v458
        %v884 = vsub.f32 %v800, %v460
        %v885 = vand.u32 2147483647, %v881
        %v886 = vand.u32 2147483647, %v882
        %v887 = vand.u32 2147483647, %v883
        %v888 = vand.u32 2147483647, %v884
        %vm889 = vcmp.lt.f32.partialorder %v885, %v481
        %vm890 = vcmp.lt.f32.partialorder %v886, %v483
        %vm891 = vcmp.lt.f32.partialorder %v887, %v486
        %vm892 = vcmp.lt.f32.partialorder %v888, %v488
        %vm893 = vmand %vm877, %vm889
        %vm894 = vmand %vm878, %vm890
        %vm895 = vmand %vm879, %vm891
        %vm896 = vmand %vm880, %vm892
        %v897 = vsel %vm893, %v857, 0.0
        %v898 = vsel %vm894, %v858, 0.0
        %v899 = vsel %vm895, %v859, 0.0
        %v900 = vsel %vm896, %v860, 0.0
        %v901 = vsub.f32 %v794, %v813
        %v902 = vsub.f32 %v796, %v814
        %v903 = vsub.f32 %v798, %v815
        %v904 = vsub.f32 %v800, %v816
        %v905 = vmul.f32 %v897, %v901
        %v906 = vmul.f32 %v898, %v902
        %v907 = vmul.f32 %v899, %v903
        %v908 = vmul.f32 %v900, %v904
        %v909 = vadd.f32 %v905, %v907
        %v910 = vadd.f32 %v906, %v908
        %v911 = vadd.f32 %v779, %v909
        %v912 = vadd.f32 %v780, %v910
        %v913 = vadd.f32 %v897, %v899
        %v914 = vadd.f32 %v898, %v900
        %v915 = vadd.f32 %v783, %v913
        %v916 = vadd.f32 %v784, %v914
        %917 = vrot.lane.b32.xlu0 %v293, 126
        %v918 = vpop.permute.xlu0 %917
        %919 = vrot.lane.b32.xlu0 %v294, 126
        %v920 = vpop.permute.xlu0 %919
        %921 = vrot.lane.b32.xlu0 %v296, 126
        %v922 = vpop.permute.xlu0 %921
        %923 = vrot.lane.b32.xlu0 %v297, 126
        %v924 = vpop.permute.xlu0 %923
        %925 = vrot.lane.b32.xlu0 %v299, 126
        %v926 = vpop.permute.xlu0 %925
        %927 = vrot.lane.b32.xlu0 %v300, 126
        %v928 = vpop.permute.xlu0 %927
        %929 = vrot.lane.b32.xlu0 %v302, 126
        %v930 = vpop.permute.xlu0 %929
        %931 = vrot.lane.b32.xlu0 %v303, 126
        %v932 = vpop.permute.xlu0 %931
        %933 = vrot.lane.b32.xlu0 %v305, 126
        %v934 = vpop.permute.xlu0 %933
        %935 = vrot.lane.b32.xlu0 %v306, 126
        %v936 = vpop.permute.xlu0 %935
        %v937 = vsub.f32 %v918, %v926
        %v938 = vsub.f32 %v920, %v928
        %v939 = vsub.f32 %v922, %v930
        %v940 = vsub.f32 %v924, %v932
        %v941 = vand.u32 2147483647, %v937
        %v942 = vand.u32 2147483647, %v938
        %v943 = vand.u32 2147483647, %v939
        %v944 = vand.u32 2147483647, %v940
        %v945 = vsub.f32 %v918, %v934
        %v946 = vsub.f32 %v920, %v936
        %v947 = vsub.f32 %v922, %v934
        %v948 = vsub.f32 %v924, %v936
        %v949 = vand.u32 2147483647, %v945
        %v950 = vand.u32 2147483647, %v946
        %v951 = vand.u32 2147483647, %v947
        %v952 = vand.u32 2147483647, %v948
        %v953 = vadd.f32 %v941, 1.0
        %v954 = vadd.f32 %v942, 1.0
        %v955 = vadd.f32 %v943, 1.0
        %v956 = vadd.f32 %v944, 1.0
        %v957 = vlog2.pop %v953
        %v958 = vmul.f32 %v957, 0.6931472
        %v959 = vlog2.pop %v954
        %v960 = vmul.f32 %v959, 0.6931472
        %v961 = vlog2.pop %v955
        %v962 = vmul.f32 %v961, 0.6931472
        %v963 = vlog2.pop %v956
        %v964 = vmul.f32 %v963, 0.6931472
        %v965 = vadd.f32 %v949, 1.0
        %v966 = vadd.f32 %v950, 1.0
        %v967 = vadd.f32 %v951, 1.0
        %v968 = vadd.f32 %v952, 1.0
        %v969 = vlog2.pop %v965
        %v970 = vmul.f32 %v969, 0.6931472
        %v971 = vlog2.pop %v966
        %v972 = vmul.f32 %v971, 0.6931472
        %v973 = vlog2.pop %v967
        %v974 = vmul.f32 %v973, 0.6931472
        %v975 = vlog2.pop %v968
        %v976 = vmul.f32 %v975, 0.6931472
        %v977 = vmul.f32 %v958, %v970
        %v978 = vmul.f32 %v960, %v972
        %v979 = vmul.f32 %v962, %v974
        %v980 = vmul.f32 %v964, %v976
        %v981 = vmul.f32 %v977, 5.0
        %v982 = vmul.f32 %v978, 5.0
        %v983 = vmul.f32 %v979, 5.0
        %v984 = vmul.f32 %v980, 5.0
        %v985 = vadd.f32 %v981, 1e-08
        %v986 = vadd.f32 %v982, 1e-08
        %v987 = vadd.f32 %v983, 1e-08
        %v988 = vadd.f32 %v984, 1e-08
        %v989 = vrcp.pop %v985
        %v990 = vrcp.pop %v986
        %v991 = vrcp.pop %v987
        %v992 = vrcp.pop %v988
        %vm993 = vcmp.lt.f32.partialorder %v941, %v414
        %vm994 = vcmp.lt.f32.partialorder %v942, %v416
        %vm995 = vcmp.lt.f32.partialorder %v943, %v414
        %vm996 = vcmp.lt.f32.partialorder %v944, %v416
        %vm997 = vcmp.lt.f32.partialorder %v949, %v428
        %vm998 = vcmp.lt.f32.partialorder %v950, %v430
        %vm999 = vcmp.lt.f32.partialorder %v951, %v428
        %vm1000 = vcmp.lt.f32.partialorder %v952, %v430
        %vm1001 = vmand %vm993, %vm997
        %vm1002 = vmand %vm994, %vm998
        %vm1003 = vmand %vm995, %vm999
        %vm1004 = vmand %vm996, %vm1000
        %vm1005 = vcmp.ge.f32.partialorder %v926, 1e-08
        %vm1006 = vcmp.ge.f32.partialorder %v928, 1e-08
        %vm1007 = vcmp.ge.f32.partialorder %v930, 1e-08
        %vm1008 = vcmp.ge.f32.partialorder %v932, 1e-08
        %vm1009 = vmand %vm1001, %vm1005
        %vm1010 = vmand %vm1002, %vm1006
        %vm1011 = vmand %vm1003, %vm1007
        %vm1012 = vmand %vm1004, %vm1008
        %v1013 = vsub.f32 %v926, %v453
        %v1014 = vsub.f32 %v928, %v455
        %v1015 = vsub.f32 %v930, %v458
        %v1016 = vsub.f32 %v932, %v460
        %v1017 = vand.u32 2147483647, %v1013
        %v1018 = vand.u32 2147483647, %v1014
        %v1019 = vand.u32 2147483647, %v1015
        %v1020 = vand.u32 2147483647, %v1016
        %vm1021 = vcmp.lt.f32.partialorder %v1017, %v481
        %vm1022 = vcmp.lt.f32.partialorder %v1018, %v483
        %vm1023 = vcmp.lt.f32.partialorder %v1019, %v486
        %vm1024 = vcmp.lt.f32.partialorder %v1020, %v488
        %vm1025 = vmand %vm1009, %vm1021
        %vm1026 = vmand %vm1010, %vm1022
        %vm1027 = vmand %vm1011, %vm1023
        %vm1028 = vmand %vm1012, %vm1024
        %v1029 = vsel %vm1025, %v989, 0.0
        %v1030 = vsel %vm1026, %v990, 0.0
        %v1031 = vsel %vm1027, %v991, 0.0
        %v1032 = vsel %vm1028, %v992, 0.0
        %v1033 = vsub.f32 %v926, %v945
        %v1034 = vsub.f32 %v928, %v946
        %v1035 = vsub.f32 %v930, %v947
        %v1036 = vsub.f32 %v932, %v948
        %v1037 = vmul.f32 %v1029, %v1033
        %v1038 = vmul.f32 %v1030, %v1034
        %v1039 = vmul.f32 %v1031, %v1035
        %v1040 = vmul.f32 %v1032, %v1036
        %v1041 = vadd.f32 %v1037, %v1039
        %v1042 = vadd.f32 %v1038, %v1040
        %v1043 = vadd.f32 %v911, %v1041
        %v1044 = vadd.f32 %v912, %v1042
        %v1045 = vadd.f32 %v1029, %v1031
        %v1046 = vadd.f32 %v1030, %v1032
        %v1047 = vadd.f32 %v915, %v1045
        %v1048 = vadd.f32 %v916, %v1046
        %v1049 = vadd.f32 %v317, 1.0
        %v1050 = vadd.f32 %v320, 1.0
        %v1051 = vlog2.pop %v1049
        %v1052 = vmul.f32 %v1051, 0.6931472
        %v1053 = vlog2.pop %v1050
        %v1054 = vmul.f32 %v1053, 0.6931472
        %v1055 = vadd.f32 %v341, 1.0
        %v1056 = vadd.f32 %v344, 1.0
        %v1057 = vlog2.pop %v1055
        %v1058 = vmul.f32 %v1057, 0.6931472
        %v1059 = vlog2.pop %v1056
        %v1060 = vmul.f32 %v1059, 0.6931472
        %v1061 = vmul.f32 %v1052, %v1058
        %v1062 = vmul.f32 %v1054, %v1060
        %v1063 = vmul.f32 %v392, 1.5
        %v1064 = vmul.f32 %v393, 1.5
        %v1065 = vmul.f32 %v1061, 1.5
        %v1066 = vmul.f32 %v394, 1.5
        %v1067 = vmul.f32 %v395, 1.5
        %v1068 = vmul.f32 %v1062, 1.5
        %v1069 = vadd.f32 %v1063, 1e-08
        %v1070 = vadd.f32 %v1064, 1e-08
        %v1071 = vadd.f32 %v1065, 1e-08
        %v1072 = vadd.f32 %v1066, 1e-08
        %v1073 = vadd.f32 %v1067, 1e-08
        %v1074 = vadd.f32 %v1068, 1e-08
        %v1075 = vrcp.pop %v1069
        %v1076 = vrcp.pop %v1070
        %v1077 = vrcp.pop %v1071
        %v1078 = vrcp.pop %v1072
        %v1079 = vrcp.pop %v1073
        %v1080 = vrcp.pop %v1074
        %vm1081 = vcmask 1046528
        %v1082 = vrot.slane %v330, 1
        %v1083 = vrot.slane %v331, 1
        %v1084 = vsel %vm1081, %v1082, %v1083
        %v1085 = vrot.slane %v332, 1
        %v1086 = vsel %vm1081, %v1083, %v1085
        %vm1090 = vcmp.lt.f32.partialorder %v315, %v1084
        %vm1091 = vcmp.lt.f32.partialorder %v316, %v1086
        %vm1092 = vcmp.lt.f32.partialorder %v317, %v1085
        %vm1093 = vcmp.lt.f32.partialorder %v318, %v1084
        %vm1094 = vcmp.lt.f32.partialorder %v319, %v1086
        %vm1095 = vcmp.lt.f32.partialorder %v320, %v1085
        %v1096 = vrot.slane %v352, 1
        %v1097 = vrot.slane %v353, 1
        %v1098 = vsel %vm1081, %v1096, %v1097
        %v1099 = vrot.slane %v354, 1
        %v1100 = vsel %vm1081, %v1097, %v1099
        %vm1104 = vcmp.lt.f32.partialorder %v339, %v1098
        %vm1105 = vcmp.lt.f32.partialorder %v340, %v1100
        %vm1106 = vcmp.lt.f32.partialorder %v341, %v1099
        %vm1107 = vcmp.lt.f32.partialorder %v342, %v1098
        %vm1108 = vcmp.lt.f32.partialorder %v343, %v1100
        %vm1109 = vcmp.lt.f32.partialorder %v344, %v1099
        %vm1110 = vmand %vm1090, %vm1104
        %vm1111 = vmand %vm1091, %vm1105
        %vm1112 = vmand %vm1092, %vm1106
        %vm1113 = vmand %vm1093, %vm1107
        %vm1114 = vmand %vm1094, %vm1108
        %vm1115 = vmand %vm1095, %vm1109
        %vm1116 = vmand %vm1110, %vm355
        %vm1117 = vmand %vm1111, %vm356
        %vm1118 = vmand %vm1112, %vm357
        %vm1119 = vmand %vm1113, %vm358
        %vm1120 = vmand %vm1114, %vm359
        %vm1121 = vmand %vm1115, %vm360
        %v1122 = vrot.slane %v299, 1
        %v1123 = vrot.slane %v300, 1
        %v1124 = vsel %vm1081, %v1122, %v1123
        %v1125 = vrot.slane %v301, 1
        %v1126 = vsel %vm1081, %v1123, %v1125
        %v1127 = vrot.slane %v302, 1
        %v1128 = vrot.slane %v303, 1
        %v1129 = vsel %vm1081, %v1127, %v1128
        %v1130 = vrot.slane %v304, 1
        %v1131 = vsel %vm1081, %v1128, %v1130
        %v1138 = vsub.f32 %v299, %v1124
        %v1139 = vsub.f32 %v300, %v1126
        %v1140 = vsub.f32 %v301, %v1125
        %v1141 = vsub.f32 %v302, %v1129
        %v1142 = vsub.f32 %v303, %v1131
        %v1143 = vsub.f32 %v304, %v1130
        %v1144 = vand.u32 2147483647, %v1138
        %v1145 = vand.u32 2147483647, %v1139
        %v1146 = vand.u32 2147483647, %v1140
        %v1147 = vand.u32 2147483647, %v1141
        %v1148 = vand.u32 2147483647, %v1142
        %v1149 = vand.u32 2147483647, %v1143
        %v1150 = vrot.slane %v362, 1
        %v1151 = vrot.slane %v363, 1
        %v1152 = vsel %vm1081, %v1150, %v1151
        %v1153 = vrot.slane %v364, 1
        %v1154 = vsel %vm1081, %v1151, %v1153
        %v1155 = vrot.slane %v365, 1
        %v1156 = vrot.slane %v366, 1
        %v1157 = vsel %vm1081, %v1155, %v1156
        %v1158 = vrot.slane %v367, 1
        %v1159 = vsel %vm1081, %v1156, %v1158
        %vm1166 = vcmp.lt.f32.partialorder %v1144, %v1152
        %vm1167 = vcmp.lt.f32.partialorder %v1145, %v1154
        %vm1168 = vcmp.lt.f32.partialorder %v1146, %v1153
        %vm1169 = vcmp.lt.f32.partialorder %v1147, %v1157
        %vm1170 = vcmp.lt.f32.partialorder %v1148, %v1159
        %vm1171 = vcmp.lt.f32.partialorder %v1149, %v1158
        %vm1172 = vmand %vm1116, %vm1166
        %vm1173 = vmand %vm1117, %vm1167
        %vm1174 = vmand %vm1118, %vm1168
        %vm1175 = vmand %vm1119, %vm1169
        %vm1176 = vmand %vm1120, %vm1170
        %vm1177 = vmand %vm1121, %vm1171
        %v1178 = vsel %vm1172, %v1075, 0.0
        %v1179 = vsel %vm1173, %v1076, 0.0
        %v1180 = vsel %vm1174, %v1077, 0.0
        %v1181 = vsel %vm1175, %v1078, 0.0
        %v1182 = vsel %vm1176, %v1079, 0.0
        %v1183 = vsel %vm1177, %v1080, 0.0
        %v1184 = vsub.f32 %v301, %v335
        %v1185 = vsub.f32 %v304, %v338
        %v1186 = vmul.f32 %v1178, %v505
        %v1187 = vmul.f32 %v1179, %v506
        %v1188 = vmul.f32 %v1180, %v1184
        %v1189 = vmul.f32 %v1181, %v507
        %v1190 = vmul.f32 %v1182, %v508
        %v1191 = vmul.f32 %v1183, %v1185
        %vm1192 = vcmask 1047553
        %v1193 = vsel %vm1192, %v1186, 0.0
        %v1194 = vsel %vm1192, %v1189, 0.0
        %v1195 = vadd.f32 %v1193, %v1194
        %v1196 = vadd.f32 %v1187, %v1190
        %vm1197 = vcmask 1040384
        %v1198 = vsel %vm1197, %v1188, 0.0
        %v1199 = vsel %vm1197, %v1191, 0.0
        %v1200 = vadd.f32 %v1198, %v1199
        %v1204 = vrot.slane %v1195, 1
        %v1205 = vrot.slane %v1196, 1
        %v1206 = vsel %vm1081, %v1204, %v1205
        %v1207 = vrot.slane %v1200, 1
        %v1208 = vsel %vm1081, %v1205, %v1207
        %v1211 = vadd.f32 %v1043, %v1206
        %v1212 = vadd.f32 %v1044, %v1208
        %v1213 = vsel %vm1192, %v1178, 0.0
        %v1214 = vsel %vm1192, %v1181, 0.0
        %v1215 = vadd.f32 %v1213, %v1214
        %v1216 = vadd.f32 %v1179, %v1182
        %v1217 = vsel %vm1197, %v1180, 0.0
        %v1218 = vsel %vm1197, %v1183, 0.0
        %v1219 = vadd.f32 %v1217, %v1218
        %v1223 = vrot.slane %v1215, 1
        %v1224 = vrot.slane %v1216, 1
        %v1225 = vsel %vm1081, %v1223, %v1224
        %v1226 = vrot.slane %v1219, 1
        %v1227 = vsel %vm1081, %v1224, %v1226
        %v1230 = vadd.f32 %v1047, %v1225
        %v1231 = vadd.f32 %v1048, %v1227
        %v1238 = vrot.slane %v293, 1
        %v1239 = vrot.slane %v294, 1
        %v1240 = vsel %vm1081, %v1238, %v1239
        %v1241 = vrot.slane %v295, 1
        %v1242 = vsel %vm1081, %v1239, %v1241
        %v1243 = vrot.slane %v296, 1
        %v1244 = vrot.slane %v297, 1
        %v1245 = vsel %vm1081, %v1243, %v1244
        %v1246 = vrot.slane %v298, 1
        %v1247 = vsel %vm1081, %v1244, %v1246
        %1252 = vrot.lane.b32.xlu0 %v1240, 1
        %v1253 = vpop.permute.xlu0 %1252
        %1254 = vrot.lane.b32.xlu0 %v1242, 1
        %v1255 = vpop.permute.xlu0 %1254
        %1256 = vrot.lane.b32.xlu0 %v1245, 1
        %v1257 = vpop.permute.xlu0 %1256
        %1258 = vrot.lane.b32.xlu0 %v1247, 1
        %v1259 = vpop.permute.xlu0 %1258
        %1260 = vrot.lane.b32.xlu0 %v1124, 1
        %v1261 = vpop.permute.xlu0 %1260
        %1262 = vrot.lane.b32.xlu0 %v1126, 1
        %v1263 = vpop.permute.xlu0 %1262
        %1264 = vrot.lane.b32.xlu0 %v1129, 1
        %v1265 = vpop.permute.xlu0 %1264
        %1266 = vrot.lane.b32.xlu0 %v1131, 1
        %v1267 = vpop.permute.xlu0 %1266
        %v1271 = vrot.slane %v305, 1
        %v1272 = vrot.slane %v306, 1
        %v1273 = vsel %vm1081, %v1271, %v1272
        %v1274 = vrot.slane %v307, 1
        %v1275 = vsel %vm1081, %v1272, %v1274
        %1278 = vrot.lane.b32.xlu0 %v1273, 1
        %v1279 = vpop.permute.xlu0 %1278
        %1280 = vrot.lane.b32.xlu0 %v1275, 1
        %v1281 = vpop.permute.xlu0 %1280
        %v1282 = vsub.f32 %v1253, %v1261
        %v1283 = vsub.f32 %v1255, %v1263
        %v1284 = vsub.f32 %v1257, %v1265
        %v1285 = vsub.f32 %v1259, %v1267
        %v1286 = vand.u32 2147483647, %v1282
        %v1287 = vand.u32 2147483647, %v1283
        %v1288 = vand.u32 2147483647, %v1284
        %v1289 = vand.u32 2147483647, %v1285
        %v1290 = vsub.f32 %v1253, %v1279
        %v1291 = vsub.f32 %v1255, %v1281
        %v1292 = vsub.f32 %v1257, %v1279
        %v1293 = vsub.f32 %v1259, %v1281
        %v1294 = vand.u32 2147483647, %v1290
        %v1295 = vand.u32 2147483647, %v1291
        %v1296 = vand.u32 2147483647, %v1292
        %v1297 = vand.u32 2147483647, %v1293
        %v1298 = vadd.f32 %v1286, 1.0
        %v1299 = vadd.f32 %v1287, 1.0
        %v1300 = vadd.f32 %v1288, 1.0
        %v1301 = vadd.f32 %v1289, 1.0
        %v1302 = vlog2.pop %v1298
        %v1303 = vmul.f32 %v1302, 0.6931472
        %v1304 = vlog2.pop %v1299
        %v1305 = vmul.f32 %v1304, 0.6931472
        %v1306 = vlog2.pop %v1300
        %v1307 = vmul.f32 %v1306, 0.6931472
        %v1308 = vlog2.pop %v1301
        %v1309 = vmul.f32 %v1308, 0.6931472
        %v1310 = vadd.f32 %v1294, 1.0
        %v1311 = vadd.f32 %v1295, 1.0
        %v1312 = vadd.f32 %v1296, 1.0
        %v1313 = vadd.f32 %v1297, 1.0
        %v1314 = vlog2.pop %v1310
        %v1315 = vmul.f32 %v1314, 0.6931472
        %v1316 = vlog2.pop %v1311
        %v1317 = vmul.f32 %v1316, 0.6931472
        %v1318 = vlog2.pop %v1312
        %v1319 = vmul.f32 %v1318, 0.6931472
        %v1320 = vlog2.pop %v1313
        %v1321 = vmul.f32 %v1320, 0.6931472
        %v1322 = vmul.f32 %v1303, %v1315
        %v1323 = vmul.f32 %v1305, %v1317
        %v1324 = vmul.f32 %v1307, %v1319
        %v1325 = vmul.f32 %v1309, %v1321
        %v1326 = vmul.f32 %v1322, 2.0
        %v1327 = vmul.f32 %v1323, 2.0
        %v1328 = vmul.f32 %v1324, 2.0
        %v1329 = vmul.f32 %v1325, 2.0
        %v1330 = vadd.f32 %v1326, 1e-08
        %v1331 = vadd.f32 %v1327, 1e-08
        %v1332 = vadd.f32 %v1328, 1e-08
        %v1333 = vadd.f32 %v1329, 1e-08
        %v1334 = vrcp.pop %v1330
        %v1335 = vrcp.pop %v1331
        %v1336 = vrcp.pop %v1332
        %v1337 = vrcp.pop %v1333
        %vm1338 = vcmp.lt.f32.partialorder %v1286, %v414
        %vm1339 = vcmp.lt.f32.partialorder %v1287, %v416
        %vm1340 = vcmp.lt.f32.partialorder %v1288, %v414
        %vm1341 = vcmp.lt.f32.partialorder %v1289, %v416
        %vm1342 = vcmp.lt.f32.partialorder %v1294, %v428
        %vm1343 = vcmp.lt.f32.partialorder %v1295, %v430
        %vm1344 = vcmp.lt.f32.partialorder %v1296, %v428
        %vm1345 = vcmp.lt.f32.partialorder %v1297, %v430
        %vm1346 = vmand %vm1338, %vm1342
        %vm1347 = vmand %vm1339, %vm1343
        %vm1348 = vmand %vm1340, %vm1344
        %vm1349 = vmand %vm1341, %vm1345
        %vm1350 = vcmp.ge.f32.partialorder %v1261, 1e-08
        %vm1351 = vcmp.ge.f32.partialorder %v1263, 1e-08
        %vm1352 = vcmp.ge.f32.partialorder %v1265, 1e-08
        %vm1353 = vcmp.ge.f32.partialorder %v1267, 1e-08
        %vm1354 = vmand %vm1346, %vm1350
        %vm1355 = vmand %vm1347, %vm1351
        %vm1356 = vmand %vm1348, %vm1352
        %vm1357 = vmand %vm1349, %vm1353
        %v1358 = vsub.f32 %v1261, %v453
        %v1359 = vsub.f32 %v1263, %v455
        %v1360 = vsub.f32 %v1265, %v458
        %v1361 = vsub.f32 %v1267, %v460
        %v1362 = vand.u32 2147483647, %v1358
        %v1363 = vand.u32 2147483647, %v1359
        %v1364 = vand.u32 2147483647, %v1360
        %v1365 = vand.u32 2147483647, %v1361
        %vm1366 = vcmp.lt.f32.partialorder %v1362, %v481
        %vm1367 = vcmp.lt.f32.partialorder %v1363, %v483
        %vm1368 = vcmp.lt.f32.partialorder %v1364, %v486
        %vm1369 = vcmp.lt.f32.partialorder %v1365, %v488
        %vm1370 = vmand %vm1354, %vm1366
        %vm1371 = vmand %vm1355, %vm1367
        %vm1372 = vmand %vm1356, %vm1368
        %vm1373 = vmand %vm1357, %vm1369
        %v1374 = vsel %vm1370, %v1334, 0.0
        %v1375 = vsel %vm1371, %v1335, 0.0
        %v1376 = vsel %vm1372, %v1336, 0.0
        %v1377 = vsel %vm1373, %v1337, 0.0
        %v1378 = vsub.f32 %v1261, %v1290
        %v1379 = vsub.f32 %v1263, %v1291
        %v1380 = vsub.f32 %v1265, %v1292
        %v1381 = vsub.f32 %v1267, %v1293
        %v1382 = vmul.f32 %v1374, %v1378
        %v1383 = vmul.f32 %v1375, %v1379
        %v1384 = vmul.f32 %v1376, %v1380
        %v1385 = vmul.f32 %v1377, %v1381
        %v1386 = vadd.f32 %v1382, %v1384
        %v1387 = vadd.f32 %v1383, %v1385
        %v1388 = vadd.f32 %v1211, %v1386
        %v1389 = vadd.f32 %v1212, %v1387
        %v1390 = vadd.f32 %v1374, %v1376
        %v1391 = vadd.f32 %v1375, %v1377
        %v1392 = vadd.f32 %v1230, %v1390
        %v1393 = vadd.f32 %v1231, %v1391
        %1394 = vrot.lane.b32.xlu0 %v1240, 127
        %v1395 = vpop.permute.xlu0 %1394
        %1396 = vrot.lane.b32.xlu0 %v1242, 127
        %v1397 = vpop.permute.xlu0 %1396
        %1398 = vrot.lane.b32.xlu0 %v1245, 127
        %v1399 = vpop.permute.xlu0 %1398
        %1400 = vrot.lane.b32.xlu0 %v1247, 127
        %v1401 = vpop.permute.xlu0 %1400
        %1402 = vrot.lane.b32.xlu0 %v1124, 127
        %v1403 = vpop.permute.xlu0 %1402
        %1404 = vrot.lane.b32.xlu0 %v1126, 127
        %v1405 = vpop.permute.xlu0 %1404
        %1406 = vrot.lane.b32.xlu0 %v1129, 127
        %v1407 = vpop.permute.xlu0 %1406
        %1408 = vrot.lane.b32.xlu0 %v1131, 127
        %v1409 = vpop.permute.xlu0 %1408
        %1410 = vrot.lane.b32.xlu0 %v1273, 127
        %v1411 = vpop.permute.xlu0 %1410
        %1412 = vrot.lane.b32.xlu0 %v1275, 127
        %v1413 = vpop.permute.xlu0 %1412
        %v1414 = vsub.f32 %v1395, %v1403
        %v1415 = vsub.f32 %v1397, %v1405
        %v1416 = vsub.f32 %v1399, %v1407
        %v1417 = vsub.f32 %v1401, %v1409
        %v1418 = vand.u32 2147483647, %v1414
        %v1419 = vand.u32 2147483647, %v1415
        %v1420 = vand.u32 2147483647, %v1416
        %v1421 = vand.u32 2147483647, %v1417
        %v1422 = vsub.f32 %v1395, %v1411
        %v1423 = vsub.f32 %v1397, %v1413
        %v1424 = vsub.f32 %v1399, %v1411
        %v1425 = vsub.f32 %v1401, %v1413
        %v1426 = vand.u32 2147483647, %v1422
        %v1427 = vand.u32 2147483647, %v1423
        %v1428 = vand.u32 2147483647, %v1424
        %v1429 = vand.u32 2147483647, %v1425
        %v1430 = vadd.f32 %v1418, 1.0
        %v1431 = vadd.f32 %v1419, 1.0
        %v1432 = vadd.f32 %v1420, 1.0
        %v1433 = vadd.f32 %v1421, 1.0
        %v1434 = vlog2.pop %v1430
        %v1435 = vmul.f32 %v1434, 0.6931472
        %v1436 = vlog2.pop %v1431
        %v1437 = vmul.f32 %v1436, 0.6931472
        %v1438 = vlog2.pop %v1432
        %v1439 = vmul.f32 %v1438, 0.6931472
        %v1440 = vlog2.pop %v1433
        %v1441 = vmul.f32 %v1440, 0.6931472
        %v1442 = vadd.f32 %v1426, 1.0
        %v1443 = vadd.f32 %v1427, 1.0
        %v1444 = vadd.f32 %v1428, 1.0
        %v1445 = vadd.f32 %v1429, 1.0
        %v1446 = vlog2.pop %v1442
        %v1447 = vmul.f32 %v1446, 0.6931472
        %v1448 = vlog2.pop %v1443
        %v1449 = vmul.f32 %v1448, 0.6931472
        %v1450 = vlog2.pop %v1444
        %v1451 = vmul.f32 %v1450, 0.6931472
        %v1452 = vlog2.pop %v1445
        %v1453 = vmul.f32 %v1452, 0.6931472
        %v1454 = vmul.f32 %v1435, %v1447
        %v1455 = vmul.f32 %v1437, %v1449
        %v1456 = vmul.f32 %v1439, %v1451
        %v1457 = vmul.f32 %v1441, %v1453
        %v1458 = vmul.f32 %v1454, 2.0
        %v1459 = vmul.f32 %v1455, 2.0
        %v1460 = vmul.f32 %v1456, 2.0
        %v1461 = vmul.f32 %v1457, 2.0
        %v1462 = vadd.f32 %v1458, 1e-08
        %v1463 = vadd.f32 %v1459, 1e-08
        %v1464 = vadd.f32 %v1460, 1e-08
        %v1465 = vadd.f32 %v1461, 1e-08
        %v1466 = vrcp.pop %v1462
        %v1467 = vrcp.pop %v1463
        %v1468 = vrcp.pop %v1464
        %v1469 = vrcp.pop %v1465
        %vm1470 = vcmp.lt.f32.partialorder %v1418, %v414
        %vm1471 = vcmp.lt.f32.partialorder %v1419, %v416
        %vm1472 = vcmp.lt.f32.partialorder %v1420, %v414
        %vm1473 = vcmp.lt.f32.partialorder %v1421, %v416
        %vm1474 = vcmp.lt.f32.partialorder %v1426, %v428
        %vm1475 = vcmp.lt.f32.partialorder %v1427, %v430
        %vm1476 = vcmp.lt.f32.partialorder %v1428, %v428
        %vm1477 = vcmp.lt.f32.partialorder %v1429, %v430
        %vm1478 = vmand %vm1470, %vm1474
        %vm1479 = vmand %vm1471, %vm1475
        %vm1480 = vmand %vm1472, %vm1476
        %vm1481 = vmand %vm1473, %vm1477
        %vm1482 = vcmp.ge.f32.partialorder %v1403, 1e-08
        %vm1483 = vcmp.ge.f32.partialorder %v1405, 1e-08
        %vm1484 = vcmp.ge.f32.partialorder %v1407, 1e-08
        %vm1485 = vcmp.ge.f32.partialorder %v1409, 1e-08
        %vm1486 = vmand %vm1478, %vm1482
        %vm1487 = vmand %vm1479, %vm1483
        %vm1488 = vmand %vm1480, %vm1484
        %vm1489 = vmand %vm1481, %vm1485
        %v1490 = vsub.f32 %v1403, %v453
        %v1491 = vsub.f32 %v1405, %v455
        %v1492 = vsub.f32 %v1407, %v458
        %v1493 = vsub.f32 %v1409, %v460
        %v1494 = vand.u32 2147483647, %v1490
        %v1495 = vand.u32 2147483647, %v1491
        %v1496 = vand.u32 2147483647, %v1492
        %v1497 = vand.u32 2147483647, %v1493
        %vm1498 = vcmp.lt.f32.partialorder %v1494, %v481
        %vm1499 = vcmp.lt.f32.partialorder %v1495, %v483
        %vm1500 = vcmp.lt.f32.partialorder %v1496, %v486
        %vm1501 = vcmp.lt.f32.partialorder %v1497, %v488
        %vm1502 = vmand %vm1486, %vm1498
        %vm1503 = vmand %vm1487, %vm1499
        %vm1504 = vmand %vm1488, %vm1500
        %vm1505 = vmand %vm1489, %vm1501
        %v1506 = vsel %vm1502, %v1466, 0.0
        %v1507 = vsel %vm1503, %v1467, 0.0
        %v1508 = vsel %vm1504, %v1468, 0.0
        %v1509 = vsel %vm1505, %v1469, 0.0
        %v1510 = vsub.f32 %v1403, %v1422
        %v1511 = vsub.f32 %v1405, %v1423
        %v1512 = vsub.f32 %v1407, %v1424
        %v1513 = vsub.f32 %v1409, %v1425
        %v1514 = vmul.f32 %v1506, %v1510
        %v1515 = vmul.f32 %v1507, %v1511
        %v1516 = vmul.f32 %v1508, %v1512
        %v1517 = vmul.f32 %v1509, %v1513
        %v1518 = vadd.f32 %v1514, %v1516
        %v1519 = vadd.f32 %v1515, %v1517
        %v1520 = vadd.f32 %v1388, %v1518
        %v1521 = vadd.f32 %v1389, %v1519
        %v1522 = vadd.f32 %v1506, %v1508
        %v1523 = vadd.f32 %v1507, %v1509
        %v1524 = vadd.f32 %v1392, %v1522
        %v1525 = vadd.f32 %v1393, %v1523
        %1526 = vrot.lane.b32.xlu0 %v1240, 2
        %v1527 = vpop.permute.xlu0 %1526
        %1528 = vrot.lane.b32.xlu0 %v1242, 2
        %v1529 = vpop.permute.xlu0 %1528
        %1530 = vrot.lane.b32.xlu0 %v1245, 2
        %v1531 = vpop.permute.xlu0 %1530
        %1532 = vrot.lane.b32.xlu0 %v1247, 2
        %v1533 = vpop.permute.xlu0 %1532
        %1534 = vrot.lane.b32.xlu0 %v1124, 2
        %v1535 = vpop.permute.xlu0 %1534
        %1536 = vrot.lane.b32.xlu0 %v1126, 2
        %v1537 = vpop.permute.xlu0 %1536
        %1538 = vrot.lane.b32.xlu0 %v1129, 2
        %v1539 = vpop.permute.xlu0 %1538
        %1540 = vrot.lane.b32.xlu0 %v1131, 2
        %v1541 = vpop.permute.xlu0 %1540
        %1542 = vrot.lane.b32.xlu0 %v1273, 2
        %v1543 = vpop.permute.xlu0 %1542
        %1544 = vrot.lane.b32.xlu0 %v1275, 2
        %v1545 = vpop.permute.xlu0 %1544
        %v1546 = vsub.f32 %v1527, %v1535
        %v1547 = vsub.f32 %v1529, %v1537
        %v1548 = vsub.f32 %v1531, %v1539
        %v1549 = vsub.f32 %v1533, %v1541
        %v1550 = vand.u32 2147483647, %v1546
        %v1551 = vand.u32 2147483647, %v1547
        %v1552 = vand.u32 2147483647, %v1548
        %v1553 = vand.u32 2147483647, %v1549
        %v1554 = vsub.f32 %v1527, %v1543
        %v1555 = vsub.f32 %v1529, %v1545
        %v1556 = vsub.f32 %v1531, %v1543
        %v1557 = vsub.f32 %v1533, %v1545
        %v1558 = vand.u32 2147483647, %v1554
        %v1559 = vand.u32 2147483647, %v1555
        %v1560 = vand.u32 2147483647, %v1556
        %v1561 = vand.u32 2147483647, %v1557
        %v1562 = vadd.f32 %v1550, 1.0
        %v1563 = vadd.f32 %v1551, 1.0
        %v1564 = vadd.f32 %v1552, 1.0
        %v1565 = vadd.f32 %v1553, 1.0
        %v1566 = vlog2.pop %v1562
        %v1567 = vmul.f32 %v1566, 0.6931472
        %v1568 = vlog2.pop %v1563
        %v1569 = vmul.f32 %v1568, 0.6931472
        %v1570 = vlog2.pop %v1564
        %v1571 = vmul.f32 %v1570, 0.6931472
        %v1572 = vlog2.pop %v1565
        %v1573 = vmul.f32 %v1572, 0.6931472
        %v1574 = vadd.f32 %v1558, 1.0
        %v1575 = vadd.f32 %v1559, 1.0
        %v1576 = vadd.f32 %v1560, 1.0
        %v1577 = vadd.f32 %v1561, 1.0
        %v1578 = vlog2.pop %v1574
        %v1579 = vmul.f32 %v1578, 0.6931472
        %v1580 = vlog2.pop %v1575
        %v1581 = vmul.f32 %v1580, 0.6931472
        %v1582 = vlog2.pop %v1576
        %v1583 = vmul.f32 %v1582, 0.6931472
        %v1584 = vlog2.pop %v1577
        %v1585 = vmul.f32 %v1584, 0.6931472
        %v1586 = vmul.f32 %v1567, %v1579
        %v1587 = vmul.f32 %v1569, %v1581
        %v1588 = vmul.f32 %v1571, %v1583
        %v1589 = vmul.f32 %v1573, %v1585
        %v1590 = vmul.f32 %v1586, 3.5
        %v1591 = vmul.f32 %v1587, 3.5
        %v1592 = vmul.f32 %v1588, 3.5
        %v1593 = vmul.f32 %v1589, 3.5
        %v1594 = vadd.f32 %v1590, 1e-08
        %v1595 = vadd.f32 %v1591, 1e-08
        %v1596 = vadd.f32 %v1592, 1e-08
        %v1597 = vadd.f32 %v1593, 1e-08
        %v1598 = vrcp.pop %v1594
        %v1599 = vrcp.pop %v1595
        %v1600 = vrcp.pop %v1596
        %v1601 = vrcp.pop %v1597
        %vm1602 = vcmp.lt.f32.partialorder %v1550, %v414
        %vm1603 = vcmp.lt.f32.partialorder %v1551, %v416
        %vm1604 = vcmp.lt.f32.partialorder %v1552, %v414
        %vm1605 = vcmp.lt.f32.partialorder %v1553, %v416
        %vm1606 = vcmp.lt.f32.partialorder %v1558, %v428
        %vm1607 = vcmp.lt.f32.partialorder %v1559, %v430
        %vm1608 = vcmp.lt.f32.partialorder %v1560, %v428
        %vm1609 = vcmp.lt.f32.partialorder %v1561, %v430
        %vm1610 = vmand %vm1602, %vm1606
        %vm1611 = vmand %vm1603, %vm1607
        %vm1612 = vmand %vm1604, %vm1608
        %vm1613 = vmand %vm1605, %vm1609
        %vm1614 = vcmp.ge.f32.partialorder %v1535, 1e-08
        %vm1615 = vcmp.ge.f32.partialorder %v1537, 1e-08
        %vm1616 = vcmp.ge.f32.partialorder %v1539, 1e-08
        %vm1617 = vcmp.ge.f32.partialorder %v1541, 1e-08
        %vm1618 = vmand %vm1610, %vm1614
        %vm1619 = vmand %vm1611, %vm1615
        %vm1620 = vmand %vm1612, %vm1616
        %vm1621 = vmand %vm1613, %vm1617
        %v1622 = vsub.f32 %v1535, %v453
        %v1623 = vsub.f32 %v1537, %v455
        %v1624 = vsub.f32 %v1539, %v458
        %v1625 = vsub.f32 %v1541, %v460
        %v1626 = vand.u32 2147483647, %v1622
        %v1627 = vand.u32 2147483647, %v1623
        %v1628 = vand.u32 2147483647, %v1624
        %v1629 = vand.u32 2147483647, %v1625
        %vm1630 = vcmp.lt.f32.partialorder %v1626, %v481
        %vm1631 = vcmp.lt.f32.partialorder %v1627, %v483
        %vm1632 = vcmp.lt.f32.partialorder %v1628, %v486
        %vm1633 = vcmp.lt.f32.partialorder %v1629, %v488
        %vm1634 = vmand %vm1618, %vm1630
        %vm1635 = vmand %vm1619, %vm1631
        %vm1636 = vmand %vm1620, %vm1632
        %vm1637 = vmand %vm1621, %vm1633
        %v1638 = vsel %vm1634, %v1598, 0.0
        %v1639 = vsel %vm1635, %v1599, 0.0
        %v1640 = vsel %vm1636, %v1600, 0.0
        %v1641 = vsel %vm1637, %v1601, 0.0
        %v1642 = vsub.f32 %v1535, %v1554
        %v1643 = vsub.f32 %v1537, %v1555
        %v1644 = vsub.f32 %v1539, %v1556
        %v1645 = vsub.f32 %v1541, %v1557
        %v1646 = vmul.f32 %v1638, %v1642
        %v1647 = vmul.f32 %v1639, %v1643
        %v1648 = vmul.f32 %v1640, %v1644
        %v1649 = vmul.f32 %v1641, %v1645
        %v1650 = vadd.f32 %v1646, %v1648
        %v1651 = vadd.f32 %v1647, %v1649
        %v1652 = vadd.f32 %v1520, %v1650
        %v1653 = vadd.f32 %v1521, %v1651
        %v1654 = vadd.f32 %v1638, %v1640
        %v1655 = vadd.f32 %v1639, %v1641
        %v1656 = vadd.f32 %v1524, %v1654
        %v1657 = vadd.f32 %v1525, %v1655
        %1658 = vrot.lane.b32.xlu0 %v1240, 126
        %v1659 = vpop.permute.xlu0 %1658
        %1660 = vrot.lane.b32.xlu0 %v1242, 126
        %v1661 = vpop.permute.xlu0 %1660
        %1662 = vrot.lane.b32.xlu0 %v1245, 126
        %v1663 = vpop.permute.xlu0 %1662
        %1664 = vrot.lane.b32.xlu0 %v1247, 126
        %v1665 = vpop.permute.xlu0 %1664
        %1666 = vrot.lane.b32.xlu0 %v1124, 126
        %v1667 = vpop.permute.xlu0 %1666
        %1668 = vrot.lane.b32.xlu0 %v1126, 126
        %v1669 = vpop.permute.xlu0 %1668
        %1670 = vrot.lane.b32.xlu0 %v1129, 126
        %v1671 = vpop.permute.xlu0 %1670
        %1672 = vrot.lane.b32.xlu0 %v1131, 126
        %v1673 = vpop.permute.xlu0 %1672
        %1674 = vrot.lane.b32.xlu0 %v1273, 126
        %v1675 = vpop.permute.xlu0 %1674
        %1676 = vrot.lane.b32.xlu0 %v1275, 126
        %v1677 = vpop.permute.xlu0 %1676
        %v1678 = vsub.f32 %v1659, %v1667
        %v1679 = vsub.f32 %v1661, %v1669
        %v1680 = vsub.f32 %v1663, %v1671
        %v1681 = vsub.f32 %v1665, %v1673
        %v1682 = vand.u32 2147483647, %v1678
        %v1683 = vand.u32 2147483647, %v1679
        %v1684 = vand.u32 2147483647, %v1680
        %v1685 = vand.u32 2147483647, %v1681
        %v1686 = vsub.f32 %v1659, %v1675
        %v1687 = vsub.f32 %v1661, %v1677
        %v1688 = vsub.f32 %v1663, %v1675
        %v1689 = vsub.f32 %v1665, %v1677
        %v1690 = vand.u32 2147483647, %v1686
        %v1691 = vand.u32 2147483647, %v1687
        %v1692 = vand.u32 2147483647, %v1688
        %v1693 = vand.u32 2147483647, %v1689
        %v1694 = vadd.f32 %v1682, 1.0
        %v1695 = vadd.f32 %v1683, 1.0
        %v1696 = vadd.f32 %v1684, 1.0
        %v1697 = vadd.f32 %v1685, 1.0
        %v1698 = vlog2.pop %v1694
        %v1699 = vmul.f32 %v1698, 0.6931472
        %v1700 = vlog2.pop %v1695
        %v1701 = vmul.f32 %v1700, 0.6931472
        %v1702 = vlog2.pop %v1696
        %v1703 = vmul.f32 %v1702, 0.6931472
        %v1704 = vlog2.pop %v1697
        %v1705 = vmul.f32 %v1704, 0.6931472
        %v1706 = vadd.f32 %v1690, 1.0
        %v1707 = vadd.f32 %v1691, 1.0
        %v1708 = vadd.f32 %v1692, 1.0
        %v1709 = vadd.f32 %v1693, 1.0
        %v1710 = vlog2.pop %v1706
        %v1711 = vmul.f32 %v1710, 0.6931472
        %v1712 = vlog2.pop %v1707
        %v1713 = vmul.f32 %v1712, 0.6931472
        %v1714 = vlog2.pop %v1708
        %v1715 = vmul.f32 %v1714, 0.6931472
        %v1716 = vlog2.pop %v1709
        %v1717 = vmul.f32 %v1716, 0.6931472
        %v1718 = vmul.f32 %v1699, %v1711
        %v1719 = vmul.f32 %v1701, %v1713
        %v1720 = vmul.f32 %v1703, %v1715
        %v1721 = vmul.f32 %v1705, %v1717
        %v1722 = vmul.f32 %v1718, 3.5
        %v1723 = vmul.f32 %v1719, 3.5
        %v1724 = vmul.f32 %v1720, 3.5
        %v1725 = vmul.f32 %v1721, 3.5
        %v1726 = vadd.f32 %v1722, 1e-08
        %v1727 = vadd.f32 %v1723, 1e-08
        %v1728 = vadd.f32 %v1724, 1e-08
        %v1729 = vadd.f32 %v1725, 1e-08
        %v1730 = vrcp.pop %v1726
        %v1731 = vrcp.pop %v1727
        %v1732 = vrcp.pop %v1728
        %v1733 = vrcp.pop %v1729
        %vm1734 = vcmp.lt.f32.partialorder %v1682, %v414
        %vm1735 = vcmp.lt.f32.partialorder %v1683, %v416
        %vm1736 = vcmp.lt.f32.partialorder %v1684, %v414
        %vm1737 = vcmp.lt.f32.partialorder %v1685, %v416
        %vm1738 = vcmp.lt.f32.partialorder %v1690, %v428
        %vm1739 = vcmp.lt.f32.partialorder %v1691, %v430
        %vm1740 = vcmp.lt.f32.partialorder %v1692, %v428
        %vm1741 = vcmp.lt.f32.partialorder %v1693, %v430
        %vm1742 = vmand %vm1734, %vm1738
        %vm1743 = vmand %vm1735, %vm1739
        %vm1744 = vmand %vm1736, %vm1740
        %vm1745 = vmand %vm1737, %vm1741
        %vm1746 = vcmp.ge.f32.partialorder %v1667, 1e-08
        %vm1747 = vcmp.ge.f32.partialorder %v1669, 1e-08
        %vm1748 = vcmp.ge.f32.partialorder %v1671, 1e-08
        %vm1749 = vcmp.ge.f32.partialorder %v1673, 1e-08
        %vm1750 = vmand %vm1742, %vm1746
        %vm1751 = vmand %vm1743, %vm1747
        %vm1752 = vmand %vm1744, %vm1748
        %vm1753 = vmand %vm1745, %vm1749
        %v1754 = vsub.f32 %v1667, %v453
        %v1755 = vsub.f32 %v1669, %v455
        %v1756 = vsub.f32 %v1671, %v458
        %v1757 = vsub.f32 %v1673, %v460
        %v1758 = vand.u32 2147483647, %v1754
        %v1759 = vand.u32 2147483647, %v1755
        %v1760 = vand.u32 2147483647, %v1756
        %v1761 = vand.u32 2147483647, %v1757
        %vm1762 = vcmp.lt.f32.partialorder %v1758, %v481
        %vm1763 = vcmp.lt.f32.partialorder %v1759, %v483
        %vm1764 = vcmp.lt.f32.partialorder %v1760, %v486
        %vm1765 = vcmp.lt.f32.partialorder %v1761, %v488
        %vm1766 = vmand %vm1750, %vm1762
        %vm1767 = vmand %vm1751, %vm1763
        %vm1768 = vmand %vm1752, %vm1764
        %vm1769 = vmand %vm1753, %vm1765
        %v1770 = vsel %vm1766, %v1730, 0.0
        %v1771 = vsel %vm1767, %v1731, 0.0
        %v1772 = vsel %vm1768, %v1732, 0.0
        %v1773 = vsel %vm1769, %v1733, 0.0
        %v1774 = vsub.f32 %v1667, %v1686
        %v1775 = vsub.f32 %v1669, %v1687
        %v1776 = vsub.f32 %v1671, %v1688
        %v1777 = vsub.f32 %v1673, %v1689
        %v1778 = vmul.f32 %v1770, %v1774
        %v1779 = vmul.f32 %v1771, %v1775
        %v1780 = vmul.f32 %v1772, %v1776
        %v1781 = vmul.f32 %v1773, %v1777
        %v1782 = vadd.f32 %v1778, %v1780
        %v1783 = vadd.f32 %v1779, %v1781
        %v1784 = vadd.f32 %v1652, %v1782
        %v1785 = vadd.f32 %v1653, %v1783
        %v1786 = vadd.f32 %v1770, %v1772
        %v1787 = vadd.f32 %v1771, %v1773
        %v1788 = vadd.f32 %v1656, %v1786
        %v1789 = vadd.f32 %v1657, %v1787
        %v1790 = vadd.f32 %v392, 1e-08
        %v1791 = vadd.f32 %v393, 1e-08
        %v1792 = vadd.f32 %v1061, 1e-08
        %v1793 = vadd.f32 %v394, 1e-08
        %v1794 = vadd.f32 %v395, 1e-08
        %v1795 = vadd.f32 %v1062, 1e-08
        %v1796 = vrcp.pop %v1790
        %v1797 = vrcp.pop %v1791
        %v1798 = vrcp.pop %v1792
        %v1799 = vrcp.pop %v1793
        %v1800 = vrcp.pop %v1794
        %v1801 = vrcp.pop %v1795
        %vm1802 = vcmp.lt.f32.partialorder %v315, %v330
        %vm1803 = vcmp.lt.f32.partialorder %v316, %v331
        %vm1804 = vcmp.lt.f32.partialorder %v317, %v332
        %vm1805 = vcmp.lt.f32.partialorder %v318, %v330
        %vm1806 = vcmp.lt.f32.partialorder %v319, %v331
        %vm1807 = vcmp.lt.f32.partialorder %v320, %v332
        %vm1808 = vcmp.lt.f32.partialorder %v339, %v352
        %vm1809 = vcmp.lt.f32.partialorder %v340, %v353
        %vm1810 = vcmp.lt.f32.partialorder %v341, %v354
        %vm1811 = vcmp.lt.f32.partialorder %v342, %v352
        %vm1812 = vcmp.lt.f32.partialorder %v343, %v353
        %vm1813 = vcmp.lt.f32.partialorder %v344, %v354
        %vm1814 = vmand %vm1802, %vm1808
        %vm1815 = vmand %vm1803, %vm1809
        %vm1816 = vmand %vm1804, %vm1810
        %vm1817 = vmand %vm1805, %vm1811
        %vm1818 = vmand %vm1806, %vm1812
        %vm1819 = vmand %vm1807, %vm1813
        %vm1820 = vmand %vm1814, %vm355
        %vm1821 = vmand %vm1815, %vm356
        %vm1822 = vmand %vm1816, %vm357
        %vm1823 = vmand %vm1817, %vm358
        %vm1824 = vmand %vm1818, %vm359
        %vm1825 = vmand %vm1819, %vm360
        %v1826 = vsub.f32 %v299, %v299
        %v1827 = vsub.f32 %v300, %v300
        %v1828 = vsub.f32 %v301, %v301
        %v1829 = vsub.f32 %v302, %v302
        %v1830 = vsub.f32 %v303, %v303
        %v1831 = vsub.f32 %v304, %v304
        %v1832 = vand.u32 2147483647, %v1826
        %v1833 = vand.u32 2147483647, %v1827
        %v1834 = vand.u32 2147483647, %v1828
        %v1835 = vand.u32 2147483647, %v1829
        %v1836 = vand.u32 2147483647, %v1830
        %v1837 = vand.u32 2147483647, %v1831
        %vm1838 = vcmp.lt.f32.partialorder %v1832, %v362
        %vm1839 = vcmp.lt.f32.partialorder %v1833, %v363
        %vm1840 = vcmp.lt.f32.partialorder %v1834, %v364
        %vm1841 = vcmp.lt.f32.partialorder %v1835, %v365
        %vm1842 = vcmp.lt.f32.partialorder %v1836, %v366
        %vm1843 = vcmp.lt.f32.partialorder %v1837, %v367
        %vm1844 = vmand %vm1820, %vm1838
        %vm1845 = vmand %vm1821, %vm1839
        %vm1846 = vmand %vm1822, %vm1840
        %vm1847 = vmand %vm1823, %vm1841
        %vm1848 = vmand %vm1824, %vm1842
        %vm1849 = vmand %vm1825, %vm1843
        %v1850 = vsel %vm1844, %v1796, 0.0
        %v1851 = vsel %vm1845, %v1797, 0.0
        %v1852 = vsel %vm1846, %v1798, 0.0
        %v1853 = vsel %vm1847, %v1799, 0.0
        %v1854 = vsel %vm1848, %v1800, 0.0
        %v1855 = vsel %vm1849, %v1801, 0.0
        %v1856 = vmul.f32 %v1850, %v505
        %v1857 = vmul.f32 %v1851, %v506
        %v1858 = vmul.f32 %v1852, %v1184
        %v1859 = vmul.f32 %v1853, %v507
        %v1860 = vmul.f32 %v1854, %v508
        %v1861 = vmul.f32 %v1855, %v1185
        %v1862 = vsel %vm321, %v1856, 0.0
        %v1863 = vsel %vm321, %v1859, 0.0
        %v1864 = vadd.f32 %v1862, %v1863
        %v1865 = vadd.f32 %v1857, %v1860
        %v1866 = vsel %vm326, %v1858, 0.0
        %v1867 = vsel %vm326, %v1861, 0.0
        %v1868 = vadd.f32 %v1866, %v1867
        %v1872 = vrot.slane %v1864, 2
        %v1873 = vrot.slane %v1865, 2
        %v1874 = vsel %vm411, %v1872, %v1873
        %v1875 = vrot.slane %v1868, 2
        %v1876 = vsel %vm411, %v1873, %v1875
        %v1879 = vadd.f32 %v1784, %v1874
        %v1880 = vadd.f32 %v1785, %v1876
        %v1881 = vsel %vm321, %v1850, 0.0
        %v1882 = vsel %vm321, %v1853, 0.0
        %v1883 = vadd.f32 %v1881, %v1882
        %v1884 = vadd.f32 %v1851, %v1854
        %v1885 = vsel %vm326, %v1852, 0.0
        %v1886 = vsel %vm326, %v1855, 0.0
        %v1887 = vadd.f32 %v1885, %v1886
        %v1891 = vrot.slane %v1883, 2
        %v1892 = vrot.slane %v1884, 2
        %v1893 = vsel %vm411, %v1891, %v1892
        %v1894 = vrot.slane %v1887, 2
        %v1895 = vsel %vm411, %v1892, %v1894
        %v1898 = vadd.f32 %v1788, %v1893
        %v1899 = vadd.f32 %v1789, %v1895
        %v1900 = vrot.slane %v293, 2
        %v1901 = vrot.slane %v294, 2
        %v1902 = vsel %vm411, %v1900, %v1901
        %v1903 = vrot.slane %v295, 2
        %v1904 = vsel %vm411, %v1901, %v1903
        %v1905 = vrot.slane %v296, 2
        %v1906 = vrot.slane %v297, 2
        %v1907 = vsel %vm411, %v1905, %v1906
        %v1908 = vrot.slane %v298, 2
        %v1909 = vsel %vm411, %v1906, %v1908
        %1914 = vrot.lane.b32.xlu0 %v1902, 1
        %v1915 = vpop.permute.xlu0 %1914
        %1916 = vrot.lane.b32.xlu0 %v1904, 1
        %v1917 = vpop.permute.xlu0 %1916
        %1918 = vrot.lane.b32.xlu0 %v1907, 1
        %v1919 = vpop.permute.xlu0 %1918
        %1920 = vrot.lane.b32.xlu0 %v1909, 1
        %v1921 = vpop.permute.xlu0 %1920
        %1922 = vrot.lane.b32.xlu0 %v453, 1
        %v1923 = vpop.permute.xlu0 %1922
        %1924 = vrot.lane.b32.xlu0 %v455, 1
        %v1925 = vpop.permute.xlu0 %1924
        %1926 = vrot.lane.b32.xlu0 %v458, 1
        %v1927 = vpop.permute.xlu0 %1926
        %1928 = vrot.lane.b32.xlu0 %v460, 1
        %v1929 = vpop.permute.xlu0 %1928
        %v1930 = vrot.slane %v305, 2
        %v1931 = vrot.slane %v306, 2
        %v1932 = vsel %vm411, %v1930, %v1931
        %v1933 = vrot.slane %v307, 2
        %v1934 = vsel %vm411, %v1931, %v1933
        %1937 = vrot.lane.b32.xlu0 %v1932, 1
        %v1938 = vpop.permute.xlu0 %1937
        %1939 = vrot.lane.b32.xlu0 %v1934, 1
        %v1940 = vpop.permute.xlu0 %1939
        %v1941 = vsub.f32 %v1915, %v1923
        %v1942 = vsub.f32 %v1917, %v1925
        %v1943 = vsub.f32 %v1919, %v1927
        %v1944 = vsub.f32 %v1921, %v1929
        %v1945 = vand.u32 2147483647, %v1941
        %v1946 = vand.u32 2147483647, %v1942
        %v1947 = vand.u32 2147483647, %v1943
        %v1948 = vand.u32 2147483647, %v1944
        %v1949 = vsub.f32 %v1915, %v1938
        %v1950 = vsub.f32 %v1917, %v1940
        %v1951 = vsub.f32 %v1919, %v1938
        %v1952 = vsub.f32 %v1921, %v1940
        %v1953 = vand.u32 2147483647, %v1949
        %v1954 = vand.u32 2147483647, %v1950
        %v1955 = vand.u32 2147483647, %v1951
        %v1956 = vand.u32 2147483647, %v1952
        %v1957 = vadd.f32 %v1945, 1.0
        %v1958 = vadd.f32 %v1946, 1.0
        %v1959 = vadd.f32 %v1947, 1.0
        %v1960 = vadd.f32 %v1948, 1.0
        %v1961 = vlog2.pop %v1957
        %v1962 = vmul.f32 %v1961, 0.6931472
        %v1963 = vlog2.pop %v1958
        %v1964 = vmul.f32 %v1963, 0.6931472
        %v1965 = vlog2.pop %v1959
        %v1966 = vmul.f32 %v1965, 0.6931472
        %v1967 = vlog2.pop %v1960
        %v1968 = vmul.f32 %v1967, 0.6931472
        %v1969 = vadd.f32 %v1953, 1.0
        %v1970 = vadd.f32 %v1954, 1.0
        %v1971 = vadd.f32 %v1955, 1.0
        %v1972 = vadd.f32 %v1956, 1.0
        %v1973 = vlog2.pop %v1969
        %v1974 = vmul.f32 %v1973, 0.6931472
        %v1975 = vlog2.pop %v1970
        %v1976 = vmul.f32 %v1975, 0.6931472
        %v1977 = vlog2.pop %v1971
        %v1978 = vmul.f32 %v1977, 0.6931472
        %v1979 = vlog2.pop %v1972
        %v1980 = vmul.f32 %v1979, 0.6931472
        %v1981 = vmul.f32 %v1962, %v1974
        %v1982 = vmul.f32 %v1964, %v1976
        %v1983 = vmul.f32 %v1966, %v1978
        %v1984 = vmul.f32 %v1968, %v1980
        %v1985 = vmul.f32 %v1981, 1.5
        %v1986 = vmul.f32 %v1982, 1.5
        %v1987 = vmul.f32 %v1983, 1.5
        %v1988 = vmul.f32 %v1984, 1.5
        %v1989 = vadd.f32 %v1985, 1e-08
        %v1990 = vadd.f32 %v1986, 1e-08
        %v1991 = vadd.f32 %v1987, 1e-08
        %v1992 = vadd.f32 %v1988, 1e-08
        %v1993 = vrcp.pop %v1989
        %v1994 = vrcp.pop %v1990
        %v1995 = vrcp.pop %v1991
        %v1996 = vrcp.pop %v1992
        %vm1997 = vcmp.lt.f32.partialorder %v1945, %v414
        %vm1998 = vcmp.lt.f32.partialorder %v1946, %v416
        %vm1999 = vcmp.lt.f32.partialorder %v1947, %v414
        %vm2000 = vcmp.lt.f32.partialorder %v1948, %v416
        %vm2001 = vcmp.lt.f32.partialorder %v1953, %v428
        %vm2002 = vcmp.lt.f32.partialorder %v1954, %v430
        %vm2003 = vcmp.lt.f32.partialorder %v1955, %v428
        %vm2004 = vcmp.lt.f32.partialorder %v1956, %v430
        %vm2005 = vmand %vm1997, %vm2001
        %vm2006 = vmand %vm1998, %vm2002
        %vm2007 = vmand %vm1999, %vm2003
        %vm2008 = vmand %vm2000, %vm2004
        %vm2009 = vcmp.ge.f32.partialorder %v1923, 1e-08
        %vm2010 = vcmp.ge.f32.partialorder %v1925, 1e-08
        %vm2011 = vcmp.ge.f32.partialorder %v1927, 1e-08
        %vm2012 = vcmp.ge.f32.partialorder %v1929, 1e-08
        %vm2013 = vmand %vm2005, %vm2009
        %vm2014 = vmand %vm2006, %vm2010
        %vm2015 = vmand %vm2007, %vm2011
        %vm2016 = vmand %vm2008, %vm2012
        %v2017 = vsub.f32 %v1923, %v453
        %v2018 = vsub.f32 %v1925, %v455
        %v2019 = vsub.f32 %v1927, %v458
        %v2020 = vsub.f32 %v1929, %v460
        %v2021 = vand.u32 2147483647, %v2017
        %v2022 = vand.u32 2147483647, %v2018
        %v2023 = vand.u32 2147483647, %v2019
        %v2024 = vand.u32 2147483647, %v2020
        %vm2025 = vcmp.lt.f32.partialorder %v2021, %v481
        %vm2026 = vcmp.lt.f32.partialorder %v2022, %v483
        %vm2027 = vcmp.lt.f32.partialorder %v2023, %v486
        %vm2028 = vcmp.lt.f32.partialorder %v2024, %v488
        %vm2029 = vmand %vm2013, %vm2025
        %vm2030 = vmand %vm2014, %vm2026
        %vm2031 = vmand %vm2015, %vm2027
        %vm2032 = vmand %vm2016, %vm2028
        %v2033 = vsel %vm2029, %v1993, 0.0
        %v2034 = vsel %vm2030, %v1994, 0.0
        %v2035 = vsel %vm2031, %v1995, 0.0
        %v2036 = vsel %vm2032, %v1996, 0.0
        %v2037 = vsub.f32 %v1923, %v1949
        %v2038 = vsub.f32 %v1925, %v1950
        %v2039 = vsub.f32 %v1927, %v1951
        %v2040 = vsub.f32 %v1929, %v1952
        %v2041 = vmul.f32 %v2033, %v2037
        %v2042 = vmul.f32 %v2034, %v2038
        %v2043 = vmul.f32 %v2035, %v2039
        %v2044 = vmul.f32 %v2036, %v2040
        %v2045 = vadd.f32 %v2041, %v2043
        %v2046 = vadd.f32 %v2042, %v2044
        %v2047 = vadd.f32 %v1879, %v2045
        %v2048 = vadd.f32 %v1880, %v2046
        %v2049 = vadd.f32 %v2033, %v2035
        %v2050 = vadd.f32 %v2034, %v2036
        %v2051 = vadd.f32 %v1898, %v2049
        %v2052 = vadd.f32 %v1899, %v2050
        %2053 = vrot.lane.b32.xlu0 %v1902, 127
        %v2054 = vpop.permute.xlu0 %2053
        %2055 = vrot.lane.b32.xlu0 %v1904, 127
        %v2056 = vpop.permute.xlu0 %2055
        %2057 = vrot.lane.b32.xlu0 %v1907, 127
        %v2058 = vpop.permute.xlu0 %2057
        %2059 = vrot.lane.b32.xlu0 %v1909, 127
        %v2060 = vpop.permute.xlu0 %2059
        %2061 = vrot.lane.b32.xlu0 %v453, 127
        %v2062 = vpop.permute.xlu0 %2061
        %2063 = vrot.lane.b32.xlu0 %v455, 127
        %v2064 = vpop.permute.xlu0 %2063
        %2065 = vrot.lane.b32.xlu0 %v458, 127
        %v2066 = vpop.permute.xlu0 %2065
        %2067 = vrot.lane.b32.xlu0 %v460, 127
        %v2068 = vpop.permute.xlu0 %2067
        %2069 = vrot.lane.b32.xlu0 %v1932, 127
        %v2070 = vpop.permute.xlu0 %2069
        %2071 = vrot.lane.b32.xlu0 %v1934, 127
        %v2072 = vpop.permute.xlu0 %2071
        %v2073 = vsub.f32 %v2054, %v2062
        %v2074 = vsub.f32 %v2056, %v2064
        %v2075 = vsub.f32 %v2058, %v2066
        %v2076 = vsub.f32 %v2060, %v2068
        %v2077 = vand.u32 2147483647, %v2073
        %v2078 = vand.u32 2147483647, %v2074
        %v2079 = vand.u32 2147483647, %v2075
        %v2080 = vand.u32 2147483647, %v2076
        %v2081 = vsub.f32 %v2054, %v2070
        %v2082 = vsub.f32 %v2056, %v2072
        %v2083 = vsub.f32 %v2058, %v2070
        %v2084 = vsub.f32 %v2060, %v2072
        %v2085 = vand.u32 2147483647, %v2081
        %v2086 = vand.u32 2147483647, %v2082
        %v2087 = vand.u32 2147483647, %v2083
        %v2088 = vand.u32 2147483647, %v2084
        %v2089 = vadd.f32 %v2077, 1.0
        %v2090 = vadd.f32 %v2078, 1.0
        %v2091 = vadd.f32 %v2079, 1.0
        %v2092 = vadd.f32 %v2080, 1.0
        %v2093 = vlog2.pop %v2089
        %v2094 = vmul.f32 %v2093, 0.6931472
        %v2095 = vlog2.pop %v2090
        %v2096 = vmul.f32 %v2095, 0.6931472
        %v2097 = vlog2.pop %v2091
        %v2098 = vmul.f32 %v2097, 0.6931472
        %v2099 = vlog2.pop %v2092
        %v2100 = vmul.f32 %v2099, 0.6931472
        %v2101 = vadd.f32 %v2085, 1.0
        %v2102 = vadd.f32 %v2086, 1.0
        %v2103 = vadd.f32 %v2087, 1.0
        %v2104 = vadd.f32 %v2088, 1.0
        %v2105 = vlog2.pop %v2101
        %v2106 = vmul.f32 %v2105, 0.6931472
        %v2107 = vlog2.pop %v2102
        %v2108 = vmul.f32 %v2107, 0.6931472
        %v2109 = vlog2.pop %v2103
        %v2110 = vmul.f32 %v2109, 0.6931472
        %v2111 = vlog2.pop %v2104
        %v2112 = vmul.f32 %v2111, 0.6931472
        %v2113 = vmul.f32 %v2094, %v2106
        %v2114 = vmul.f32 %v2096, %v2108
        %v2115 = vmul.f32 %v2098, %v2110
        %v2116 = vmul.f32 %v2100, %v2112
        %v2117 = vmul.f32 %v2113, 1.5
        %v2118 = vmul.f32 %v2114, 1.5
        %v2119 = vmul.f32 %v2115, 1.5
        %v2120 = vmul.f32 %v2116, 1.5
        %v2121 = vadd.f32 %v2117, 1e-08
        %v2122 = vadd.f32 %v2118, 1e-08
        %v2123 = vadd.f32 %v2119, 1e-08
        %v2124 = vadd.f32 %v2120, 1e-08
        %v2125 = vrcp.pop %v2121
        %v2126 = vrcp.pop %v2122
        %v2127 = vrcp.pop %v2123
        %v2128 = vrcp.pop %v2124
        %vm2129 = vcmp.lt.f32.partialorder %v2077, %v414
        %vm2130 = vcmp.lt.f32.partialorder %v2078, %v416
        %vm2131 = vcmp.lt.f32.partialorder %v2079, %v414
        %vm2132 = vcmp.lt.f32.partialorder %v2080, %v416
        %vm2133 = vcmp.lt.f32.partialorder %v2085, %v428
        %vm2134 = vcmp.lt.f32.partialorder %v2086, %v430
        %vm2135 = vcmp.lt.f32.partialorder %v2087, %v428
        %vm2136 = vcmp.lt.f32.partialorder %v2088, %v430
        %vm2137 = vmand %vm2129, %vm2133
        %vm2138 = vmand %vm2130, %vm2134
        %vm2139 = vmand %vm2131, %vm2135
        %vm2140 = vmand %vm2132, %vm2136
        %vm2141 = vcmp.ge.f32.partialorder %v2062, 1e-08
        %vm2142 = vcmp.ge.f32.partialorder %v2064, 1e-08
        %vm2143 = vcmp.ge.f32.partialorder %v2066, 1e-08
        %vm2144 = vcmp.ge.f32.partialorder %v2068, 1e-08
        %vm2145 = vmand %vm2137, %vm2141
        %vm2146 = vmand %vm2138, %vm2142
        %vm2147 = vmand %vm2139, %vm2143
        %vm2148 = vmand %vm2140, %vm2144
        %v2149 = vsub.f32 %v2062, %v453
        %v2150 = vsub.f32 %v2064, %v455
        %v2151 = vsub.f32 %v2066, %v458
        %v2152 = vsub.f32 %v2068, %v460
        %v2153 = vand.u32 2147483647, %v2149
        %v2154 = vand.u32 2147483647, %v2150
        %v2155 = vand.u32 2147483647, %v2151
        %v2156 = vand.u32 2147483647, %v2152
        %vm2157 = vcmp.lt.f32.partialorder %v2153, %v481
        %vm2158 = vcmp.lt.f32.partialorder %v2154, %v483
        %vm2159 = vcmp.lt.f32.partialorder %v2155, %v486
        %vm2160 = vcmp.lt.f32.partialorder %v2156, %v488
        %vm2161 = vmand %vm2145, %vm2157
        %vm2162 = vmand %vm2146, %vm2158
        %vm2163 = vmand %vm2147, %vm2159
        %vm2164 = vmand %vm2148, %vm2160
        %v2165 = vsel %vm2161, %v2125, 0.0
        %v2166 = vsel %vm2162, %v2126, 0.0
        %v2167 = vsel %vm2163, %v2127, 0.0
        %v2168 = vsel %vm2164, %v2128, 0.0
        %v2169 = vsub.f32 %v2062, %v2081
        %v2170 = vsub.f32 %v2064, %v2082
        %v2171 = vsub.f32 %v2066, %v2083
        %v2172 = vsub.f32 %v2068, %v2084
        %v2173 = vmul.f32 %v2165, %v2169
        %v2174 = vmul.f32 %v2166, %v2170
        %v2175 = vmul.f32 %v2167, %v2171
        %v2176 = vmul.f32 %v2168, %v2172
        %v2177 = vadd.f32 %v2173, %v2175
        %v2178 = vadd.f32 %v2174, %v2176
        %v2179 = vadd.f32 %v2047, %v2177
        %v2180 = vadd.f32 %v2048, %v2178
        %v2181 = vadd.f32 %v2165, %v2167
        %v2182 = vadd.f32 %v2166, %v2168
        %v2183 = vadd.f32 %v2051, %v2181
        %v2184 = vadd.f32 %v2052, %v2182
        %2185 = vrot.lane.b32.xlu0 %v1902, 2
        %v2186 = vpop.permute.xlu0 %2185
        %2187 = vrot.lane.b32.xlu0 %v1904, 2
        %v2188 = vpop.permute.xlu0 %2187
        %2189 = vrot.lane.b32.xlu0 %v1907, 2
        %v2190 = vpop.permute.xlu0 %2189
        %2191 = vrot.lane.b32.xlu0 %v1909, 2
        %v2192 = vpop.permute.xlu0 %2191
        %2193 = vrot.lane.b32.xlu0 %v453, 2
        %v2194 = vpop.permute.xlu0 %2193
        %2195 = vrot.lane.b32.xlu0 %v455, 2
        %v2196 = vpop.permute.xlu0 %2195
        %2197 = vrot.lane.b32.xlu0 %v458, 2
        %v2198 = vpop.permute.xlu0 %2197
        %2199 = vrot.lane.b32.xlu0 %v460, 2
        %v2200 = vpop.permute.xlu0 %2199
        %2201 = vrot.lane.b32.xlu0 %v1932, 2
        %v2202 = vpop.permute.xlu0 %2201
        %2203 = vrot.lane.b32.xlu0 %v1934, 2
        %v2204 = vpop.permute.xlu0 %2203
        %v2205 = vsub.f32 %v2186, %v2194
        %v2206 = vsub.f32 %v2188, %v2196
        %v2207 = vsub.f32 %v2190, %v2198
        %v2208 = vsub.f32 %v2192, %v2200
        %v2209 = vand.u32 2147483647, %v2205
        %v2210 = vand.u32 2147483647, %v2206
        %v2211 = vand.u32 2147483647, %v2207
        %v2212 = vand.u32 2147483647, %v2208
        %v2213 = vsub.f32 %v2186, %v2202
        %v2214 = vsub.f32 %v2188, %v2204
        %v2215 = vsub.f32 %v2190, %v2202
        %v2216 = vsub.f32 %v2192, %v2204
        %v2217 = vand.u32 2147483647, %v2213
        %v2218 = vand.u32 2147483647, %v2214
        %v2219 = vand.u32 2147483647, %v2215
        %v2220 = vand.u32 2147483647, %v2216
        %v2221 = vadd.f32 %v2209, 1.0
        %v2222 = vadd.f32 %v2210, 1.0
        %v2223 = vadd.f32 %v2211, 1.0
        %v2224 = vadd.f32 %v2212, 1.0
        %v2225 = vlog2.pop %v2221
        %v2226 = vmul.f32 %v2225, 0.6931472
        %v2227 = vlog2.pop %v2222
        %v2228 = vmul.f32 %v2227, 0.6931472
        %v2229 = vlog2.pop %v2223
        %v2230 = vmul.f32 %v2229, 0.6931472
        %v2231 = vlog2.pop %v2224
        %v2232 = vmul.f32 %v2231, 0.6931472
        %v2233 = vadd.f32 %v2217, 1.0
        %v2234 = vadd.f32 %v2218, 1.0
        %v2235 = vadd.f32 %v2219, 1.0
        %v2236 = vadd.f32 %v2220, 1.0
        %v2237 = vlog2.pop %v2233
        %v2238 = vmul.f32 %v2237, 0.6931472
        %v2239 = vlog2.pop %v2234
        %v2240 = vmul.f32 %v2239, 0.6931472
        %v2241 = vlog2.pop %v2235
        %v2242 = vmul.f32 %v2241, 0.6931472
        %v2243 = vlog2.pop %v2236
        %v2244 = vmul.f32 %v2243, 0.6931472
        %v2245 = vmul.f32 %v2226, %v2238
        %v2246 = vmul.f32 %v2228, %v2240
        %v2247 = vmul.f32 %v2230, %v2242
        %v2248 = vmul.f32 %v2232, %v2244
        %v2249 = vmul.f32 %v2245, 3.0
        %v2250 = vmul.f32 %v2246, 3.0
        %v2251 = vmul.f32 %v2247, 3.0
        %v2252 = vmul.f32 %v2248, 3.0
        %v2253 = vadd.f32 %v2249, 1e-08
        %v2254 = vadd.f32 %v2250, 1e-08
        %v2255 = vadd.f32 %v2251, 1e-08
        %v2256 = vadd.f32 %v2252, 1e-08
        %v2257 = vrcp.pop %v2253
        %v2258 = vrcp.pop %v2254
        %v2259 = vrcp.pop %v2255
        %v2260 = vrcp.pop %v2256
        %vm2261 = vcmp.lt.f32.partialorder %v2209, %v414
        %vm2262 = vcmp.lt.f32.partialorder %v2210, %v416
        %vm2263 = vcmp.lt.f32.partialorder %v2211, %v414
        %vm2264 = vcmp.lt.f32.partialorder %v2212, %v416
        %vm2265 = vcmp.lt.f32.partialorder %v2217, %v428
        %vm2266 = vcmp.lt.f32.partialorder %v2218, %v430
        %vm2267 = vcmp.lt.f32.partialorder %v2219, %v428
        %vm2268 = vcmp.lt.f32.partialorder %v2220, %v430
        %vm2269 = vmand %vm2261, %vm2265
        %vm2270 = vmand %vm2262, %vm2266
        %vm2271 = vmand %vm2263, %vm2267
        %vm2272 = vmand %vm2264, %vm2268
        %vm2273 = vcmp.ge.f32.partialorder %v2194, 1e-08
        %vm2274 = vcmp.ge.f32.partialorder %v2196, 1e-08
        %vm2275 = vcmp.ge.f32.partialorder %v2198, 1e-08
        %vm2276 = vcmp.ge.f32.partialorder %v2200, 1e-08
        %vm2277 = vmand %vm2269, %vm2273
        %vm2278 = vmand %vm2270, %vm2274
        %vm2279 = vmand %vm2271, %vm2275
        %vm2280 = vmand %vm2272, %vm2276
        %v2281 = vsub.f32 %v2194, %v453
        %v2282 = vsub.f32 %v2196, %v455
        %v2283 = vsub.f32 %v2198, %v458
        %v2284 = vsub.f32 %v2200, %v460
        %v2285 = vand.u32 2147483647, %v2281
        %v2286 = vand.u32 2147483647, %v2282
        %v2287 = vand.u32 2147483647, %v2283
        %v2288 = vand.u32 2147483647, %v2284
        %vm2289 = vcmp.lt.f32.partialorder %v2285, %v481
        %vm2290 = vcmp.lt.f32.partialorder %v2286, %v483
        %vm2291 = vcmp.lt.f32.partialorder %v2287, %v486
        %vm2292 = vcmp.lt.f32.partialorder %v2288, %v488
        %vm2293 = vmand %vm2277, %vm2289
        %vm2294 = vmand %vm2278, %vm2290
        %vm2295 = vmand %vm2279, %vm2291
        %vm2296 = vmand %vm2280, %vm2292
        %v2297 = vsel %vm2293, %v2257, 0.0
        %v2298 = vsel %vm2294, %v2258, 0.0
        %v2299 = vsel %vm2295, %v2259, 0.0
        %v2300 = vsel %vm2296, %v2260, 0.0
        %v2301 = vsub.f32 %v2194, %v2213
        %v2302 = vsub.f32 %v2196, %v2214
        %v2303 = vsub.f32 %v2198, %v2215
        %v2304 = vsub.f32 %v2200, %v2216
        %v2305 = vmul.f32 %v2297, %v2301
        %v2306 = vmul.f32 %v2298, %v2302
        %v2307 = vmul.f32 %v2299, %v2303
        %v2308 = vmul.f32 %v2300, %v2304
        %v2309 = vadd.f32 %v2305, %v2307
        %v2310 = vadd.f32 %v2306, %v2308
        %v2311 = vadd.f32 %v2179, %v2309
        %v2312 = vadd.f32 %v2180, %v2310
        %v2313 = vadd.f32 %v2297, %v2299
        %v2314 = vadd.f32 %v2298, %v2300
        %v2315 = vadd.f32 %v2183, %v2313
        %v2316 = vadd.f32 %v2184, %v2314
        %2317 = vrot.lane.b32.xlu0 %v1902, 126
        %v2318 = vpop.permute.xlu0 %2317
        %2319 = vrot.lane.b32.xlu0 %v1904, 126
        %v2320 = vpop.permute.xlu0 %2319
        %2321 = vrot.lane.b32.xlu0 %v1907, 126
        %v2322 = vpop.permute.xlu0 %2321
        %2323 = vrot.lane.b32.xlu0 %v1909, 126
        %v2324 = vpop.permute.xlu0 %2323
        %2325 = vrot.lane.b32.xlu0 %v453, 126
        %v2326 = vpop.permute.xlu0 %2325
        %2327 = vrot.lane.b32.xlu0 %v455, 126
        %v2328 = vpop.permute.xlu0 %2327
        %2329 = vrot.lane.b32.xlu0 %v458, 126
        %v2330 = vpop.permute.xlu0 %2329
        %2331 = vrot.lane.b32.xlu0 %v460, 126
        %v2332 = vpop.permute.xlu0 %2331
        %2333 = vrot.lane.b32.xlu0 %v1932, 126
        %v2334 = vpop.permute.xlu0 %2333
        %2335 = vrot.lane.b32.xlu0 %v1934, 126
        %v2336 = vpop.permute.xlu0 %2335
        %v2337 = vsub.f32 %v2318, %v2326
        %v2338 = vsub.f32 %v2320, %v2328
        %v2339 = vsub.f32 %v2322, %v2330
        %v2340 = vsub.f32 %v2324, %v2332
        %v2341 = vand.u32 2147483647, %v2337
        %v2342 = vand.u32 2147483647, %v2338
        %v2343 = vand.u32 2147483647, %v2339
        %v2344 = vand.u32 2147483647, %v2340
        %v2345 = vsub.f32 %v2318, %v2334
        %v2346 = vsub.f32 %v2320, %v2336
        %v2347 = vsub.f32 %v2322, %v2334
        %v2348 = vsub.f32 %v2324, %v2336
        %v2349 = vand.u32 2147483647, %v2345
        %v2350 = vand.u32 2147483647, %v2346
        %v2351 = vand.u32 2147483647, %v2347
        %v2352 = vand.u32 2147483647, %v2348
        %v2353 = vadd.f32 %v2341, 1.0
        %v2354 = vadd.f32 %v2342, 1.0
        %v2355 = vadd.f32 %v2343, 1.0
        %v2356 = vadd.f32 %v2344, 1.0
        %v2357 = vlog2.pop %v2353
        %v2358 = vmul.f32 %v2357, 0.6931472
        %v2359 = vlog2.pop %v2354
        %v2360 = vmul.f32 %v2359, 0.6931472
        %v2361 = vlog2.pop %v2355
        %v2362 = vmul.f32 %v2361, 0.6931472
        %v2363 = vlog2.pop %v2356
        %v2364 = vmul.f32 %v2363, 0.6931472
        %v2365 = vadd.f32 %v2349, 1.0
        %v2366 = vadd.f32 %v2350, 1.0
        %v2367 = vadd.f32 %v2351, 1.0
        %v2368 = vadd.f32 %v2352, 1.0
        %v2369 = vlog2.pop %v2365
        %v2370 = vmul.f32 %v2369, 0.6931472
        %v2371 = vlog2.pop %v2366
        %v2372 = vmul.f32 %v2371, 0.6931472
        %v2373 = vlog2.pop %v2367
        %v2374 = vmul.f32 %v2373, 0.6931472
        %v2375 = vlog2.pop %v2368
        %v2376 = vmul.f32 %v2375, 0.6931472
        %v2377 = vmul.f32 %v2358, %v2370
        %v2378 = vmul.f32 %v2360, %v2372
        %v2379 = vmul.f32 %v2362, %v2374
        %v2380 = vmul.f32 %v2364, %v2376
        %v2381 = vmul.f32 %v2377, 3.0
        %v2382 = vmul.f32 %v2378, 3.0
        %v2383 = vmul.f32 %v2379, 3.0
        %v2384 = vmul.f32 %v2380, 3.0
        %v2385 = vadd.f32 %v2381, 1e-08
        %v2386 = vadd.f32 %v2382, 1e-08
        %v2387 = vadd.f32 %v2383, 1e-08
        %v2388 = vadd.f32 %v2384, 1e-08
        %v2389 = vrcp.pop %v2385
        %v2390 = vrcp.pop %v2386
        %v2391 = vrcp.pop %v2387
        %v2392 = vrcp.pop %v2388
        %vm2393 = vcmp.lt.f32.partialorder %v2341, %v414
        %vm2394 = vcmp.lt.f32.partialorder %v2342, %v416
        %vm2395 = vcmp.lt.f32.partialorder %v2343, %v414
        %vm2396 = vcmp.lt.f32.partialorder %v2344, %v416
        %vm2397 = vcmp.lt.f32.partialorder %v2349, %v428
        %vm2398 = vcmp.lt.f32.partialorder %v2350, %v430
        %vm2399 = vcmp.lt.f32.partialorder %v2351, %v428
        %vm2400 = vcmp.lt.f32.partialorder %v2352, %v430
        %vm2401 = vmand %vm2393, %vm2397
        %vm2402 = vmand %vm2394, %vm2398
        %vm2403 = vmand %vm2395, %vm2399
        %vm2404 = vmand %vm2396, %vm2400
        %vm2405 = vcmp.ge.f32.partialorder %v2326, 1e-08
        %vm2406 = vcmp.ge.f32.partialorder %v2328, 1e-08
        %vm2407 = vcmp.ge.f32.partialorder %v2330, 1e-08
        %vm2408 = vcmp.ge.f32.partialorder %v2332, 1e-08
        %vm2409 = vmand %vm2401, %vm2405
        %vm2410 = vmand %vm2402, %vm2406
        %vm2411 = vmand %vm2403, %vm2407
        %vm2412 = vmand %vm2404, %vm2408
        %v2413 = vsub.f32 %v2326, %v453
        %v2414 = vsub.f32 %v2328, %v455
        %v2415 = vsub.f32 %v2330, %v458
        %v2416 = vsub.f32 %v2332, %v460
        %v2417 = vand.u32 2147483647, %v2413
        %v2418 = vand.u32 2147483647, %v2414
        %v2419 = vand.u32 2147483647, %v2415
        %v2420 = vand.u32 2147483647, %v2416
        %vm2421 = vcmp.lt.f32.partialorder %v2417, %v481
        %vm2422 = vcmp.lt.f32.partialorder %v2418, %v483
        %vm2423 = vcmp.lt.f32.partialorder %v2419, %v486
        %vm2424 = vcmp.lt.f32.partialorder %v2420, %v488
        %vm2425 = vmand %vm2409, %vm2421
        %vm2426 = vmand %vm2410, %vm2422
        %vm2427 = vmand %vm2411, %vm2423
        %vm2428 = vmand %vm2412, %vm2424
        %v2429 = vsel %vm2425, %v2389, 0.0
        %v2430 = vsel %vm2426, %v2390, 0.0
        %v2431 = vsel %vm2427, %v2391, 0.0
        %v2432 = vsel %vm2428, %v2392, 0.0
        %v2433 = vsub.f32 %v2326, %v2345
        %v2434 = vsub.f32 %v2328, %v2346
        %v2435 = vsub.f32 %v2330, %v2347
        %v2436 = vsub.f32 %v2332, %v2348
        %v2437 = vmul.f32 %v2429, %v2433
        %v2438 = vmul.f32 %v2430, %v2434
        %v2439 = vmul.f32 %v2431, %v2435
        %v2440 = vmul.f32 %v2432, %v2436
        %v2441 = vadd.f32 %v2437, %v2439
        %v2442 = vadd.f32 %v2438, %v2440
        %v2443 = vadd.f32 %v2311, %v2441
        %v2444 = vadd.f32 %v2312, %v2442
        %v2445 = vadd.f32 %v2429, %v2431
        %v2446 = vadd.f32 %v2430, %v2432
        %v2447 = vadd.f32 %v2315, %v2445
        %v2448 = vadd.f32 %v2316, %v2446
        %v2449 = vrot.slane %v330, 7
        %v2450 = vrot.slane %v331, 7
        %v2451 = vsel %vm1197, %v2449, %v2450
        %v2452 = vrot.slane %v332, 7
        %v2453 = vsel %vm1197, %v2450, %v2452
        %vm2457 = vcmp.lt.f32.partialorder %v315, %v2449
        %vm2458 = vcmp.lt.f32.partialorder %v316, %v2451
        %vm2459 = vcmp.lt.f32.partialorder %v317, %v2453
        %vm2460 = vcmp.lt.f32.partialorder %v318, %v2449
        %vm2461 = vcmp.lt.f32.partialorder %v319, %v2451
        %vm2462 = vcmp.lt.f32.partialorder %v320, %v2453
        %v2463 = vrot.slane %v352, 7
        %v2464 = vrot.slane %v353, 7
        %v2465 = vsel %vm1197, %v2463, %v2464
        %v2466 = vrot.slane %v354, 7
        %v2467 = vsel %vm1197, %v2464, %v2466
        %vm2471 = vcmp.lt.f32.partialorder %v339, %v2463
        %vm2472 = vcmp.lt.f32.partialorder %v340, %v2465
        %vm2473 = vcmp.lt.f32.partialorder %v341, %v2467
        %vm2474 = vcmp.lt.f32.partialorder %v342, %v2463
        %vm2475 = vcmp.lt.f32.partialorder %v343, %v2465
        %vm2476 = vcmp.lt.f32.partialorder %v344, %v2467
        %vm2477 = vmand %vm2457, %vm2471
        %vm2478 = vmand %vm2458, %vm2472
        %vm2479 = vmand %vm2459, %vm2473
        %vm2480 = vmand %vm2460, %vm2474
        %vm2481 = vmand %vm2461, %vm2475
        %vm2482 = vmand %vm2462, %vm2476
        %vm2483 = vmand %vm2477, %vm355
        %vm2484 = vmand %vm2478, %vm356
        %vm2485 = vmand %vm2479, %vm357
        %vm2486 = vmand %vm2480, %vm358
        %vm2487 = vmand %vm2481, %vm359
        %vm2488 = vmand %vm2482, %vm360
        %v2489 = vrot.slane %v299, 7
        %v2490 = vrot.slane %v300, 7
        %v2491 = vsel %vm1197, %v2489, %v2490
        %v2492 = vrot.slane %v301, 7
        %v2493 = vsel %vm1197, %v2490, %v2492
        %v2494 = vrot.slane %v302, 7
        %v2495 = vrot.slane %v303, 7
        %v2496 = vsel %vm1197, %v2494, %v2495
        %v2497 = vrot.slane %v304, 7
        %v2498 = vsel %vm1197, %v2495, %v2497
        %v2505 = vsub.f32 %v299, %v2489
        %v2506 = vsub.f32 %v300, %v2491
        %v2507 = vsub.f32 %v301, %v2493
        %v2508 = vsub.f32 %v302, %v2494
        %v2509 = vsub.f32 %v303, %v2496
        %v2510 = vsub.f32 %v304, %v2498
        %v2511 = vand.u32 2147483647, %v2505
        %v2512 = vand.u32 2147483647, %v2506
        %v2513 = vand.u32 2147483647, %v2507
        %v2514 = vand.u32 2147483647, %v2508
        %v2515 = vand.u32 2147483647, %v2509
        %v2516 = vand.u32 2147483647, %v2510
        %v2517 = vrot.slane %v362, 7
        %v2518 = vrot.slane %v363, 7
        %v2519 = vsel %vm1197, %v2517, %v2518
        %v2520 = vrot.slane %v364, 7
        %v2521 = vsel %vm1197, %v2518, %v2520
        %v2522 = vrot.slane %v365, 7
        %v2523 = vrot.slane %v366, 7
        %v2524 = vsel %vm1197, %v2522, %v2523
        %v2525 = vrot.slane %v367, 7
        %v2526 = vsel %vm1197, %v2523, %v2525
        %vm2533 = vcmp.lt.f32.partialorder %v2511, %v2517
        %vm2534 = vcmp.lt.f32.partialorder %v2512, %v2519
        %vm2535 = vcmp.lt.f32.partialorder %v2513, %v2521
        %vm2536 = vcmp.lt.f32.partialorder %v2514, %v2522
        %vm2537 = vcmp.lt.f32.partialorder %v2515, %v2524
        %vm2538 = vcmp.lt.f32.partialorder %v2516, %v2526
        %vm2539 = vmand %vm2483, %vm2533
        %vm2540 = vmand %vm2484, %vm2534
        %vm2541 = vmand %vm2485, %vm2535
        %vm2542 = vmand %vm2486, %vm2536
        %vm2543 = vmand %vm2487, %vm2537
        %vm2544 = vmand %vm2488, %vm2538
        %v2545 = vsel %vm2539, %v1075, 0.0
        %v2546 = vsel %vm2540, %v1076, 0.0
        %v2547 = vsel %vm2541, %v1077, 0.0
        %v2548 = vsel %vm2542, %v1078, 0.0
        %v2549 = vsel %vm2543, %v1079, 0.0
        %v2550 = vsel %vm2544, %v1080, 0.0
        %v2551 = vmul.f32 %v2545, %v505
        %v2552 = vmul.f32 %v2546, %v506
        %v2553 = vmul.f32 %v2547, %v1184
        %v2554 = vmul.f32 %v2548, %v507
        %v2555 = vmul.f32 %v2549, %v508
        %v2556 = vmul.f32 %v2550, %v1185
        %vm2557 = vcmask 1047555
        %v2558 = vsel %vm2557, %v2551, 0.0
        %v2559 = vsel %vm2557, %v2554, 0.0
        %v2560 = vadd.f32 %v2558, %v2559
        %v2561 = vadd.f32 %v2552, %v2555
        %vm2562 = vcmask 1042432
        %v2563 = vsel %vm2562, %v2553, 0.0
        %v2564 = vsel %vm2562, %v2556, 0.0
        %v2565 = vadd.f32 %v2563, %v2564
        %vm2569 = vcmask 1044480
        %v2570 = vrot.slane %v2560, 3
        %v2571 = vrot.slane %v2561, 3
        %v2572 = vsel %vm2569, %v2570, %v2571
        %v2573 = vrot.slane %v2565, 3
        %v2574 = vsel %vm2569, %v2571, %v2573
        %v2577 = vadd.f32 %v2443, %v2572
        %v2578 = vadd.f32 %v2444, %v2574
        %v2579 = vsel %vm2557, %v2545, 0.0
        %v2580 = vsel %vm2557, %v2548, 0.0
        %v2581 = vadd.f32 %v2579, %v2580
        %v2582 = vadd.f32 %v2546, %v2549
        %v2583 = vsel %vm2562, %v2547, 0.0
        %v2584 = vsel %vm2562, %v2550, 0.0
        %v2585 = vadd.f32 %v2583, %v2584
        %v2589 = vrot.slane %v2581, 3
        %v2590 = vrot.slane %v2582, 3
        %v2591 = vsel %vm2569, %v2589, %v2590
        %v2592 = vrot.slane %v2585, 3
        %v2593 = vsel %vm2569, %v2590, %v2592
        %v2596 = vadd.f32 %v2447, %v2591
        %v2597 = vadd.f32 %v2448, %v2593
        %v2598 = vrot.slane %v293, 3
        %v2599 = vrot.slane %v294, 3
        %v2600 = vsel %vm2569, %v2598, %v2599
        %v2601 = vrot.slane %v295, 3
        %v2602 = vsel %vm2569, %v2599, %v2601
        %v2603 = vrot.slane %v296, 3
        %v2604 = vrot.slane %v297, 3
        %v2605 = vsel %vm2569, %v2603, %v2604
        %v2606 = vrot.slane %v298, 3
        %v2607 = vsel %vm2569, %v2604, %v2606
        %2612 = vrot.lane.b32.xlu0 %v2600, 1
        %v2613 = vpop.permute.xlu0 %2612
        %2614 = vrot.lane.b32.xlu0 %v2602, 1
        %v2615 = vpop.permute.xlu0 %2614
        %2616 = vrot.lane.b32.xlu0 %v2605, 1
        %v2617 = vpop.permute.xlu0 %2616
        %2618 = vrot.lane.b32.xlu0 %v2607, 1
        %v2619 = vpop.permute.xlu0 %2618
        %v2620 = vrot.slane %v299, 3
        %v2621 = vrot.slane %v300, 3
        %v2622 = vsel %vm2569, %v2620, %v2621
        %v2623 = vrot.slane %v301, 3
        %v2624 = vsel %vm2569, %v2621, %v2623
        %v2625 = vrot.slane %v302, 3
        %v2626 = vrot.slane %v303, 3
        %v2627 = vsel %vm2569, %v2625, %v2626
        %v2628 = vrot.slane %v304, 3
        %v2629 = vsel %vm2569, %v2626, %v2628
        %2634 = vrot.lane.b32.xlu0 %v2622, 1
        %v2635 = vpop.permute.xlu0 %2634
        %2636 = vrot.lane.b32.xlu0 %v2624, 1
        %v2637 = vpop.permute.xlu0 %2636
        %2638 = vrot.lane.b32.xlu0 %v2627, 1
        %v2639 = vpop.permute.xlu0 %2638
        %2640 = vrot.lane.b32.xlu0 %v2629, 1
        %v2641 = vpop.permute.xlu0 %2640
        %v2642 = vrot.slane %v305, 3
        %v2643 = vrot.slane %v306, 3
        %v2644 = vsel %vm2569, %v2642, %v2643
        %v2645 = vrot.slane %v307, 3
        %v2646 = vsel %vm2569, %v2643, %v2645
        %2649 = vrot.lane.b32.xlu0 %v2644, 1
        %v2650 = vpop.permute.xlu0 %2649
        %2651 = vrot.lane.b32.xlu0 %v2646, 1
        %v2652 = vpop.permute.xlu0 %2651
        %v2653 = vsub.f32 %v2613, %v2635
        %v2654 = vsub.f32 %v2615, %v2637
        %v2655 = vsub.f32 %v2617, %v2639
        %v2656 = vsub.f32 %v2619, %v2641
        %v2657 = vand.u32 2147483647, %v2653
        %v2658 = vand.u32 2147483647, %v2654
        %v2659 = vand.u32 2147483647, %v2655
        %v2660 = vand.u32 2147483647, %v2656
        %v2661 = vsub.f32 %v2613, %v2650
        %v2662 = vsub.f32 %v2615, %v2652
        %v2663 = vsub.f32 %v2617, %v2650
        %v2664 = vsub.f32 %v2619, %v2652
        %v2665 = vand.u32 2147483647, %v2661
        %v2666 = vand.u32 2147483647, %v2662
        %v2667 = vand.u32 2147483647, %v2663
        %v2668 = vand.u32 2147483647, %v2664
        %v2669 = vadd.f32 %v2657, 1.0
        %v2670 = vadd.f32 %v2658, 1.0
        %v2671 = vadd.f32 %v2659, 1.0
        %v2672 = vadd.f32 %v2660, 1.0
        %v2673 = vlog2.pop %v2669
        %v2674 = vmul.f32 %v2673, 0.6931472
        %v2675 = vlog2.pop %v2670
        %v2676 = vmul.f32 %v2675, 0.6931472
        %v2677 = vlog2.pop %v2671
        %v2678 = vmul.f32 %v2677, 0.6931472
        %v2679 = vlog2.pop %v2672
        %v2680 = vmul.f32 %v2679, 0.6931472
        %v2681 = vadd.f32 %v2665, 1.0
        %v2682 = vadd.f32 %v2666, 1.0
        %v2683 = vadd.f32 %v2667, 1.0
        %v2684 = vadd.f32 %v2668, 1.0
        %v2685 = vlog2.pop %v2681
        %v2686 = vmul.f32 %v2685, 0.6931472
        %v2687 = vlog2.pop %v2682
        %v2688 = vmul.f32 %v2687, 0.6931472
        %v2689 = vlog2.pop %v2683
        %v2690 = vmul.f32 %v2689, 0.6931472
        %v2691 = vlog2.pop %v2684
        %v2692 = vmul.f32 %v2691, 0.6931472
        %v2693 = vmul.f32 %v2674, %v2686
        %v2694 = vmul.f32 %v2676, %v2688
        %v2695 = vmul.f32 %v2678, %v2690
        %v2696 = vmul.f32 %v2680, %v2692
        %v2697 = vmul.f32 %v2693, 2.0
        %v2698 = vmul.f32 %v2694, 2.0
        %v2699 = vmul.f32 %v2695, 2.0
        %v2700 = vmul.f32 %v2696, 2.0
        %v2701 = vadd.f32 %v2697, 1e-08
        %v2702 = vadd.f32 %v2698, 1e-08
        %v2703 = vadd.f32 %v2699, 1e-08
        %v2704 = vadd.f32 %v2700, 1e-08
        %v2705 = vrcp.pop %v2701
        %v2706 = vrcp.pop %v2702
        %v2707 = vrcp.pop %v2703
        %v2708 = vrcp.pop %v2704
        %vm2709 = vcmp.lt.f32.partialorder %v2657, %v414
        %vm2710 = vcmp.lt.f32.partialorder %v2658, %v416
        %vm2711 = vcmp.lt.f32.partialorder %v2659, %v414
        %vm2712 = vcmp.lt.f32.partialorder %v2660, %v416
        %vm2713 = vcmp.lt.f32.partialorder %v2665, %v428
        %vm2714 = vcmp.lt.f32.partialorder %v2666, %v430
        %vm2715 = vcmp.lt.f32.partialorder %v2667, %v428
        %vm2716 = vcmp.lt.f32.partialorder %v2668, %v430
        %vm2717 = vmand %vm2709, %vm2713
        %vm2718 = vmand %vm2710, %vm2714
        %vm2719 = vmand %vm2711, %vm2715
        %vm2720 = vmand %vm2712, %vm2716
        %vm2721 = vcmp.ge.f32.partialorder %v2635, 1e-08
        %vm2722 = vcmp.ge.f32.partialorder %v2637, 1e-08
        %vm2723 = vcmp.ge.f32.partialorder %v2639, 1e-08
        %vm2724 = vcmp.ge.f32.partialorder %v2641, 1e-08
        %vm2725 = vmand %vm2717, %vm2721
        %vm2726 = vmand %vm2718, %vm2722
        %vm2727 = vmand %vm2719, %vm2723
        %vm2728 = vmand %vm2720, %vm2724
        %v2729 = vsub.f32 %v2635, %v453
        %v2730 = vsub.f32 %v2637, %v455
        %v2731 = vsub.f32 %v2639, %v458
        %v2732 = vsub.f32 %v2641, %v460
        %v2733 = vand.u32 2147483647, %v2729
        %v2734 = vand.u32 2147483647, %v2730
        %v2735 = vand.u32 2147483647, %v2731
        %v2736 = vand.u32 2147483647, %v2732
        %vm2737 = vcmp.lt.f32.partialorder %v2733, %v481
        %vm2738 = vcmp.lt.f32.partialorder %v2734, %v483
        %vm2739 = vcmp.lt.f32.partialorder %v2735, %v486
        %vm2740 = vcmp.lt.f32.partialorder %v2736, %v488
        %vm2741 = vmand %vm2725, %vm2737
        %vm2742 = vmand %vm2726, %vm2738
        %vm2743 = vmand %vm2727, %vm2739
        %vm2744 = vmand %vm2728, %vm2740
        %v2745 = vsel %vm2741, %v2705, 0.0
        %v2746 = vsel %vm2742, %v2706, 0.0
        %v2747 = vsel %vm2743, %v2707, 0.0
        %v2748 = vsel %vm2744, %v2708, 0.0
        %v2749 = vsub.f32 %v2635, %v2661
        %v2750 = vsub.f32 %v2637, %v2662
        %v2751 = vsub.f32 %v2639, %v2663
        %v2752 = vsub.f32 %v2641, %v2664
        %v2753 = vmul.f32 %v2745, %v2749
        %v2754 = vmul.f32 %v2746, %v2750
        %v2755 = vmul.f32 %v2747, %v2751
        %v2756 = vmul.f32 %v2748, %v2752
        %v2757 = vadd.f32 %v2753, %v2755
        %v2758 = vadd.f32 %v2754, %v2756
        %v2759 = vadd.f32 %v2577, %v2757
        %v2760 = vadd.f32 %v2578, %v2758
        %v2761 = vadd.f32 %v2745, %v2747
        %v2762 = vadd.f32 %v2746, %v2748
        %v2763 = vadd.f32 %v2596, %v2761
        %v2764 = vadd.f32 %v2597, %v2762
        %2765 = vrot.lane.b32.xlu0 %v2600, 127
        %v2766 = vpop.permute.xlu0 %2765
        %2767 = vrot.lane.b32.xlu0 %v2602, 127
        %v2768 = vpop.permute.xlu0 %2767
        %2769 = vrot.lane.b32.xlu0 %v2605, 127
        %v2770 = vpop.permute.xlu0 %2769
        %2771 = vrot.lane.b32.xlu0 %v2607, 127
        %v2772 = vpop.permute.xlu0 %2771
        %2773 = vrot.lane.b32.xlu0 %v2622, 127
        %v2774 = vpop.permute.xlu0 %2773
        %2775 = vrot.lane.b32.xlu0 %v2624, 127
        %v2776 = vpop.permute.xlu0 %2775
        %2777 = vrot.lane.b32.xlu0 %v2627, 127
        %v2778 = vpop.permute.xlu0 %2777
        %2779 = vrot.lane.b32.xlu0 %v2629, 127
        %v2780 = vpop.permute.xlu0 %2779
        %2781 = vrot.lane.b32.xlu0 %v2644, 127
        %v2782 = vpop.permute.xlu0 %2781
        %2783 = vrot.lane.b32.xlu0 %v2646, 127
        %v2784 = vpop.permute.xlu0 %2783
        %v2785 = vsub.f32 %v2766, %v2774
        %v2786 = vsub.f32 %v2768, %v2776
        %v2787 = vsub.f32 %v2770, %v2778
        %v2788 = vsub.f32 %v2772, %v2780
        %v2789 = vand.u32 2147483647, %v2785
        %v2790 = vand.u32 2147483647, %v2786
        %v2791 = vand.u32 2147483647, %v2787
        %v2792 = vand.u32 2147483647, %v2788
        %v2793 = vsub.f32 %v2766, %v2782
        %v2794 = vsub.f32 %v2768, %v2784
        %v2795 = vsub.f32 %v2770, %v2782
        %v2796 = vsub.f32 %v2772, %v2784
        %v2797 = vand.u32 2147483647, %v2793
        %v2798 = vand.u32 2147483647, %v2794
        %v2799 = vand.u32 2147483647, %v2795
        %v2800 = vand.u32 2147483647, %v2796
        %v2801 = vadd.f32 %v2789, 1.0
        %v2802 = vadd.f32 %v2790, 1.0
        %v2803 = vadd.f32 %v2791, 1.0
        %v2804 = vadd.f32 %v2792, 1.0
        %v2805 = vlog2.pop %v2801
        %v2806 = vmul.f32 %v2805, 0.6931472
        %v2807 = vlog2.pop %v2802
        %v2808 = vmul.f32 %v2807, 0.6931472
        %v2809 = vlog2.pop %v2803
        %v2810 = vmul.f32 %v2809, 0.6931472
        %v2811 = vlog2.pop %v2804
        %v2812 = vmul.f32 %v2811, 0.6931472
        %v2813 = vadd.f32 %v2797, 1.0
        %v2814 = vadd.f32 %v2798, 1.0
        %v2815 = vadd.f32 %v2799, 1.0
        %v2816 = vadd.f32 %v2800, 1.0
        %v2817 = vlog2.pop %v2813
        %v2818 = vmul.f32 %v2817, 0.6931472
        %v2819 = vlog2.pop %v2814
        %v2820 = vmul.f32 %v2819, 0.6931472
        %v2821 = vlog2.pop %v2815
        %v2822 = vmul.f32 %v2821, 0.6931472
        %v2823 = vlog2.pop %v2816
        %v2824 = vmul.f32 %v2823, 0.6931472
        %v2825 = vmul.f32 %v2806, %v2818
        %v2826 = vmul.f32 %v2808, %v2820
        %v2827 = vmul.f32 %v2810, %v2822
        %v2828 = vmul.f32 %v2812, %v2824
        %v2829 = vmul.f32 %v2825, 2.0
        %v2830 = vmul.f32 %v2826, 2.0
        %v2831 = vmul.f32 %v2827, 2.0
        %v2832 = vmul.f32 %v2828, 2.0
        %v2833 = vadd.f32 %v2829, 1e-08
        %v2834 = vadd.f32 %v2830, 1e-08
        %v2835 = vadd.f32 %v2831, 1e-08
        %v2836 = vadd.f32 %v2832, 1e-08
        %v2837 = vrcp.pop %v2833
        %v2838 = vrcp.pop %v2834
        %v2839 = vrcp.pop %v2835
        %v2840 = vrcp.pop %v2836
        %vm2841 = vcmp.lt.f32.partialorder %v2789, %v414
        %vm2842 = vcmp.lt.f32.partialorder %v2790, %v416
        %vm2843 = vcmp.lt.f32.partialorder %v2791, %v414
        %vm2844 = vcmp.lt.f32.partialorder %v2792, %v416
        %vm2845 = vcmp.lt.f32.partialorder %v2797, %v428
        %vm2846 = vcmp.lt.f32.partialorder %v2798, %v430
        %vm2847 = vcmp.lt.f32.partialorder %v2799, %v428
        %vm2848 = vcmp.lt.f32.partialorder %v2800, %v430
        %vm2849 = vmand %vm2841, %vm2845
        %vm2850 = vmand %vm2842, %vm2846
        %vm2851 = vmand %vm2843, %vm2847
        %vm2852 = vmand %vm2844, %vm2848
        %vm2853 = vcmp.ge.f32.partialorder %v2774, 1e-08
        %vm2854 = vcmp.ge.f32.partialorder %v2776, 1e-08
        %vm2855 = vcmp.ge.f32.partialorder %v2778, 1e-08
        %vm2856 = vcmp.ge.f32.partialorder %v2780, 1e-08
        %vm2857 = vmand %vm2849, %vm2853
        %vm2858 = vmand %vm2850, %vm2854
        %vm2859 = vmand %vm2851, %vm2855
        %vm2860 = vmand %vm2852, %vm2856
        %v2861 = vsub.f32 %v2774, %v453
        %v2862 = vsub.f32 %v2776, %v455
        %v2863 = vsub.f32 %v2778, %v458
        %v2864 = vsub.f32 %v2780, %v460
        %v2865 = vand.u32 2147483647, %v2861
        %v2866 = vand.u32 2147483647, %v2862
        %v2867 = vand.u32 2147483647, %v2863
        %v2868 = vand.u32 2147483647, %v2864
        %vm2869 = vcmp.lt.f32.partialorder %v2865, %v481
        %vm2870 = vcmp.lt.f32.partialorder %v2866, %v483
        %vm2871 = vcmp.lt.f32.partialorder %v2867, %v486
        %vm2872 = vcmp.lt.f32.partialorder %v2868, %v488
        %vm2873 = vmand %vm2857, %vm2869
        %vm2874 = vmand %vm2858, %vm2870
        %vm2875 = vmand %vm2859, %vm2871
        %vm2876 = vmand %vm2860, %vm2872
        %v2877 = vsel %vm2873, %v2837, 0.0
        %v2878 = vsel %vm2874, %v2838, 0.0
        %v2879 = vsel %vm2875, %v2839, 0.0
        %v2880 = vsel %vm2876, %v2840, 0.0
        %v2881 = vsub.f32 %v2774, %v2793
        %v2882 = vsub.f32 %v2776, %v2794
        %v2883 = vsub.f32 %v2778, %v2795
        %v2884 = vsub.f32 %v2780, %v2796
        %v2885 = vmul.f32 %v2877, %v2881
        %v2886 = vmul.f32 %v2878, %v2882
        %v2887 = vmul.f32 %v2879, %v2883
        %v2888 = vmul.f32 %v2880, %v2884
        %v2889 = vadd.f32 %v2885, %v2887
        %v2890 = vadd.f32 %v2886, %v2888
        %v2891 = vadd.f32 %v2759, %v2889
        %v2892 = vadd.f32 %v2760, %v2890
        %v2893 = vadd.f32 %v2877, %v2879
        %v2894 = vadd.f32 %v2878, %v2880
        %v2895 = vadd.f32 %v2763, %v2893
        %v2896 = vadd.f32 %v2764, %v2894
        %2897 = vrot.lane.b32.xlu0 %v2600, 2
        %v2898 = vpop.permute.xlu0 %2897
        %2899 = vrot.lane.b32.xlu0 %v2602, 2
        %v2900 = vpop.permute.xlu0 %2899
        %2901 = vrot.lane.b32.xlu0 %v2605, 2
        %v2902 = vpop.permute.xlu0 %2901
        %2903 = vrot.lane.b32.xlu0 %v2607, 2
        %v2904 = vpop.permute.xlu0 %2903
        %2905 = vrot.lane.b32.xlu0 %v2622, 2
        %v2906 = vpop.permute.xlu0 %2905
        %2907 = vrot.lane.b32.xlu0 %v2624, 2
        %v2908 = vpop.permute.xlu0 %2907
        %2909 = vrot.lane.b32.xlu0 %v2627, 2
        %v2910 = vpop.permute.xlu0 %2909
        %2911 = vrot.lane.b32.xlu0 %v2629, 2
        %v2912 = vpop.permute.xlu0 %2911
        %2913 = vrot.lane.b32.xlu0 %v2644, 2
        %v2914 = vpop.permute.xlu0 %2913
        %2915 = vrot.lane.b32.xlu0 %v2646, 2
        %v2916 = vpop.permute.xlu0 %2915
        %v2917 = vsub.f32 %v2898, %v2906
        %v2918 = vsub.f32 %v2900, %v2908
        %v2919 = vsub.f32 %v2902, %v2910
        %v2920 = vsub.f32 %v2904, %v2912
        %v2921 = vand.u32 2147483647, %v2917
        %v2922 = vand.u32 2147483647, %v2918
        %v2923 = vand.u32 2147483647, %v2919
        %v2924 = vand.u32 2147483647, %v2920
        %v2925 = vsub.f32 %v2898, %v2914
        %v2926 = vsub.f32 %v2900, %v2916
        %v2927 = vsub.f32 %v2902, %v2914
        %v2928 = vsub.f32 %v2904, %v2916
        %v2929 = vand.u32 2147483647, %v2925
        %v2930 = vand.u32 2147483647, %v2926
        %v2931 = vand.u32 2147483647, %v2927
        %v2932 = vand.u32 2147483647, %v2928
        %v2933 = vadd.f32 %v2921, 1.0
        %v2934 = vadd.f32 %v2922, 1.0
        %v2935 = vadd.f32 %v2923, 1.0
        %v2936 = vadd.f32 %v2924, 1.0
        %v2937 = vlog2.pop %v2933
        %v2938 = vmul.f32 %v2937, 0.6931472
        %v2939 = vlog2.pop %v2934
        %v2940 = vmul.f32 %v2939, 0.6931472
        %v2941 = vlog2.pop %v2935
        %v2942 = vmul.f32 %v2941, 0.6931472
        %v2943 = vlog2.pop %v2936
        %v2944 = vmul.f32 %v2943, 0.6931472
        %v2945 = vadd.f32 %v2929, 1.0
        %v2946 = vadd.f32 %v2930, 1.0
        %v2947 = vadd.f32 %v2931, 1.0
        %v2948 = vadd.f32 %v2932, 1.0
        %v2949 = vlog2.pop %v2945
        %v2950 = vmul.f32 %v2949, 0.6931472
        %v2951 = vlog2.pop %v2946
        %v2952 = vmul.f32 %v2951, 0.6931472
        %v2953 = vlog2.pop %v2947
        %v2954 = vmul.f32 %v2953, 0.6931472
        %v2955 = vlog2.pop %v2948
        %v2956 = vmul.f32 %v2955, 0.6931472
        %v2957 = vmul.f32 %v2938, %v2950
        %v2958 = vmul.f32 %v2940, %v2952
        %v2959 = vmul.f32 %v2942, %v2954
        %v2960 = vmul.f32 %v2944, %v2956
        %v2961 = vmul.f32 %v2957, 3.5
        %v2962 = vmul.f32 %v2958, 3.5
        %v2963 = vmul.f32 %v2959, 3.5
        %v2964 = vmul.f32 %v2960, 3.5
        %v2965 = vadd.f32 %v2961, 1e-08
        %v2966 = vadd.f32 %v2962, 1e-08
        %v2967 = vadd.f32 %v2963, 1e-08
        %v2968 = vadd.f32 %v2964, 1e-08
        %v2969 = vrcp.pop %v2965
        %v2970 = vrcp.pop %v2966
        %v2971 = vrcp.pop %v2967
        %v2972 = vrcp.pop %v2968
        %vm2973 = vcmp.lt.f32.partialorder %v2921, %v414
        %vm2974 = vcmp.lt.f32.partialorder %v2922, %v416
        %vm2975 = vcmp.lt.f32.partialorder %v2923, %v414
        %vm2976 = vcmp.lt.f32.partialorder %v2924, %v416
        %vm2977 = vcmp.lt.f32.partialorder %v2929, %v428
        %vm2978 = vcmp.lt.f32.partialorder %v2930, %v430
        %vm2979 = vcmp.lt.f32.partialorder %v2931, %v428
        %vm2980 = vcmp.lt.f32.partialorder %v2932, %v430
        %vm2981 = vmand %vm2973, %vm2977
        %vm2982 = vmand %vm2974, %vm2978
        %vm2983 = vmand %vm2975, %vm2979
        %vm2984 = vmand %vm2976, %vm2980
        %vm2985 = vcmp.ge.f32.partialorder %v2906, 1e-08
        %vm2986 = vcmp.ge.f32.partialorder %v2908, 1e-08
        %vm2987 = vcmp.ge.f32.partialorder %v2910, 1e-08
        %vm2988 = vcmp.ge.f32.partialorder %v2912, 1e-08
        %vm2989 = vmand %vm2981, %vm2985
        %vm2990 = vmand %vm2982, %vm2986
        %vm2991 = vmand %vm2983, %vm2987
        %vm2992 = vmand %vm2984, %vm2988
        %v2993 = vsub.f32 %v2906, %v453
        %v2994 = vsub.f32 %v2908, %v455
        %v2995 = vsub.f32 %v2910, %v458
        %v2996 = vsub.f32 %v2912, %v460
        %v2997 = vand.u32 2147483647, %v2993
        %v2998 = vand.u32 2147483647, %v2994
        %v2999 = vand.u32 2147483647, %v2995
        %v3000 = vand.u32 2147483647, %v2996
        %vm3001 = vcmp.lt.f32.partialorder %v2997, %v481
        %vm3002 = vcmp.lt.f32.partialorder %v2998, %v483
        %vm3003 = vcmp.lt.f32.partialorder %v2999, %v486
        %vm3004 = vcmp.lt.f32.partialorder %v3000, %v488
        %vm3005 = vmand %vm2989, %vm3001
        %vm3006 = vmand %vm2990, %vm3002
        %vm3007 = vmand %vm2991, %vm3003
        %vm3008 = vmand %vm2992, %vm3004
        %v3009 = vsel %vm3005, %v2969, 0.0
        %v3010 = vsel %vm3006, %v2970, 0.0
        %v3011 = vsel %vm3007, %v2971, 0.0
        %v3012 = vsel %vm3008, %v2972, 0.0
        %v3013 = vsub.f32 %v2906, %v2925
        %v3014 = vsub.f32 %v2908, %v2926
        %v3015 = vsub.f32 %v2910, %v2927
        %v3016 = vsub.f32 %v2912, %v2928
        %v3017 = vmul.f32 %v3009, %v3013
        %v3018 = vmul.f32 %v3010, %v3014
        %v3019 = vmul.f32 %v3011, %v3015
        %v3020 = vmul.f32 %v3012, %v3016
        %v3021 = vadd.f32 %v3017, %v3019
        %v3022 = vadd.f32 %v3018, %v3020
        %v3023 = vadd.f32 %v2891, %v3021
        %v3024 = vadd.f32 %v2892, %v3022
        %v3025 = vadd.f32 %v3009, %v3011
        %v3026 = vadd.f32 %v3010, %v3012
        %v3027 = vadd.f32 %v2895, %v3025
        %v3028 = vadd.f32 %v2896, %v3026
        %3029 = vrot.lane.b32.xlu0 %v2600, 126
        %v3030 = vpop.permute.xlu0 %3029
        %3031 = vrot.lane.b32.xlu0 %v2602, 126
        %v3032 = vpop.permute.xlu0 %3031
        %3033 = vrot.lane.b32.xlu0 %v2605, 126
        %v3034 = vpop.permute.xlu0 %3033
        %3035 = vrot.lane.b32.xlu0 %v2607, 126
        %v3036 = vpop.permute.xlu0 %3035
        %3037 = vrot.lane.b32.xlu0 %v2622, 126
        %v3038 = vpop.permute.xlu0 %3037
        %3039 = vrot.lane.b32.xlu0 %v2624, 126
        %v3040 = vpop.permute.xlu0 %3039
        %3041 = vrot.lane.b32.xlu0 %v2627, 126
        %v3042 = vpop.permute.xlu0 %3041
        %3043 = vrot.lane.b32.xlu0 %v2629, 126
        %v3044 = vpop.permute.xlu0 %3043
        %3045 = vrot.lane.b32.xlu0 %v2644, 126
        %v3046 = vpop.permute.xlu0 %3045
        %3047 = vrot.lane.b32.xlu0 %v2646, 126
        %v3048 = vpop.permute.xlu0 %3047
        %v3049 = vsub.f32 %v3030, %v3038
        %v3050 = vsub.f32 %v3032, %v3040
        %v3051 = vsub.f32 %v3034, %v3042
        %v3052 = vsub.f32 %v3036, %v3044
        %v3053 = vand.u32 2147483647, %v3049
        %v3054 = vand.u32 2147483647, %v3050
        %v3055 = vand.u32 2147483647, %v3051
        %v3056 = vand.u32 2147483647, %v3052
        %v3057 = vsub.f32 %v3030, %v3046
        %v3058 = vsub.f32 %v3032, %v3048
        %v3059 = vsub.f32 %v3034, %v3046
        %v3060 = vsub.f32 %v3036, %v3048
        %v3061 = vand.u32 2147483647, %v3057
        %v3062 = vand.u32 2147483647, %v3058
        %v3063 = vand.u32 2147483647, %v3059
        %v3064 = vand.u32 2147483647, %v3060
        %v3065 = vadd.f32 %v3053, 1.0
        %v3066 = vadd.f32 %v3054, 1.0
        %v3067 = vadd.f32 %v3055, 1.0
        %v3068 = vadd.f32 %v3056, 1.0
        %v3069 = vlog2.pop %v3065
        %v3070 = vmul.f32 %v3069, 0.6931472
        %v3071 = vlog2.pop %v3066
        %v3072 = vmul.f32 %v3071, 0.6931472
        %v3073 = vlog2.pop %v3067
        %v3074 = vmul.f32 %v3073, 0.6931472
        %v3075 = vlog2.pop %v3068
        %v3076 = vmul.f32 %v3075, 0.6931472
        %v3077 = vadd.f32 %v3061, 1.0
        %v3078 = vadd.f32 %v3062, 1.0
        %v3079 = vadd.f32 %v3063, 1.0
        %v3080 = vadd.f32 %v3064, 1.0
        %v3081 = vlog2.pop %v3077
        %v3082 = vmul.f32 %v3081, 0.6931472
        %v3083 = vlog2.pop %v3078
        %v3084 = vmul.f32 %v3083, 0.6931472
        %v3085 = vlog2.pop %v3079
        %v3086 = vmul.f32 %v3085, 0.6931472
        %v3087 = vlog2.pop %v3080
        %v3088 = vmul.f32 %v3087, 0.6931472
        %v3089 = vmul.f32 %v3070, %v3082
        %v3090 = vmul.f32 %v3072, %v3084
        %v3091 = vmul.f32 %v3074, %v3086
        %v3092 = vmul.f32 %v3076, %v3088
        %v3093 = vmul.f32 %v3089, 3.5
        %v3094 = vmul.f32 %v3090, 3.5
        %v3095 = vmul.f32 %v3091, 3.5
        %v3096 = vmul.f32 %v3092, 3.5
        %v3097 = vadd.f32 %v3093, 1e-08
        %v3098 = vadd.f32 %v3094, 1e-08
        %v3099 = vadd.f32 %v3095, 1e-08
        %v3100 = vadd.f32 %v3096, 1e-08
        %v3101 = vrcp.pop %v3097
        %v3102 = vrcp.pop %v3098
        %v3103 = vrcp.pop %v3099
        %v3104 = vrcp.pop %v3100
        %vm3105 = vcmp.lt.f32.partialorder %v3053, %v414
        %vm3106 = vcmp.lt.f32.partialorder %v3054, %v416
        %vm3107 = vcmp.lt.f32.partialorder %v3055, %v414
        %vm3108 = vcmp.lt.f32.partialorder %v3056, %v416
        %vm3109 = vcmp.lt.f32.partialorder %v3061, %v428
        %vm3110 = vcmp.lt.f32.partialorder %v3062, %v430
        %vm3111 = vcmp.lt.f32.partialorder %v3063, %v428
        %vm3112 = vcmp.lt.f32.partialorder %v3064, %v430
        %vm3113 = vmand %vm3105, %vm3109
        %vm3114 = vmand %vm3106, %vm3110
        %vm3115 = vmand %vm3107, %vm3111
        %vm3116 = vmand %vm3108, %vm3112
        %vm3117 = vcmp.ge.f32.partialorder %v3038, 1e-08
        %vm3118 = vcmp.ge.f32.partialorder %v3040, 1e-08
        %vm3119 = vcmp.ge.f32.partialorder %v3042, 1e-08
        %vm3120 = vcmp.ge.f32.partialorder %v3044, 1e-08
        %vm3121 = vmand %vm3113, %vm3117
        %vm3122 = vmand %vm3114, %vm3118
        %vm3123 = vmand %vm3115, %vm3119
        %vm3124 = vmand %vm3116, %vm3120
        %v3125 = vsub.f32 %v3038, %v453
        %v3126 = vsub.f32 %v3040, %v455
        %v3127 = vsub.f32 %v3042, %v458
        %v3128 = vsub.f32 %v3044, %v460
        %v3129 = vand.u32 2147483647, %v3125
        %v3130 = vand.u32 2147483647, %v3126
        %v3131 = vand.u32 2147483647, %v3127
        %v3132 = vand.u32 2147483647, %v3128
        %vm3133 = vcmp.lt.f32.partialorder %v3129, %v481
        %vm3134 = vcmp.lt.f32.partialorder %v3130, %v483
        %vm3135 = vcmp.lt.f32.partialorder %v3131, %v486
        %vm3136 = vcmp.lt.f32.partialorder %v3132, %v488
        %vm3137 = vmand %vm3121, %vm3133
        %vm3138 = vmand %vm3122, %vm3134
        %vm3139 = vmand %vm3123, %vm3135
        %vm3140 = vmand %vm3124, %vm3136
        %v3141 = vsel %vm3137, %v3101, 0.0
        %v3142 = vsel %vm3138, %v3102, 0.0
        %v3143 = vsel %vm3139, %v3103, 0.0
        %v3144 = vsel %vm3140, %v3104, 0.0
        %v3145 = vsub.f32 %v3038, %v3057
        %v3146 = vsub.f32 %v3040, %v3058
        %v3147 = vsub.f32 %v3042, %v3059
        %v3148 = vsub.f32 %v3044, %v3060
        %v3149 = vmul.f32 %v3141, %v3145
        %v3150 = vmul.f32 %v3142, %v3146
        %v3151 = vmul.f32 %v3143, %v3147
        %v3152 = vmul.f32 %v3144, %v3148
        %v3153 = vadd.f32 %v3149, %v3151
        %v3154 = vadd.f32 %v3150, %v3152
        %v3155 = vadd.f32 %v3023, %v3153
        %v3156 = vadd.f32 %v3024, %v3154
        %v3157 = vadd.f32 %v3141, %v3143
        %v3158 = vadd.f32 %v3142, %v3144
        %v3159 = vadd.f32 %v3027, %v3157
        %v3160 = vadd.f32 %v3028, %v3158
        %v3161 = vmul.f32 %v1061, 3.0
        %v3162 = vmul.f32 %v1062, 3.0
        %v3163 = vadd.f32 %v3161, 1e-08
        %v3164 = vadd.f32 %v3162, 1e-08
        %v3165 = vrcp.pop %v3163
        %v3166 = vrcp.pop %v3164
        %v3167 = vrot.slane %v330, 6
        %v3168 = vrot.slane %v331, 6
        %v3169 = vsel %vm326, %v3167, %v3168
        %v3170 = vrot.slane %v332, 6
        %v3171 = vsel %vm326, %v3168, %v3170
        %vm3175 = vcmp.lt.f32.partialorder %v315, %v3167
        %vm3176 = vcmp.lt.f32.partialorder %v316, %v3169
        %vm3177 = vcmp.lt.f32.partialorder %v317, %v3171
        %vm3178 = vcmp.lt.f32.partialorder %v318, %v3167
        %vm3179 = vcmp.lt.f32.partialorder %v319, %v3169
        %vm3180 = vcmp.lt.f32.partialorder %v320, %v3171
        %v3181 = vrot.slane %v352, 6
        %v3182 = vrot.slane %v353, 6
        %v3183 = vsel %vm326, %v3181, %v3182
        %v3184 = vrot.slane %v354, 6
        %v3185 = vsel %vm326, %v3182, %v3184
        %vm3189 = vcmp.lt.f32.partialorder %v339, %v3181
        %vm3190 = vcmp.lt.f32.partialorder %v340, %v3183
        %vm3191 = vcmp.lt.f32.partialorder %v341, %v3185
        %vm3192 = vcmp.lt.f32.partialorder %v342, %v3181
        %vm3193 = vcmp.lt.f32.partialorder %v343, %v3183
        %vm3194 = vcmp.lt.f32.partialorder %v344, %v3185
        %vm3195 = vmand %vm3175, %vm3189
        %vm3196 = vmand %vm3176, %vm3190
        %vm3197 = vmand %vm3177, %vm3191
        %vm3198 = vmand %vm3178, %vm3192
        %vm3199 = vmand %vm3179, %vm3193
        %vm3200 = vmand %vm3180, %vm3194
        %vm3201 = vmand %vm3195, %vm355
        %vm3202 = vmand %vm3196, %vm356
        %vm3203 = vmand %vm3197, %vm357
        %vm3204 = vmand %vm3198, %vm358
        %vm3205 = vmand %vm3199, %vm359
        %vm3206 = vmand %vm3200, %vm360
        %v3207 = vrot.slane %v299, 6
        %v3208 = vrot.slane %v300, 6
        %v3209 = vsel %vm326, %v3207, %v3208
        %v3210 = vrot.slane %v301, 6
        %v3211 = vsel %vm326, %v3208, %v3210
        %v3212 = vrot.slane %v302, 6
        %v3213 = vrot.slane %v303, 6
        %v3214 = vsel %vm326, %v3212, %v3213
        %v3215 = vrot.slane %v304, 6
        %v3216 = vsel %vm326, %v3213, %v3215
        %v3223 = vsub.f32 %v299, %v3207
        %v3224 = vsub.f32 %v300, %v3209
        %v3225 = vsub.f32 %v301, %v3211
        %v3226 = vsub.f32 %v302, %v3212
        %v3227 = vsub.f32 %v303, %v3214
        %v3228 = vsub.f32 %v304, %v3216
        %v3229 = vand.u32 2147483647, %v3223
        %v3230 = vand.u32 2147483647, %v3224
        %v3231 = vand.u32 2147483647, %v3225
        %v3232 = vand.u32 2147483647, %v3226
        %v3233 = vand.u32 2147483647, %v3227
        %v3234 = vand.u32 2147483647, %v3228
        %v3235 = vrot.slane %v362, 6
        %v3236 = vrot.slane %v363, 6
        %v3237 = vsel %vm326, %v3235, %v3236
        %v3238 = vrot.slane %v364, 6
        %v3239 = vsel %vm326, %v3236, %v3238
        %v3240 = vrot.slane %v365, 6
        %v3241 = vrot.slane %v366, 6
        %v3242 = vsel %vm326, %v3240, %v3241
        %v3243 = vrot.slane %v367, 6
        %v3244 = vsel %vm326, %v3241, %v3243
        %vm3251 = vcmp.lt.f32.partialorder %v3229, %v3235
        %vm3252 = vcmp.lt.f32.partialorder %v3230, %v3237
        %vm3253 = vcmp.lt.f32.partialorder %v3231, %v3239
        %vm3254 = vcmp.lt.f32.partialorder %v3232, %v3240
        %vm3255 = vcmp.lt.f32.partialorder %v3233, %v3242
        %vm3256 = vcmp.lt.f32.partialorder %v3234, %v3244
        %vm3257 = vmand %vm3201, %vm3251
        %vm3258 = vmand %vm3202, %vm3252
        %vm3259 = vmand %vm3203, %vm3253
        %vm3260 = vmand %vm3204, %vm3254
        %vm3261 = vmand %vm3205, %vm3255
        %vm3262 = vmand %vm3206, %vm3256
        %v3263 = vsel %vm3257, %v404, 0.0
        %v3264 = vsel %vm3258, %v405, 0.0
        %v3265 = vsel %vm3259, %v3165, 0.0
        %v3266 = vsel %vm3260, %v406, 0.0
        %v3267 = vsel %vm3261, %v407, 0.0
        %v3268 = vsel %vm3262, %v3166, 0.0
        %v3269 = vmul.f32 %v3263, %v505
        %v3270 = vmul.f32 %v3264, %v506
        %v3271 = vmul.f32 %v3265, %v1184
        %v3272 = vmul.f32 %v3266, %v507
        %v3273 = vmul.f32 %v3267, %v508
        %v3274 = vmul.f32 %v3268, %v1185
        %vm3275 = vcmask 1047556
        %v3276 = vsel %vm3275, %v3269, 0.0
        %v3277 = vsel %vm3275, %v3272, 0.0
        %v3278 = vadd.f32 %v3276, %v3277
        %v3279 = vadd.f32 %v3270, %v3273
        %vm3280 = vcmask 1043456
        %v3281 = vsel %vm3280, %v3271, 0.0
        %v3282 = vsel %vm3280, %v3274, 0.0
        %v3283 = vadd.f32 %v3281, %v3282
        %v3287 = vrot.slane %v3278, 4
        %v3288 = vrot.slane %v3279, 4
        %v3289 = vsel %vm3280, %v3287, %v3288
        %v3290 = vrot.slane %v3283, 4
        %v3291 = vsel %vm3280, %v3288, %v3290
        %v3294 = vadd.f32 %v3155, %v3289
        %v3295 = vadd.f32 %v3156, %v3291
        %v3296 = vsel %vm3275, %v3263, 0.0
        %v3297 = vsel %vm3275, %v3266, 0.0
        %v3298 = vadd.f32 %v3296, %v3297
        %v3299 = vadd.f32 %v3264, %v3267
        %v3300 = vsel %vm3280, %v3265, 0.0
        %v3301 = vsel %vm3280, %v3268, 0.0
        %v3302 = vadd.f32 %v3300, %v3301
        %v3306 = vrot.slane %v3298, 4
        %v3307 = vrot.slane %v3299, 4
        %v3308 = vsel %vm3280, %v3306, %v3307
        %v3309 = vrot.slane %v3302, 4
        %v3310 = vsel %vm3280, %v3307, %v3309
        %v3313 = vadd.f32 %v3159, %v3308
        %v3314 = vadd.f32 %v3160, %v3310
        %v3315 = vrot.slane %v293, 4
        %v3316 = vrot.slane %v294, 4
        %v3317 = vsel %vm3280, %v3315, %v3316
        %v3318 = vrot.slane %v295, 4
        %v3319 = vsel %vm3280, %v3316, %v3318
        %v3320 = vrot.slane %v296, 4
        %v3321 = vrot.slane %v297, 4
        %v3322 = vsel %vm3280, %v3320, %v3321
        %v3323 = vrot.slane %v298, 4
        %v3324 = vsel %vm3280, %v3321, %v3323
        %3329 = vrot.lane.b32.xlu0 %v3317, 1
        %v3330 = vpop.permute.xlu0 %3329
        %3331 = vrot.lane.b32.xlu0 %v3319, 1
        %v3332 = vpop.permute.xlu0 %3331
        %3333 = vrot.lane.b32.xlu0 %v3322, 1
        %v3334 = vpop.permute.xlu0 %3333
        %3335 = vrot.lane.b32.xlu0 %v3324, 1
        %v3336 = vpop.permute.xlu0 %3335
        %v3337 = vrot.slane %v299, 4
        %v3338 = vrot.slane %v300, 4
        %v3339 = vsel %vm3280, %v3337, %v3338
        %v3340 = vrot.slane %v301, 4
        %v3341 = vsel %vm3280, %v3338, %v3340
        %v3342 = vrot.slane %v302, 4
        %v3343 = vrot.slane %v303, 4
        %v3344 = vsel %vm3280, %v3342, %v3343
        %v3345 = vrot.slane %v304, 4
        %v3346 = vsel %vm3280, %v3343, %v3345
        %3351 = vrot.lane.b32.xlu0 %v3339, 1
        %v3352 = vpop.permute.xlu0 %3351
        %3353 = vrot.lane.b32.xlu0 %v3341, 1
        %v3354 = vpop.permute.xlu0 %3353
        %3355 = vrot.lane.b32.xlu0 %v3344, 1
        %v3356 = vpop.permute.xlu0 %3355
        %3357 = vrot.lane.b32.xlu0 %v3346, 1
        %v3358 = vpop.permute.xlu0 %3357
        %v3359 = vrot.slane %v305, 4
        %v3360 = vrot.slane %v306, 4
        %v3361 = vsel %vm3280, %v3359, %v3360
        %v3362 = vrot.slane %v307, 4
        %v3363 = vsel %vm3280, %v3360, %v3362
        %3366 = vrot.lane.b32.xlu0 %v3361, 1
        %v3367 = vpop.permute.xlu0 %3366
        %3368 = vrot.lane.b32.xlu0 %v3363, 1
        %v3369 = vpop.permute.xlu0 %3368
        %v3370 = vsub.f32 %v3330, %v3352
        %v3371 = vsub.f32 %v3332, %v3354
        %v3372 = vsub.f32 %v3334, %v3356
        %v3373 = vsub.f32 %v3336, %v3358
        %v3374 = vand.u32 2147483647, %v3370
        %v3375 = vand.u32 2147483647, %v3371
        %v3376 = vand.u32 2147483647, %v3372
        %v3377 = vand.u32 2147483647, %v3373
        %v3378 = vsub.f32 %v3330, %v3367
        %v3379 = vsub.f32 %v3332, %v3369
        %v3380 = vsub.f32 %v3334, %v3367
        %v3381 = vsub.f32 %v3336, %v3369
        %v3382 = vand.u32 2147483647, %v3378
        %v3383 = vand.u32 2147483647, %v3379
        %v3384 = vand.u32 2147483647, %v3380
        %v3385 = vand.u32 2147483647, %v3381
        %v3386 = vadd.f32 %v3374, 1.0
        %v3387 = vadd.f32 %v3375, 1.0
        %v3388 = vadd.f32 %v3376, 1.0
        %v3389 = vadd.f32 %v3377, 1.0
        %v3390 = vlog2.pop %v3386
        %v3391 = vmul.f32 %v3390, 0.6931472
        %v3392 = vlog2.pop %v3387
        %v3393 = vmul.f32 %v3392, 0.6931472
        %v3394 = vlog2.pop %v3388
        %v3395 = vmul.f32 %v3394, 0.6931472
        %v3396 = vlog2.pop %v3389
        %v3397 = vmul.f32 %v3396, 0.6931472
        %v3398 = vadd.f32 %v3382, 1.0
        %v3399 = vadd.f32 %v3383, 1.0
        %v3400 = vadd.f32 %v3384, 1.0
        %v3401 = vadd.f32 %v3385, 1.0
        %v3402 = vlog2.pop %v3398
        %v3403 = vmul.f32 %v3402, 0.6931472
        %v3404 = vlog2.pop %v3399
        %v3405 = vmul.f32 %v3404, 0.6931472
        %v3406 = vlog2.pop %v3400
        %v3407 = vmul.f32 %v3406, 0.6931472
        %v3408 = vlog2.pop %v3401
        %v3409 = vmul.f32 %v3408, 0.6931472
        %v3410 = vmul.f32 %v3391, %v3403
        %v3411 = vmul.f32 %v3393, %v3405
        %v3412 = vmul.f32 %v3395, %v3407
        %v3413 = vmul.f32 %v3397, %v3409
        %v3414 = vmul.f32 %v3410, 3.5
        %v3415 = vmul.f32 %v3411, 3.5
        %v3416 = vmul.f32 %v3412, 3.5
        %v3417 = vmul.f32 %v3413, 3.5
        %v3418 = vadd.f32 %v3414, 1e-08
        %v3419 = vadd.f32 %v3415, 1e-08
        %v3420 = vadd.f32 %v3416, 1e-08
        %v3421 = vadd.f32 %v3417, 1e-08
        %v3422 = vrcp.pop %v3418
        %v3423 = vrcp.pop %v3419
        %v3424 = vrcp.pop %v3420
        %v3425 = vrcp.pop %v3421
        %vm3426 = vcmp.lt.f32.partialorder %v3374, %v414
        %vm3427 = vcmp.lt.f32.partialorder %v3375, %v416
        %vm3428 = vcmp.lt.f32.partialorder %v3376, %v414
        %vm3429 = vcmp.lt.f32.partialorder %v3377, %v416
        %vm3430 = vcmp.lt.f32.partialorder %v3382, %v428
        %vm3431 = vcmp.lt.f32.partialorder %v3383, %v430
        %vm3432 = vcmp.lt.f32.partialorder %v3384, %v428
        %vm3433 = vcmp.lt.f32.partialorder %v3385, %v430
        %vm3434 = vmand %vm3426, %vm3430
        %vm3435 = vmand %vm3427, %vm3431
        %vm3436 = vmand %vm3428, %vm3432
        %vm3437 = vmand %vm3429, %vm3433
        %vm3438 = vcmp.ge.f32.partialorder %v3352, 1e-08
        %vm3439 = vcmp.ge.f32.partialorder %v3354, 1e-08
        %vm3440 = vcmp.ge.f32.partialorder %v3356, 1e-08
        %vm3441 = vcmp.ge.f32.partialorder %v3358, 1e-08
        %vm3442 = vmand %vm3434, %vm3438
        %vm3443 = vmand %vm3435, %vm3439
        %vm3444 = vmand %vm3436, %vm3440
        %vm3445 = vmand %vm3437, %vm3441
        %v3446 = vsub.f32 %v3352, %v453
        %v3447 = vsub.f32 %v3354, %v455
        %v3448 = vsub.f32 %v3356, %v458
        %v3449 = vsub.f32 %v3358, %v460
        %v3450 = vand.u32 2147483647, %v3446
        %v3451 = vand.u32 2147483647, %v3447
        %v3452 = vand.u32 2147483647, %v3448
        %v3453 = vand.u32 2147483647, %v3449
        %vm3454 = vcmp.lt.f32.partialorder %v3450, %v481
        %vm3455 = vcmp.lt.f32.partialorder %v3451, %v483
        %vm3456 = vcmp.lt.f32.partialorder %v3452, %v486
        %vm3457 = vcmp.lt.f32.partialorder %v3453, %v488
        %vm3458 = vmand %vm3442, %vm3454
        %vm3459 = vmand %vm3443, %vm3455
        %vm3460 = vmand %vm3444, %vm3456
        %vm3461 = vmand %vm3445, %vm3457
        %v3462 = vsel %vm3458, %v3422, 0.0
        %v3463 = vsel %vm3459, %v3423, 0.0
        %v3464 = vsel %vm3460, %v3424, 0.0
        %v3465 = vsel %vm3461, %v3425, 0.0
        %v3466 = vsub.f32 %v3352, %v3378
        %v3467 = vsub.f32 %v3354, %v3379
        %v3468 = vsub.f32 %v3356, %v3380
        %v3469 = vsub.f32 %v3358, %v3381
        %v3470 = vmul.f32 %v3462, %v3466
        %v3471 = vmul.f32 %v3463, %v3467
        %v3472 = vmul.f32 %v3464, %v3468
        %v3473 = vmul.f32 %v3465, %v3469
        %v3474 = vadd.f32 %v3470, %v3472
        %v3475 = vadd.f32 %v3471, %v3473
        %v3476 = vadd.f32 %v3294, %v3474
        %v3477 = vadd.f32 %v3295, %v3475
        %v3478 = vadd.f32 %v3462, %v3464
        %v3479 = vadd.f32 %v3463, %v3465
        %v3480 = vadd.f32 %v3313, %v3478
        %v3481 = vadd.f32 %v3314, %v3479
        %3482 = vrot.lane.b32.xlu0 %v3317, 127
        %v3483 = vpop.permute.xlu0 %3482
        %3484 = vrot.lane.b32.xlu0 %v3319, 127
        %v3485 = vpop.permute.xlu0 %3484
        %3486 = vrot.lane.b32.xlu0 %v3322, 127
        %v3487 = vpop.permute.xlu0 %3486
        %3488 = vrot.lane.b32.xlu0 %v3324, 127
        %v3489 = vpop.permute.xlu0 %3488
        %3490 = vrot.lane.b32.xlu0 %v3339, 127
        %v3491 = vpop.permute.xlu0 %3490
        %3492 = vrot.lane.b32.xlu0 %v3341, 127
        %v3493 = vpop.permute.xlu0 %3492
        %3494 = vrot.lane.b32.xlu0 %v3344, 127
        %v3495 = vpop.permute.xlu0 %3494
        %3496 = vrot.lane.b32.xlu0 %v3346, 127
        %v3497 = vpop.permute.xlu0 %3496
        %3498 = vrot.lane.b32.xlu0 %v3361, 127
        %v3499 = vpop.permute.xlu0 %3498
        %3500 = vrot.lane.b32.xlu0 %v3363, 127
        %v3501 = vpop.permute.xlu0 %3500
        %v3502 = vsub.f32 %v3483, %v3491
        %v3503 = vsub.f32 %v3485, %v3493
        %v3504 = vsub.f32 %v3487, %v3495
        %v3505 = vsub.f32 %v3489, %v3497
        %v3506 = vand.u32 2147483647, %v3502
        %v3507 = vand.u32 2147483647, %v3503
        %v3508 = vand.u32 2147483647, %v3504
        %v3509 = vand.u32 2147483647, %v3505
        %v3510 = vsub.f32 %v3483, %v3499
        %v3511 = vsub.f32 %v3485, %v3501
        %v3512 = vsub.f32 %v3487, %v3499
        %v3513 = vsub.f32 %v3489, %v3501
        %v3514 = vand.u32 2147483647, %v3510
        %v3515 = vand.u32 2147483647, %v3511
        %v3516 = vand.u32 2147483647, %v3512
        %v3517 = vand.u32 2147483647, %v3513
        %v3518 = vadd.f32 %v3506, 1.0
        %v3519 = vadd.f32 %v3507, 1.0
        %v3520 = vadd.f32 %v3508, 1.0
        %v3521 = vadd.f32 %v3509, 1.0
        %v3522 = vlog2.pop %v3518
        %v3523 = vmul.f32 %v3522, 0.6931472
        %v3524 = vlog2.pop %v3519
        %v3525 = vmul.f32 %v3524, 0.6931472
        %v3526 = vlog2.pop %v3520
        %v3527 = vmul.f32 %v3526, 0.6931472
        %v3528 = vlog2.pop %v3521
        %v3529 = vmul.f32 %v3528, 0.6931472
        %v3530 = vadd.f32 %v3514, 1.0
        %v3531 = vadd.f32 %v3515, 1.0
        %v3532 = vadd.f32 %v3516, 1.0
        %v3533 = vadd.f32 %v3517, 1.0
        %v3534 = vlog2.pop %v3530
        %v3535 = vmul.f32 %v3534, 0.6931472
        %v3536 = vlog2.pop %v3531
        %v3537 = vmul.f32 %v3536, 0.6931472
        %v3538 = vlog2.pop %v3532
        %v3539 = vmul.f32 %v3538, 0.6931472
        %v3540 = vlog2.pop %v3533
        %v3541 = vmul.f32 %v3540, 0.6931472
        %v3542 = vmul.f32 %v3523, %v3535
        %v3543 = vmul.f32 %v3525, %v3537
        %v3544 = vmul.f32 %v3527, %v3539
        %v3545 = vmul.f32 %v3529, %v3541
        %v3546 = vmul.f32 %v3542, 3.5
        %v3547 = vmul.f32 %v3543, 3.5
        %v3548 = vmul.f32 %v3544, 3.5
        %v3549 = vmul.f32 %v3545, 3.5
        %v3550 = vadd.f32 %v3546, 1e-08
        %v3551 = vadd.f32 %v3547, 1e-08
        %v3552 = vadd.f32 %v3548, 1e-08
        %v3553 = vadd.f32 %v3549, 1e-08
        %v3554 = vrcp.pop %v3550
        %v3555 = vrcp.pop %v3551
        %v3556 = vrcp.pop %v3552
        %v3557 = vrcp.pop %v3553
        %vm3558 = vcmp.lt.f32.partialorder %v3506, %v414
        %vm3559 = vcmp.lt.f32.partialorder %v3507, %v416
        %vm3560 = vcmp.lt.f32.partialorder %v3508, %v414
        %vm3561 = vcmp.lt.f32.partialorder %v3509, %v416
        %vm3562 = vcmp.lt.f32.partialorder %v3514, %v428
        %vm3563 = vcmp.lt.f32.partialorder %v3515, %v430
        %vm3564 = vcmp.lt.f32.partialorder %v3516, %v428
        %vm3565 = vcmp.lt.f32.partialorder %v3517, %v430
        %vm3566 = vmand %vm3558, %vm3562
        %vm3567 = vmand %vm3559, %vm3563
        %vm3568 = vmand %vm3560, %vm3564
        %vm3569 = vmand %vm3561, %vm3565
        %vm3570 = vcmp.ge.f32.partialorder %v3491, 1e-08
        %vm3571 = vcmp.ge.f32.partialorder %v3493, 1e-08
        %vm3572 = vcmp.ge.f32.partialorder %v3495, 1e-08
        %vm3573 = vcmp.ge.f32.partialorder %v3497, 1e-08
        %vm3574 = vmand %vm3566, %vm3570
        %vm3575 = vmand %vm3567, %vm3571
        %vm3576 = vmand %vm3568, %vm3572
        %vm3577 = vmand %vm3569, %vm3573
        %v3578 = vsub.f32 %v3491, %v453
        %v3579 = vsub.f32 %v3493, %v455
        %v3580 = vsub.f32 %v3495, %v458
        %v3581 = vsub.f32 %v3497, %v460
        %v3582 = vand.u32 2147483647, %v3578
        %v3583 = vand.u32 2147483647, %v3579
        %v3584 = vand.u32 2147483647, %v3580
        %v3585 = vand.u32 2147483647, %v3581
        %vm3586 = vcmp.lt.f32.partialorder %v3582, %v481
        %vm3587 = vcmp.lt.f32.partialorder %v3583, %v483
        %vm3588 = vcmp.lt.f32.partialorder %v3584, %v486
        %vm3589 = vcmp.lt.f32.partialorder %v3585, %v488
        %vm3590 = vmand %vm3574, %vm3586
        %vm3591 = vmand %vm3575, %vm3587
        %vm3592 = vmand %vm3576, %vm3588
        %vm3593 = vmand %vm3577, %vm3589
        %v3594 = vsel %vm3590, %v3554, 0.0
        %v3595 = vsel %vm3591, %v3555, 0.0
        %v3596 = vsel %vm3592, %v3556, 0.0
        %v3597 = vsel %vm3593, %v3557, 0.0
        %v3598 = vsub.f32 %v3491, %v3510
        %v3599 = vsub.f32 %v3493, %v3511
        %v3600 = vsub.f32 %v3495, %v3512
        %v3601 = vsub.f32 %v3497, %v3513
        %v3602 = vmul.f32 %v3594, %v3598
        %v3603 = vmul.f32 %v3595, %v3599
        %v3604 = vmul.f32 %v3596, %v3600
        %v3605 = vmul.f32 %v3597, %v3601
        %v3606 = vadd.f32 %v3602, %v3604
        %v3607 = vadd.f32 %v3603, %v3605
        %v3608 = vadd.f32 %v3476, %v3606
        %v3609 = vadd.f32 %v3477, %v3607
        %v3610 = vadd.f32 %v3594, %v3596
        %v3611 = vadd.f32 %v3595, %v3597
        %v3612 = vadd.f32 %v3480, %v3610
        %v3613 = vadd.f32 %v3481, %v3611
        %3614 = vrot.lane.b32.xlu0 %v3317, 2
        %v3615 = vpop.permute.xlu0 %3614
        %3616 = vrot.lane.b32.xlu0 %v3319, 2
        %v3617 = vpop.permute.xlu0 %3616
        %3618 = vrot.lane.b32.xlu0 %v3322, 2
        %v3619 = vpop.permute.xlu0 %3618
        %3620 = vrot.lane.b32.xlu0 %v3324, 2
        %v3621 = vpop.permute.xlu0 %3620
        %3622 = vrot.lane.b32.xlu0 %v3339, 2
        %v3623 = vpop.permute.xlu0 %3622
        %3624 = vrot.lane.b32.xlu0 %v3341, 2
        %v3625 = vpop.permute.xlu0 %3624
        %3626 = vrot.lane.b32.xlu0 %v3344, 2
        %v3627 = vpop.permute.xlu0 %3626
        %3628 = vrot.lane.b32.xlu0 %v3346, 2
        %v3629 = vpop.permute.xlu0 %3628
        %3630 = vrot.lane.b32.xlu0 %v3361, 2
        %v3631 = vpop.permute.xlu0 %3630
        %3632 = vrot.lane.b32.xlu0 %v3363, 2
        %v3633 = vpop.permute.xlu0 %3632
        %v3634 = vsub.f32 %v3615, %v3623
        %v3635 = vsub.f32 %v3617, %v3625
        %v3636 = vsub.f32 %v3619, %v3627
        %v3637 = vsub.f32 %v3621, %v3629
        %v3638 = vand.u32 2147483647, %v3634
        %v3639 = vand.u32 2147483647, %v3635
        %v3640 = vand.u32 2147483647, %v3636
        %v3641 = vand.u32 2147483647, %v3637
        %v3642 = vsub.f32 %v3615, %v3631
        %v3643 = vsub.f32 %v3617, %v3633
        %v3644 = vsub.f32 %v3619, %v3631
        %v3645 = vsub.f32 %v3621, %v3633
        %v3646 = vand.u32 2147483647, %v3642
        %v3647 = vand.u32 2147483647, %v3643
        %v3648 = vand.u32 2147483647, %v3644
        %v3649 = vand.u32 2147483647, %v3645
        %v3650 = vadd.f32 %v3638, 1.0
        %v3651 = vadd.f32 %v3639, 1.0
        %v3652 = vadd.f32 %v3640, 1.0
        %v3653 = vadd.f32 %v3641, 1.0
        %v3654 = vlog2.pop %v3650
        %v3655 = vmul.f32 %v3654, 0.6931472
        %v3656 = vlog2.pop %v3651
        %v3657 = vmul.f32 %v3656, 0.6931472
        %v3658 = vlog2.pop %v3652
        %v3659 = vmul.f32 %v3658, 0.6931472
        %v3660 = vlog2.pop %v3653
        %v3661 = vmul.f32 %v3660, 0.6931472
        %v3662 = vadd.f32 %v3646, 1.0
        %v3663 = vadd.f32 %v3647, 1.0
        %v3664 = vadd.f32 %v3648, 1.0
        %v3665 = vadd.f32 %v3649, 1.0
        %v3666 = vlog2.pop %v3662
        %v3667 = vmul.f32 %v3666, 0.6931472
        %v3668 = vlog2.pop %v3663
        %v3669 = vmul.f32 %v3668, 0.6931472
        %v3670 = vlog2.pop %v3664
        %v3671 = vmul.f32 %v3670, 0.6931472
        %v3672 = vlog2.pop %v3665
        %v3673 = vmul.f32 %v3672, 0.6931472
        %v3674 = vmul.f32 %v3655, %v3667
        %v3675 = vmul.f32 %v3657, %v3669
        %v3676 = vmul.f32 %v3659, %v3671
        %v3677 = vmul.f32 %v3661, %v3673
        %v3678 = vmul.f32 %v3674, 5.0
        %v3679 = vmul.f32 %v3675, 5.0
        %v3680 = vmul.f32 %v3676, 5.0
        %v3681 = vmul.f32 %v3677, 5.0
        %v3682 = vadd.f32 %v3678, 1e-08
        %v3683 = vadd.f32 %v3679, 1e-08
        %v3684 = vadd.f32 %v3680, 1e-08
        %v3685 = vadd.f32 %v3681, 1e-08
        %v3686 = vrcp.pop %v3682
        %v3687 = vrcp.pop %v3683
        %v3688 = vrcp.pop %v3684
        %v3689 = vrcp.pop %v3685
        %vm3690 = vcmp.lt.f32.partialorder %v3638, %v414
        %vm3691 = vcmp.lt.f32.partialorder %v3639, %v416
        %vm3692 = vcmp.lt.f32.partialorder %v3640, %v414
        %vm3693 = vcmp.lt.f32.partialorder %v3641, %v416
        %vm3694 = vcmp.lt.f32.partialorder %v3646, %v428
        %vm3695 = vcmp.lt.f32.partialorder %v3647, %v430
        %vm3696 = vcmp.lt.f32.partialorder %v3648, %v428
        %vm3697 = vcmp.lt.f32.partialorder %v3649, %v430
        %vm3698 = vmand %vm3690, %vm3694
        %vm3699 = vmand %vm3691, %vm3695
        %vm3700 = vmand %vm3692, %vm3696
        %vm3701 = vmand %vm3693, %vm3697
        %vm3702 = vcmp.ge.f32.partialorder %v3623, 1e-08
        %vm3703 = vcmp.ge.f32.partialorder %v3625, 1e-08
        %vm3704 = vcmp.ge.f32.partialorder %v3627, 1e-08
        %vm3705 = vcmp.ge.f32.partialorder %v3629, 1e-08
        %vm3706 = vmand %vm3698, %vm3702
        %vm3707 = vmand %vm3699, %vm3703
        %vm3708 = vmand %vm3700, %vm3704
        %vm3709 = vmand %vm3701, %vm3705
        %v3710 = vsub.f32 %v3623, %v453
        %v3711 = vsub.f32 %v3625, %v455
        %v3712 = vsub.f32 %v3627, %v458
        %v3713 = vsub.f32 %v3629, %v460
        %v3714 = vand.u32 2147483647, %v3710
        %v3715 = vand.u32 2147483647, %v3711
        %v3716 = vand.u32 2147483647, %v3712
        %v3717 = vand.u32 2147483647, %v3713
        %vm3718 = vcmp.lt.f32.partialorder %v3714, %v481
        %vm3719 = vcmp.lt.f32.partialorder %v3715, %v483
        %vm3720 = vcmp.lt.f32.partialorder %v3716, %v486
        %vm3721 = vcmp.lt.f32.partialorder %v3717, %v488
        %vm3722 = vmand %vm3706, %vm3718
        %vm3723 = vmand %vm3707, %vm3719
        %vm3724 = vmand %vm3708, %vm3720
        %vm3725 = vmand %vm3709, %vm3721
        %v3726 = vsel %vm3722, %v3686, 0.0
        %v3727 = vsel %vm3723, %v3687, 0.0
        %v3728 = vsel %vm3724, %v3688, 0.0
        %v3729 = vsel %vm3725, %v3689, 0.0
        %v3730 = vsub.f32 %v3623, %v3642
        %v3731 = vsub.f32 %v3625, %v3643
        %v3732 = vsub.f32 %v3627, %v3644
        %v3733 = vsub.f32 %v3629, %v3645
        %v3734 = vmul.f32 %v3726, %v3730
        %v3735 = vmul.f32 %v3727, %v3731
        %v3736 = vmul.f32 %v3728, %v3732
        %v3737 = vmul.f32 %v3729, %v3733
        %v3738 = vadd.f32 %v3734, %v3736
        %v3739 = vadd.f32 %v3735, %v3737
        %v3740 = vadd.f32 %v3608, %v3738
        %v3741 = vadd.f32 %v3609, %v3739
        %v3742 = vadd.f32 %v3726, %v3728
        %v3743 = vadd.f32 %v3727, %v3729
        %v3744 = vadd.f32 %v3612, %v3742
        %v3745 = vadd.f32 %v3613, %v3743
        %3746 = vrot.lane.b32.xlu0 %v3317, 126
        %v3747 = vpop.permute.xlu0 %3746
        %3748 = vrot.lane.b32.xlu0 %v3319, 126
        %v3749 = vpop.permute.xlu0 %3748
        %3750 = vrot.lane.b32.xlu0 %v3322, 126
        %v3751 = vpop.permute.xlu0 %3750
        %3752 = vrot.lane.b32.xlu0 %v3324, 126
        %v3753 = vpop.permute.xlu0 %3752
        %3754 = vrot.lane.b32.xlu0 %v3339, 126
        %v3755 = vpop.permute.xlu0 %3754
        %3756 = vrot.lane.b32.xlu0 %v3341, 126
        %v3757 = vpop.permute.xlu0 %3756
        %3758 = vrot.lane.b32.xlu0 %v3344, 126
        %v3759 = vpop.permute.xlu0 %3758
        %3760 = vrot.lane.b32.xlu0 %v3346, 126
        %v3761 = vpop.permute.xlu0 %3760
        %3762 = vrot.lane.b32.xlu0 %v3361, 126
        %v3763 = vpop.permute.xlu0 %3762
        %3764 = vrot.lane.b32.xlu0 %v3363, 126
        %v3765 = vpop.permute.xlu0 %3764
        %v3766 = vsub.f32 %v3747, %v3755
        %v3767 = vsub.f32 %v3749, %v3757
        %v3768 = vsub.f32 %v3751, %v3759
        %v3769 = vsub.f32 %v3753, %v3761
        %v3770 = vand.u32 2147483647, %v3766
        %v3771 = vand.u32 2147483647, %v3767
        %v3772 = vand.u32 2147483647, %v3768
        %v3773 = vand.u32 2147483647, %v3769
        %v3774 = vsub.f32 %v3747, %v3763
        %v3775 = vsub.f32 %v3749, %v3765
        %v3776 = vsub.f32 %v3751, %v3763
        %v3777 = vsub.f32 %v3753, %v3765
        %v3778 = vand.u32 2147483647, %v3774
        %v3779 = vand.u32 2147483647, %v3775
        %v3780 = vand.u32 2147483647, %v3776
        %v3781 = vand.u32 2147483647, %v3777
        %v3782 = vadd.f32 %v3770, 1.0
        %v3783 = vadd.f32 %v3771, 1.0
        %v3784 = vadd.f32 %v3772, 1.0
        %v3785 = vadd.f32 %v3773, 1.0
        %v3786 = vlog2.pop %v3782
        %v3787 = vmul.f32 %v3786, 0.6931472
        %v3788 = vlog2.pop %v3783
        %v3789 = vmul.f32 %v3788, 0.6931472
        %v3790 = vlog2.pop %v3784
        %v3791 = vmul.f32 %v3790, 0.6931472
        %v3792 = vlog2.pop %v3785
        %v3793 = vmul.f32 %v3792, 0.6931472
        %v3794 = vadd.f32 %v3778, 1.0
        %v3795 = vadd.f32 %v3779, 1.0
        %v3796 = vadd.f32 %v3780, 1.0
        %v3797 = vadd.f32 %v3781, 1.0
        %v3798 = vlog2.pop %v3794
        %v3799 = vmul.f32 %v3798, 0.6931472
        %v3800 = vlog2.pop %v3795
        %v3801 = vmul.f32 %v3800, 0.6931472
        %v3802 = vlog2.pop %v3796
        %v3803 = vmul.f32 %v3802, 0.6931472
        %v3804 = vlog2.pop %v3797
        %v3805 = vmul.f32 %v3804, 0.6931472
        %v3806 = vmul.f32 %v3787, %v3799
        %v3807 = vmul.f32 %v3789, %v3801
        %v3808 = vmul.f32 %v3791, %v3803
        %v3809 = vmul.f32 %v3793, %v3805
        %v3810 = vmul.f32 %v3806, 5.0
        %v3811 = vmul.f32 %v3807, 5.0
        %v3812 = vmul.f32 %v3808, 5.0
        %v3813 = vmul.f32 %v3809, 5.0
        %v3814 = vadd.f32 %v3810, 1e-08
        %v3815 = vadd.f32 %v3811, 1e-08
        %v3816 = vadd.f32 %v3812, 1e-08
        %v3817 = vadd.f32 %v3813, 1e-08
        %v3818 = vrcp.pop %v3814
        %v3819 = vrcp.pop %v3815
        %v3820 = vrcp.pop %v3816
        %v3821 = vrcp.pop %v3817
        %vm3822 = vcmp.lt.f32.partialorder %v3770, %v414
        %vm3823 = vcmp.lt.f32.partialorder %v3771, %v416
        %vm3824 = vcmp.lt.f32.partialorder %v3772, %v414
        %vm3825 = vcmp.lt.f32.partialorder %v3773, %v416
        %vm3826 = vcmp.lt.f32.partialorder %v3778, %v428
        %vm3827 = vcmp.lt.f32.partialorder %v3779, %v430
        %vm3828 = vcmp.lt.f32.partialorder %v3780, %v428
        %vm3829 = vcmp.lt.f32.partialorder %v3781, %v430
        %vm3830 = vmand %vm3822, %vm3826
        %vm3831 = vmand %vm3823, %vm3827
        %vm3832 = vmand %vm3824, %vm3828
        %vm3833 = vmand %vm3825, %vm3829
        %vm3834 = vcmp.ge.f32.partialorder %v3755, 1e-08
        %vm3835 = vcmp.ge.f32.partialorder %v3757, 1e-08
        %vm3836 = vcmp.ge.f32.partialorder %v3759, 1e-08
        %vm3837 = vcmp.ge.f32.partialorder %v3761, 1e-08
        %vm3838 = vmand %vm3830, %vm3834
        %vm3839 = vmand %vm3831, %vm3835
        %vm3840 = vmand %vm3832, %vm3836
        %vm3841 = vmand %vm3833, %vm3837
        %v3842 = vsub.f32 %v3755, %v453
        %v3843 = vsub.f32 %v3757, %v455
        %v3844 = vsub.f32 %v3759, %v458
        %v3845 = vsub.f32 %v3761, %v460
        %v3846 = vand.u32 2147483647, %v3842
        %v3847 = vand.u32 2147483647, %v3843
        %v3848 = vand.u32 2147483647, %v3844
        %v3849 = vand.u32 2147483647, %v3845
        %vm3850 = vcmp.lt.f32.partialorder %v3846, %v481
        %vm3851 = vcmp.lt.f32.partialorder %v3847, %v483
        %vm3852 = vcmp.lt.f32.partialorder %v3848, %v486
        %vm3853 = vcmp.lt.f32.partialorder %v3849, %v488
        %vm3854 = vmand %vm3838, %vm3850
        %vm3855 = vmand %vm3839, %vm3851
        %vm3856 = vmand %vm3840, %vm3852
        %vm3857 = vmand %vm3841, %vm3853
        %v3858 = vsel %vm3854, %v3818, 0.0
        %v3859 = vsel %vm3855, %v3819, 0.0
        %v3860 = vsel %vm3856, %v3820, 0.0
        %v3861 = vsel %vm3857, %v3821, 0.0
        %v3862 = vsub.f32 %v3755, %v3774
        %v3863 = vsub.f32 %v3757, %v3775
        %v3864 = vsub.f32 %v3759, %v3776
        %v3865 = vsub.f32 %v3761, %v3777
        %v3866 = vmul.f32 %v3858, %v3862
        %v3867 = vmul.f32 %v3859, %v3863
        %v3868 = vmul.f32 %v3860, %v3864
        %v3869 = vmul.f32 %v3861, %v3865
        %v3870 = vadd.f32 %v3866, %v3868
        %v3871 = vadd.f32 %v3867, %v3869
        %v3872 = vadd.f32 %v3740, %v3870
        %v3873 = vadd.f32 %v3741, %v3871
        %v3874 = vadd.f32 %v3858, %v3860
        %v3875 = vadd.f32 %v3859, %v3861
        %v3876 = vadd.f32 %v3744, %v3874
        %v3877 = vadd.f32 %v3745, %v3875
        %v3878 = vadd.f32 %v3876, 1e-08
        %v3879 = vadd.f32 %v3877, 1e-08
        %v3880 = vrcp.pop %v3878
        %v3881 = vmul.f32 %v3872, %v3880
        %v3882 = vrcp.pop %v3879
        %v3883 = vmul.f32 %v3873, %v3882
        %3884 = vst [vmem:[%s265] sm:$0xff] %v3881
        %3885 = vst [vmem:[%s265 + $0x8] sm:$0xff] %v3883
        %s3886 = sand.u32 %s146, 1
        %s3887 = scalar_lea.sflag [#allocation4], %s3886
        %s3888 = sand.u32 %s146, 1
        %s3889 = smul.addr %s3888, 16
        %s3890 = scalar_lea.vmem [#allocation3], %s3889
        // Predicated region
        $region37: #{tpu_custom_call.1} parent=35 // pred_check
          %p3891 = pneg %p156
        $region38: #{tpu_custom_call.1} parent=35 // pred_check_branch
          %3893 = sbr.rel (%p3891) target = $region40
        $region39: #{tpu_custom_call.1} parent=35 // pred_region
          %s3895 = ssub.s32 256, 256
          %3896 = vsyncadd %s3887, %s3895
          %s3897 = smul.addr %s24, 2
          %s3898 = smul.addr %s23, 6
          %s3899 = sadd.s32 %s3897, %s3898
          %s3900 = smul.addr %s3899, 128
          %s3901 = scalar_lea.hbm %s4, %s3900
          %s3902 = sshll.u32 %s3890, 4
          %s3903 = int_to_ptr.vmem [resolvable:$true] %s3902
          %3908 = dma.vmem_to_hbm [thread:$0]  %s3903, 256, %s3901, %s3887, 128, 128, 8
        $region40: #{tpu_custom_call.1} parent=35 // pred_fallthru
          _
      $region36: #{tpu_custom_call.1} parent=5 // pred_fallthru
        _
      %p3909 = scmp.le.s32.totalorder 2, %s14
      // Predicated region
      $region41: #{tpu_custom_call.1} parent=5 // pred_check
        %p3910 = pneg %p3909
      $region42: #{tpu_custom_call.1} parent=5 // pred_check_branch
        %3912 = sbr.rel (%p3910) target = $region44
      $region43: #{tpu_custom_call.1} parent=5 // pred_region
        %s3913 = ssub.s32 %s14, 2
        // Predicated region
        $region45: #{tpu_custom_call.1} parent=43 // pred_check
          %p3914 = pneg %p162
        $region46: #{tpu_custom_call.1} parent=43 // pred_check_branch
          %3916 = sbr.rel (%p3914) target = $region48
        $region47: #{tpu_custom_call.1} parent=43 // pred_region
          %s3917 = sand.u32 %s147, 1
          %s3918 = scalar_lea.sflag [#allocation4], %s3917
          %s3919 = sand.u32 %s147, 1
          %s3920 = smul.addr %s3919, 16
          %s3921 = scalar_lea.vmem [#allocation3], %s3920
          %3922 = dma.done %s3918, 256
        $region48: #{tpu_custom_call.1} parent=43 // pred_fallthru
          _
      $region44: #{tpu_custom_call.1} parent=5 // pred_fallthru
        _
    $region6: #{tpu_custom_call.1} parent=1 // loop_footer
      %s18 = sadd.s32 1, %s14
    $region7: #{tpu_custom_call.1} parent=1 // loop_footer_branch
      %13 = sbr.rel target = $region3
    $region8: #{tpu_custom_call.1} parent=1 // loop_exit
      _
    %3923 = vsyncpa [#allocation4], 1
    %s3924 = scalar_lea.sflag [#allocation4], 1
    %3925 = vsyncpa %s3924, 1

</llo_original>
